<compile_context>
chip_gen: v7x
topology: tpu7x:2x2x1
jax: 0.10.0
libtpu: 0.0.40
codegen_flags: <defaults>
</compile_context>

<pallas_src>
import functools

import jax
import jax.numpy as jnp
import numpy as np
from jax.experimental import pallas as pl
from jax.experimental.pallas import tpu as pltpu


def _round_up(a, m):
    return ((a + m - 1) // m) * m


# ----------------------------- Pallas kernel --------------------------------

def _kan_fused_kernel(x_ref, w_ref, o_ref, lhs_ref, *, grid_pts, spline_order,
                      f_pad, f_chunk):
    """out(O, tn) = W_fused(O, (nb+1)*F_pad) @ [SiLU(x); B_0(x); ...; B_{nb-1}(x)].

    x_ref   : (F_pad, tn) f32           features on sublanes, patches on lanes
    w_ref   : (O, (nb+1)*F_pad) bf16    [base | spline_0 | ... | spline_{nb-1}]
    o_ref   : (O, tn) f32
    lhs_ref : ((nb+1)*F_pad, tn) bf16   VMEM scratch (fused matmul LHS)
    """
    g = grid_pts                         # python-float knots (baked constants)
    so = spline_order
    n_int = len(g) - 1                   # number of order-0 bases

    def inv(k, j):                       # knot reciprocals: python constants, no divides
        return 1.0 / (g[j + k] - g[j])

    # Feature-chunked streaming ("diagonal") Cox-de Boor.  Each chunk keeps only a
    # (spline_order+1)-wide window of (f_chunk, tn) arrays live; finished order-so
    # bases stream straight into the bf16 matmul LHS.
    for c in range(f_pad // f_chunk):
        r0, r1 = c * f_chunk, (c + 1) * f_chunk
        x = x_ref[r0:r1, :]                                      # (fc, tn) f32

        # base branch: SiLU(x) -> LHS slot 0 (sigmoid on EUP, mul on VPU)
        lhs_ref[r0:r1, :] = (x * jax.nn.sigmoid(x)).astype(lhs_ref.dtype)

        ge_cur = (x >= g[0]).astype(jnp.float32)   # comparisons cast once, reused
        prev = None
        t_cache = {}   # t_cache[k] = t(k, i-k): previous step's right factor, reused as left
        d_cache = {}   # d_cache[j] = x - g[j]: rolling window of <= so+1 entries
        for i in range(n_int):
            ge_next = (x >= g[i + 1]).astype(jnp.float32)
            cur = [ge_cur - ge_next]       # order-0 basis of half-open [g[i], g[i+1))
            d_cache[i] = x - g[i]          # only one fresh subtraction per step
            new_t = {}
            for k in range(1, so + 1):
                j = i - k
                if j < 0:
                    break
                # left factor t(k, j): cached from previous step when j >= 1
                t_left = t_cache[k] if k in t_cache else d_cache[j] * inv(k, j)
                t_right = d_cache[j + 1] * inv(k, j + 1)
                cur.append(t_left * prev[k - 1] + (1.0 - t_right) * cur[k - 1])
                new_t[k] = t_right
            if i >= so:                    # B_so[i-so] is final -> stream to LHS (bf16)
                slot = 1 + (i - so)
                lhs_ref[slot * f_pad + r0:slot * f_pad + r1, :] = \
                    cur[so].astype(lhs_ref.dtype)
            d_cache = {j: v for j, v in d_cache.items() if j >= i + 1 - so}
            prev, t_cache, ge_cur = cur, new_t, ge_next

    # single fused MXU matmul: bf16 inputs straight from the scratch, f32 accumulation
    o_ref[...] = jnp.dot(w_ref[...], lhs_ref[...],
                         preferred_element_type=jnp.float32).astype(o_ref.dtype)


# ------------------------------ JAX glue -------------------------------------

def unfold_nchw_padded(x, K, stride, padding, f_pad, l_pad):
    """nn.Unfold semantics, NCHW -> (B, f_pad, l_pad).

    Feature order matches PyTorch unfold (c*K*K + ki*K + kj).  Feature (F->f_pad)
    and patch (L->l_pad) padding are folded into the same im2col materialization.
    """
    B, C, H, W = x.shape
    xp = jnp.pad(x, ((0, 0), (0, 0), (padding, padding), (padding, padding)))
    oh = (H + 2 * padding - K) // stride + 1
    ow = (W + 2 * padding - K) // stride + 1
    cols = []
    for ki in range(K):
        for kj in range(K):
            cols.append(xp[:, :, ki:ki + stride * oh:stride, kj:kj + stride * ow:stride])
    patches = jnp.stack(cols, axis=2).reshape(B, C * K * K, oh * ow)
    patches = jnp.pad(patches, ((0, 0), (0, f_pad - C * K * K), (0, l_pad - oh * ow)))
    return patches, oh, ow


def fuse_kan_weights(base_w, spline_w, spline_scaler, *, f_pad):
    """[base_weight | scaled_spline_weight_0 | ... | _{nb-1}], padded F->f_pad, bf16.

    Built once, outside the per-call jit path (inference: weights are static).
    """
    out_channels, F = base_w.shape
    nb = spline_w.shape[-1]
    scaled = spline_w * spline_scaler[..., None]                         # (O, F, nb)
    w_all = jnp.concatenate([base_w[:, None, :],
                             jnp.transpose(scaled, (0, 2, 1))], axis=1)  # (O, nb+1, F)
    w_all = jnp.pad(w_all, ((0, 0), (0, 0), (0, f_pad - F)))
    return w_all.reshape(out_channels, (nb + 1) * f_pad).astype(jnp.bfloat16)


def conv_kan_forward(x, w_fused, *, kernel_size, stride, padding,
                     grid_pts, spline_order, out_channels, tn=256, f_chunk=8):
    B, C, H, W = x.shape
    K = kernel_size
    F = C * K * K
    F_pad = _round_up(F, 16)                  # bf16 sublane-packing aligned slot size
    nb = len(grid_pts) - 1 - spline_order     # spline bases per feature
    kf = (nb + 1) * F_pad
    oh = (H + 2 * padding - K) // stride + 1
    ow = (W + 2 * padding - K) // stride + 1
    L = oh * ow

    assert tn % 128 == 0 and F_pad % f_chunk == 0
    assert w_fused.shape == (out_channels, kf), w_fused.shape
    L_pad = _round_up(L, tn)                  # lane-dense tiles; no tn->128 fallback

    # TODO(synk): move the im2col into the kernel (strided make_async_copy from the
    # NCHW tensor) to kill the 9x-duplicated HBM roundtrip — matters most on v5e.
    patches, _, _ = unfold_nchw_padded(x, K, stride, padding, F_pad, L_pad)

    kernel = functools.partial(
        _kan_fused_kernel,
        grid_pts=tuple(float(v) for v in grid_pts),
        spline_order=spline_order, f_pad=F_pad, f_chunk=f_chunk)

    n_int = len(grid_pts) - 1
    cost = pl.CostEstimate(
        flops=2 * B * out_channels * kf * L_pad + 10 * B * F_pad * L_pad * n_int,
        transcendentals=B * F_pad * L_pad,
        bytes_accessed=4 * B * F_pad * L_pad + 2 * out_channels * kf
                       + 4 * B * out_channels * L_pad)

    # TODO(synk): at production sizes (large C -> kf ~ 10k+) add a K-group grid axis
    # ('arbitrary', f32 accumulator with pl.when init/finalize) so scratch + resident
    # weight stay under v7x's 64 MiB VMEM; also collapse (B, L-tile) into one parallel
    # axis when B * L_pad // tn < 2 so both v7x TensorCores get work.
    out = pl.pallas_call(
        kernel,
        out_shape=jax.ShapeDtypeStruct((B, out_channels, L_pad), jnp.float32),
        grid_spec=pltpu.PrefetchScalarGridSpec(
            num_scalar_prefetch=0,
            grid=(B, L_pad // tn),
            in_specs=[
                pl.BlockSpec((None, F_pad, tn), lambda b, i: (b, 0, i)),   # patches
                pl.BlockSpec((out_channels, kf), lambda b, i: (0, 0)),     # fused W
            ],
            out_specs=pl.BlockSpec((None, out_channels, tn), lambda b, i: (b, 0, i)),
            scratch_shapes=[pltpu.VMEM((kf, tn), jnp.bfloat16)],
        ),
        compiler_params=pltpu.CompilerParams(
            dimension_semantics=("parallel", "parallel")),
        cost_estimate=cost,
    )(patches, w_fused)

    # Output is already channel-major: just drop lane padding and reshape.
    # TODO(synk): emit bf16 output (o_ref dtype) if downstream accepts it (v5e HBM BW).
    return out[:, :, :L].reshape(B, out_channels, oh, ow)


# --------------------------- pure-JAX reference -------------------------------

def kan_linear_ref(x, base_w, spline_w, spline_scaler, grid_pts, spline_order):
    g = jnp.asarray(grid_pts, jnp.float32)
    xe = x[:, :, None]                                   # (N, F, 1)
    bases = ((xe >= g[:-1]) & (xe < g[1:])).astype(jnp.float32)
    for k in range(1, spline_order + 1):
        bases = ((xe - g[: -(k + 1)]) / (g[k:-1] - g[: -(k + 1)]) * bases[:, :, :-1]
                 + (g[k + 1:] - xe) / (g[k + 1:] - g[1:-k]) * bases[:, :, 1:])
    base_out = (x * jax.nn.sigmoid(x)) @ base_w.T
    scaled = spline_w * spline_scaler[..., None]         # (O, F, nb)
    spl_out = bases.reshape(x.shape[0], -1) @ scaled.reshape(scaled.shape[0], -1).T
    return base_out + spl_out


# --------------------------------- main ---------------------------------------

if __name__ == "__main__":
    # Module config (ConvKAN defaults, 'Efficient' version)
    in_channels, out_channels = 4, 8
    kernel_size, stride, padding = 3, 1, 0
    grid_size, spline_order = 5, 3
    grid_range = (-1.0, 1.0)

    in_features = in_channels * kernel_size * kernel_size
    n_bases = grid_size + spline_order

    # Non-trainable uniform grid buffer of Efficient_KANLinear
    h = (grid_range[1] - grid_range[0]) / grid_size
    grid_pts = tuple(float(i * h + grid_range[0])
                     for i in range(-spline_order, grid_size + spline_order + 1))

    # Deterministic synthetic parameters (shapes follow Efficient_KANLinear)
    key = jax.random.PRNGKey(0)
    k_x, k_bw, k_sw, k_ss = jax.random.split(key, 4)
    base_w = jax.random.normal(k_bw, (out_channels, in_features), jnp.float32) / np.sqrt(in_features)
    spline_w = jax.random.normal(k_sw, (out_channels, in_features, n_bases), jnp.float32) * 0.1
    spline_scaler = jax.random.normal(k_ss, (out_channels, in_features), jnp.float32) / np.sqrt(in_features)

    # Example NCHW input
    x = jax.random.normal(k_x, (2, 4, 16, 16), jnp.float32)

    # Fused bf16 weight built once, outside the jitted per-call path.
    f_pad = _round_up(in_features, 16)
    w_fused = jax.device_put(
        fuse_kan_weights(base_w, spline_w, spline_scaler, f_pad=f_pad))

    fwd = jax.jit(functools.partial(
        conv_kan_forward,
        kernel_size=kernel_size, stride=stride, padding=padding,
        grid_pts=grid_pts, spline_order=spline_order, out_channels=out_channels))
    out = jax.block_until_ready(fwd(x, w_fused))

    oh = (16 + 2 * padding - kernel_size) // stride + 1
    assert out.shape == (2, out_channels, oh, oh), out.shape

    # Correctness vs pure-f32 reference of the same math.  The kernel feeds the MXU
    # with bf16 inputs (f32 accumulation), including the SiLU base branch, so the
    # tolerance covers bf16 rounding (intentional precision tradeoff).
    ref_patches, _, _ = unfold_nchw_padded(x, kernel_size, stride, padding,
                                           in_features, oh * oh)
    p = jnp.transpose(ref_patches[:, :in_features, :oh * oh], (0, 2, 1)).reshape(-1, in_features)
    ref_flat = kan_linear_ref(p, base_w, spline_w, spline_scaler, grid_pts, spline_order)
    ref = jnp.transpose(ref_flat.reshape(2, oh * oh, out_channels), (0, 2, 1)).reshape(out.shape)
    np.testing.assert_allclose(np.asarray(out), np.asarray(ref), rtol=2e-2, atol=2e-2)

    print("KERNEL_OK")
</pallas_src>

<mosaic_0001>
module attributes {stable_mosaic.version = 11 : i64} {
  func.func @_kan_fused_kernel(%arg0: i32, %arg1: i32, %arg2: memref<1x48x256xf32, #tpu.memory_space<vmem>>, %arg3: memref<8x432xbf16, #tpu.memory_space<vmem>>, %arg4: memref<1x8x256xf32, #tpu.memory_space<vmem>>, %arg5: memref<432x256xbf16, #tpu.memory_space<vmem>>) attributes {dimension_semantics = [#tpu.dimension_semantics<parallel>, #tpu.dimension_semantics<parallel>], iteration_bounds = array<i64: 2, 1>, scalar_prefetch = 0 : i64, scratch_operands = 1 : i64, tpu.core_type = #tpu.core_type<tc>, window_params = [{transform_indices = @transform_0, window_bounds = array<i64: 1, 48, 256>}, {pipeline_mode = #tpu.pipeline_mode<synchronous>, transform_indices = @transform_1, window_bounds = array<i64: 8, 432>}, {transform_indices = @transform_2, window_bounds = array<i64: 1, 8, 256>}]} {
    %c0 = arith.constant 0 : index
    %c0_0 = arith.constant 0 : index
    %c0_1 = arith.constant 0 : index
    %0 = vector.load %arg2[%c0, %c0_0, %c0_1] : memref<1x48x256xf32, #tpu.memory_space<vmem>>, vector<1x8x256xf32>
    %1 = vector.shape_cast %0 : vector<1x8x256xf32> to vector<8x256xf32>
    %2 = arith.negf %1 : vector<8x256xf32>
    %3 = math.exp %2 : vector<8x256xf32>
    %cst = arith.constant 1.000000e+00 : f32
    %4 = vector.broadcast %cst : f32 to vector<8x256xf32>
    %5 = arith.addf %4, %3 : vector<8x256xf32>
    %6 = arith.divf %4, %5 : vector<8x256xf32>
    %7 = arith.mulf %1, %6 : vector<8x256xf32>
    %8 = arith.truncf %7 : vector<8x256xf32> to vector<8x256xbf16>
    %c0_2 = arith.constant 0 : index
    %c0_3 = arith.constant 0 : index
    %9 = vector.load %arg5[%c0_2, %c0_3] : memref<432x256xbf16, #tpu.memory_space<vmem>>, vector<8x256xbf16>
    tpu.vector_store %arg5[%c0_2, %c0_3], %8 {strides = array<i32>} : memref<432x256xbf16, #tpu.memory_space<vmem>>, vector<8x256xbf16>,
    %cst_4 = arith.constant -2.200000e+00 : f32
    %10 = vector.broadcast %cst_4 : f32 to vector<8x256xf32>
    %11 = arith.cmpf oge, %1, %10 : vector<8x256xf32>
    %12 = arith.extui %11 : vector<8x256xi1> to vector<8x256xi32>
    %13 = arith.sitofp %12 : vector<8x256xi32> to vector<8x256xf32>
    %cst_5 = arith.constant -1.800000e+00 : f32
    %14 = vector.broadcast %cst_5 : f32 to vector<8x256xf32>
    %15 = arith.cmpf oge, %1, %14 : vector<8x256xf32>
    %16 = arith.extui %15 : vector<8x256xi1> to vector<8x256xi32>
    %17 = arith.sitofp %16 : vector<8x256xi32> to vector<8x256xf32>
    %18 = arith.subf %13, %17 : vector<8x256xf32>
    %cst_6 = arith.constant -2.200000e+00 : f32
    %19 = vector.broadcast %cst_6 : f32 to vector<8x256xf32>
    %20 = arith.subf %1, %19 : vector<8x256xf32>
    %cst_7 = arith.constant -1.400000e+00 : f32
    %21 = vector.broadcast %cst_7 : f32 to vector<8x256xf32>
    %22 = arith.cmpf oge, %1, %21 : vector<8x256xf32>
    %23 = arith.extui %22 : vector<8x256xi1> to vector<8x256xi32>
    %24 = arith.sitofp %23 : vector<8x256xi32> to vector<8x256xf32>
    %25 = arith.subf %17, %24 : vector<8x256xf32>
    %cst_8 = arith.constant -1.800000e+00 : f32
    %26 = vector.broadcast %cst_8 : f32 to vector<8x256xf32>
    %27 = arith.subf %1, %26 : vector<8x256xf32>
    %cst_9 = arith.constant 2.500000e+00 : f32
    %28 = vector.broadcast %cst_9 : f32 to vector<8x256xf32>
    %29 = arith.mulf %20, %28 : vector<8x256xf32>
    %cst_10 = arith.constant 2.500000e+00 : f32
    %30 = vector.broadcast %cst_10 : f32 to vector<8x256xf32>
    %31 = arith.mulf %27, %30 : vector<8x256xf32>
    %32 = arith.mulf %29, %18 : vector<8x256xf32>
    %cst_11 = arith.constant 1.000000e+00 : f32
    %33 = vector.broadcast %cst_11 : f32 to vector<8x256xf32>
    %34 = arith.subf %33, %31 : vector<8x256xf32>
    %35 = arith.mulf %34, %25 : vector<8x256xf32>
    %36 = arith.addf %32, %35 : vector<8x256xf32>
    %cst_12 = arith.constant -1.000000e+00 : f32
    %37 = vector.broadcast %cst_12 : f32 to vector<8x256xf32>
    %38 = arith.cmpf oge, %1, %37 : vector<8x256xf32>
    %39 = arith.extui %38 : vector<8x256xi1> to vector<8x256xi32>
    %40 = arith.sitofp %39 : vector<8x256xi32> to vector<8x256xf32>
    %41 = arith.subf %24, %40 : vector<8x256xf32>
    %cst_13 = arith.constant -1.400000e+00 : f32
    %42 = vector.broadcast %cst_13 : f32 to vector<8x256xf32>
    %43 = arith.subf %1, %42 : vector<8x256xf32>
    %cst_14 = arith.constant 2.500000e+00 : f32
    %44 = vector.broadcast %cst_14 : f32 to vector<8x256xf32>
    %45 = arith.mulf %43, %44 : vector<8x256xf32>
    %46 = arith.mulf %31, %25 : vector<8x256xf32>
    %cst_15 = arith.constant 1.000000e+00 : f32
    %47 = vector.broadcast %cst_15 : f32 to vector<8x256xf32>
    %48 = arith.subf %47, %45 : vector<8x256xf32>
    %49 = arith.mulf %48, %41 : vector<8x256xf32>
    %50 = arith.addf %46, %49 : vector<8x256xf32>
    %cst_16 = arith.constant 1.250000e+00 : f32
    %51 = vector.broadcast %cst_16 : f32 to vector<8x256xf32>
    %52 = arith.mulf %20, %51 : vector<8x256xf32>
    %cst_17 = arith.constant 1.250000e+00 : f32
    %53 = vector.broadcast %cst_17 : f32 to vector<8x256xf32>
    %54 = arith.mulf %27, %53 : vector<8x256xf32>
    %55 = arith.mulf %52, %36 : vector<8x256xf32>
    %cst_18 = arith.constant 1.000000e+00 : f32
    %56 = vector.broadcast %cst_18 : f32 to vector<8x256xf32>
    %57 = arith.subf %56, %54 : vector<8x256xf32>
    %58 = arith.mulf %57, %50 : vector<8x256xf32>
    %59 = arith.addf %55, %58 : vector<8x256xf32>
    %cst_19 = arith.constant -6.000000e-01 : f32
    %60 = vector.broadcast %cst_19 : f32 to vector<8x256xf32>
    %61 = arith.cmpf oge, %1, %60 : vector<8x256xf32>
    %62 = arith.extui %61 : vector<8x256xi1> to vector<8x256xi32>
    %63 = arith.sitofp %62 : vector<8x256xi32> to vector<8x256xf32>
    %64 = arith.subf %40, %63 : vector<8x256xf32>
    %cst_20 = arith.constant -1.000000e+00 : f32
    %65 = vector.broadcast %cst_20 : f32 to vector<8x256xf32>
    %66 = arith.subf %1, %65 : vector<8x256xf32>
    %cst_21 = arith.constant 2.500000e+00 : f32
    %67 = vector.broadcast %cst_21 : f32 to vector<8x256xf32>
    %68 = arith.mulf %66, %67 : vector<8x256xf32>
    %69 = arith.mulf %45, %41 : vector<8x256xf32>
    %cst_22 = arith.constant 1.000000e+00 : f32
    %70 = vector.broadcast %cst_22 : f32 to vector<8x256xf32>
    %71 = arith.subf %70, %68 : vector<8x256xf32>
    %72 = arith.mulf %71, %64 : vector<8x256xf32>
    %73 = arith.addf %69, %72 : vector<8x256xf32>
    %cst_23 = arith.constant 1.250000e+00 : f32
    %74 = vector.broadcast %cst_23 : f32 to vector<8x256xf32>
    %75 = arith.mulf %43, %74 : vector<8x256xf32>
    %76 = arith.mulf %54, %50 : vector<8x256xf32>
    %cst_24 = arith.constant 1.000000e+00 : f32
    %77 = vector.broadcast %cst_24 : f32 to vector<8x256xf32>
    %78 = arith.subf %77, %75 : vector<8x256xf32>
    %79 = arith.mulf %78, %73 : vector<8x256xf32>
    %80 = arith.addf %76, %79 : vector<8x256xf32>
    %cst_25 = arith.constant 0.833333313 : f32
    %81 = vector.broadcast %cst_25 : f32 to vector<8x256xf32>
    %82 = arith.mulf %20, %81 : vector<8x256xf32>
    %cst_26 = arith.constant 0.833333313 : f32
    %83 = vector.broadcast %cst_26 : f32 to vector<8x256xf32>
    %84 = arith.mulf %27, %83 : vector<8x256xf32>
    %85 = arith.mulf %82, %59 : vector<8x256xf32>
    %cst_27 = arith.constant 1.000000e+00 : f32
    %86 = vector.broadcast %cst_27 : f32 to vector<8x256xf32>
    %87 = arith.subf %86, %84 : vector<8x256xf32>
    %88 = arith.mulf %87, %80 : vector<8x256xf32>
    %89 = arith.addf %85, %88 : vector<8x256xf32>
    %90 = arith.truncf %89 : vector<8x256xf32> to vector<8x256xbf16>
    %c48 = arith.constant 48 : index
    %c0_28 = arith.constant 0 : index
    %91 = vector.load %arg5[%c48, %c0_28] : memref<432x256xbf16, #tpu.memory_space<vmem>>, vector<8x256xbf16>
    tpu.vector_store %arg5[%c48, %c0_28], %90 {strides = array<i32>} : memref<432x256xbf16, #tpu.memory_space<vmem>>, vector<8x256xbf16>,
    %cst_29 = arith.constant -2.000000e-01 : f32
    %92 = vector.broadcast %cst_29 : f32 to vector<8x256xf32>
    %93 = arith.cmpf oge, %1, %92 : vector<8x256xf32>
    %94 = arith.extui %93 : vector<8x256xi1> to vector<8x256xi32>
    %95 = arith.sitofp %94 : vector<8x256xi32> to vector<8x256xf32>
    %96 = arith.subf %63, %95 : vector<8x256xf32>
    %cst_30 = arith.constant -6.000000e-01 : f32
    %97 = vector.broadcast %cst_30 : f32 to vector<8x256xf32>
    %98 = arith.subf %1, %97 : vector<8x256xf32>
    %cst_31 = arith.constant 2.500000e+00 : f32
    %99 = vector.broadcast %cst_31 : f32 to vector<8x256xf32>
    %100 = arith.mulf %98, %99 : vector<8x256xf32>
    %101 = arith.mulf %68, %64 : vector<8x256xf32>
    %cst_32 = arith.constant 1.000000e+00 : f32
    %102 = vector.broadcast %cst_32 : f32 to vector<8x256xf32>
    %103 = arith.subf %102, %100 : vector<8x256xf32>
    %104 = arith.mulf %103, %96 : vector<8x256xf32>
    %105 = arith.addf %101, %104 : vector<8x256xf32>
    %cst_33 = arith.constant 1.250000e+00 : f32
    %106 = vector.broadcast %cst_33 : f32 to vector<8x256xf32>
    %107 = arith.mulf %66, %106 : vector<8x256xf32>
    %108 = arith.mulf %75, %73 : vector<8x256xf32>
    %cst_34 = arith.constant 1.000000e+00 : f32
    %109 = vector.broadcast %cst_34 : f32 to vector<8x256xf32>
    %110 = arith.subf %109, %107 : vector<8x256xf32>
    %111 = arith.mulf %110, %105 : vector<8x256xf32>
    %112 = arith.addf %108, %111 : vector<8x256xf32>
    %cst_35 = arith.constant 0.833333313 : f32
    %113 = vector.broadcast %cst_35 : f32 to vector<8x256xf32>
    %114 = arith.mulf %43, %113 : vector<8x256xf32>
    %115 = arith.mulf %84, %80 : vector<8x256xf32>
    %cst_36 = arith.constant 1.000000e+00 : f32
    %116 = vector.broadcast %cst_36 : f32 to vector<8x256xf32>
    %117 = arith.subf %116, %114 : vector<8x256xf32>
    %118 = arith.mulf %117, %112 : vector<8x256xf32>
    %119 = arith.addf %115, %118 : vector<8x256xf32>
    %120 = arith.truncf %119 : vector<8x256xf32> to vector<8x256xbf16>
    %c96 = arith.constant 96 : index
    %c0_37 = arith.constant 0 : index
    %121 = vector.load %arg5[%c96, %c0_37] : memref<432x256xbf16, #tpu.memory_space<vmem>>, vector<8x256xbf16>
    tpu.vector_store %arg5[%c96, %c0_37], %120 {strides = array<i32>} : memref<432x256xbf16, #tpu.memory_space<vmem>>, vector<8x256xbf16>,
    %cst_38 = arith.constant 2.000000e-01 : f32
    %122 = vector.broadcast %cst_38 : f32 to vector<8x256xf32>
    %123 = arith.cmpf oge, %1, %122 : vector<8x256xf32>
    %124 = arith.extui %123 : vector<8x256xi1> to vector<8x256xi32>
    %125 = arith.sitofp %124 : vector<8x256xi32> to vector<8x256xf32>
    %126 = arith.subf %95, %125 : vector<8x256xf32>
    %cst_39 = arith.constant -2.000000e-01 : f32
    %127 = vector.broadcast %cst_39 : f32 to vector<8x256xf32>
    %128 = arith.subf %1, %127 : vector<8x256xf32>
    %cst_40 = arith.constant 2.500000e+00 : f32
    %129 = vector.broadcast %cst_40 : f32 to vector<8x256xf32>
    %130 = arith.mulf %128, %129 : vector<8x256xf32>
    %131 = arith.mulf %100, %96 : vector<8x256xf32>
    %cst_41 = arith.constant 1.000000e+00 : f32
    %132 = vector.broadcast %cst_41 : f32 to vector<8x256xf32>
    %133 = arith.subf %132, %130 : vector<8x256xf32>
    %134 = arith.mulf %133, %126 : vector<8x256xf32>
    %135 = arith.addf %131, %134 : vector<8x256xf32>
    %cst_42 = arith.constant 1.250000e+00 : f32
    %136 = vector.broadcast %cst_42 : f32 to vector<8x256xf32>
    %137 = arith.mulf %98, %136 : vector<8x256xf32>
    %138 = arith.mulf %107, %105 : vector<8x256xf32>
    %cst_43 = arith.constant 1.000000e+00 : f32
    %139 = vector.broadcast %cst_43 : f32 to vector<8x256xf32>
    %140 = arith.subf %139, %137 : vector<8x256xf32>
    %141 = arith.mulf %140, %135 : vector<8x256xf32>
    %142 = arith.addf %138, %141 : vector<8x256xf32>
    %cst_44 = arith.constant 0.833333313 : f32
    %143 = vector.broadcast %cst_44 : f32 to vector<8x256xf32>
    %144 = arith.mulf %66, %143 : vector<8x256xf32>
    %145 = arith.mulf %114, %112 : vector<8x256xf32>
    %cst_45 = arith.constant 1.000000e+00 : f32
    %146 = vector.broadcast %cst_45 : f32 to vector<8x256xf32>
    %147 = arith.subf %146, %144 : vector<8x256xf32>
    %148 = arith.mulf %147, %142 : vector<8x256xf32>
    %149 = arith.addf %145, %148 : vector<8x256xf32>
    %150 = arith.truncf %149 : vector<8x256xf32> to vector<8x256xbf16>
    %c144 = arith.constant 144 : index
    %c0_46 = arith.constant 0 : index
    %151 = vector.load %arg5[%c144, %c0_46] : memref<432x256xbf16, #tpu.memory_space<vmem>>, vector<8x256xbf16>
    tpu.vector_store %arg5[%c144, %c0_46], %150 {strides = array<i32>} : memref<432x256xbf16, #tpu.memory_space<vmem>>, vector<8x256xbf16>,
    %cst_47 = arith.constant 6.000000e-01 : f32
    %152 = vector.broadcast %cst_47 : f32 to vector<8x256xf32>
    %153 = arith.cmpf oge, %1, %152 : vector<8x256xf32>
    %154 = arith.extui %153 : vector<8x256xi1> to vector<8x256xi32>
    %155 = arith.sitofp %154 : vector<8x256xi32> to vector<8x256xf32>
    %156 = arith.subf %125, %155 : vector<8x256xf32>
    %cst_48 = arith.constant 2.000000e-01 : f32
    %157 = vector.broadcast %cst_48 : f32 to vector<8x256xf32>
    %158 = arith.subf %1, %157 : vector<8x256xf32>
    %cst_49 = arith.constant 2.500000e+00 : f32
    %159 = vector.broadcast %cst_49 : f32 to vector<8x256xf32>
    %160 = arith.mulf %158, %159 : vector<8x256xf32>
    %161 = arith.mulf %130, %126 : vector<8x256xf32>
    %cst_50 = arith.constant 1.000000e+00 : f32
    %162 = vector.broadcast %cst_50 : f32 to vector<8x256xf32>
    %163 = arith.subf %162, %160 : vector<8x256xf32>
    %164 = arith.mulf %163, %156 : vector<8x256xf32>
    %165 = arith.addf %161, %164 : vector<8x256xf32>
    %cst_51 = arith.constant 1.250000e+00 : f32
    %166 = vector.broadcast %cst_51 : f32 to vector<8x256xf32>
    %167 = arith.mulf %128, %166 : vector<8x256xf32>
    %168 = arith.mulf %137, %135 : vector<8x256xf32>
    %cst_52 = arith.constant 1.000000e+00 : f32
    %169 = vector.broadcast %cst_52 : f32 to vector<8x256xf32>
    %170 = arith.subf %169, %167 : vector<8x256xf32>
    %171 = arith.mulf %170, %165 : vector<8x256xf32>
    %172 = arith.addf %168, %171 : vector<8x256xf32>
    %cst_53 = arith.constant 0.833333313 : f32
    %173 = vector.broadcast %cst_53 : f32 to vector<8x256xf32>
    %174 = arith.mulf %98, %173 : vector<8x256xf32>
    %175 = arith.mulf %144, %142 : vector<8x256xf32>
    %cst_54 = arith.constant 1.000000e+00 : f32
    %176 = vector.broadcast %cst_54 : f32 to vector<8x256xf32>
    %177 = arith.subf %176, %174 : vector<8x256xf32>
    %178 = arith.mulf %177, %172 : vector<8x256xf32>
    %179 = arith.addf %175, %178 : vector<8x256xf32>
    %180 = arith.truncf %179 : vector<8x256xf32> to vector<8x256xbf16>
    %c192 = arith.constant 192 : index
    %c0_55 = arith.constant 0 : index
    %181 = vector.load %arg5[%c192, %c0_55] : memref<432x256xbf16, #tpu.memory_space<vmem>>, vector<8x256xbf16>
    tpu.vector_store %arg5[%c192, %c0_55], %180 {strides = array<i32>} : memref<432x256xbf16, #tpu.memory_space<vmem>>, vector<8x256xbf16>,
    %cst_56 = arith.constant 1.000000e+00 : f32
    %182 = vector.broadcast %cst_56 : f32 to vector<8x256xf32>
    %183 = arith.cmpf oge, %1, %182 : vector<8x256xf32>
    %184 = arith.extui %183 : vector<8x256xi1> to vector<8x256xi32>
    %185 = arith.sitofp %184 : vector<8x256xi32> to vector<8x256xf32>
    %186 = arith.subf %155, %185 : vector<8x256xf32>
    %cst_57 = arith.constant 6.000000e-01 : f32
    %187 = vector.broadcast %cst_57 : f32 to vector<8x256xf32>
    %188 = arith.subf %1, %187 : vector<8x256xf32>
    %cst_58 = arith.constant 2.500000e+00 : f32
    %189 = vector.broadcast %cst_58 : f32 to vector<8x256xf32>
    %190 = arith.mulf %188, %189 : vector<8x256xf32>
    %191 = arith.mulf %160, %156 : vector<8x256xf32>
    %cst_59 = arith.constant 1.000000e+00 : f32
    %192 = vector.broadcast %cst_59 : f32 to vector<8x256xf32>
    %193 = arith.subf %192, %190 : vector<8x256xf32>
    %194 = arith.mulf %193, %186 : vector<8x256xf32>
    %195 = arith.addf %191, %194 : vector<8x256xf32>
    %cst_60 = arith.constant 1.250000e+00 : f32
    %196 = vector.broadcast %cst_60 : f32 to vector<8x256xf32>
    %197 = arith.mulf %158, %196 : vector<8x256xf32>
    %198 = arith.mulf %167, %165 : vector<8x256xf32>
    %cst_61 = arith.constant 1.000000e+00 : f32
    %199 = vector.broadcast %cst_61 : f32 to vector<8x256xf32>
    %200 = arith.subf %199, %197 : vector<8x256xf32>
    %201 = arith.mulf %200, %195 : vector<8x256xf32>
    %202 = arith.addf %198, %201 : vector<8x256xf32>
    %cst_62 = arith.constant 0.833333313 : f32
    %203 = vector.broadcast %cst_62 : f32 to vector<8x256xf32>
    %204 = arith.mulf %128, %203 : vector<8x256xf32>
    %205 = arith.mulf %174, %172 : vector<8x256xf32>
    %cst_63 = arith.constant 1.000000e+00 : f32
    %206 = vector.broadcast %cst_63 : f32 to vector<8x256xf32>
    %207 = arith.subf %206, %204 : vector<8x256xf32>
    %208 = arith.mulf %207, %202 : vector<8x256xf32>
    %209 = arith.addf %205, %208 : vector<8x256xf32>
    %210 = arith.truncf %209 : vector<8x256xf32> to vector<8x256xbf16>
    %c240 = arith.constant 240 : index
    %c0_64 = arith.constant 0 : index
    %211 = vector.load %arg5[%c240, %c0_64] : memref<432x256xbf16, #tpu.memory_space<vmem>>, vector<8x256xbf16>
    tpu.vector_store %arg5[%c240, %c0_64], %210 {strides = array<i32>} : memref<432x256xbf16, #tpu.memory_space<vmem>>, vector<8x256xbf16>,
    %cst_65 = arith.constant 1.400000e+00 : f32
    %212 = vector.broadcast %cst_65 : f32 to vector<8x256xf32>
    %213 = arith.cmpf oge, %1, %212 : vector<8x256xf32>
    %214 = arith.extui %213 : vector<8x256xi1> to vector<8x256xi32>
    %215 = arith.sitofp %214 : vector<8x256xi32> to vector<8x256xf32>
    %216 = arith.subf %185, %215 : vector<8x256xf32>
    %cst_66 = arith.constant 1.000000e+00 : f32
    %217 = vector.broadcast %cst_66 : f32 to vector<8x256xf32>
    %218 = arith.subf %1, %217 : vector<8x256xf32>
    %cst_67 = arith.constant 2.500000e+00 : f32
    %219 = vector.broadcast %cst_67 : f32 to vector<8x256xf32>
    %220 = arith.mulf %218, %219 : vector<8x256xf32>
    %221 = arith.mulf %190, %186 : vector<8x256xf32>
    %cst_68 = arith.constant 1.000000e+00 : f32
    %222 = vector.broadcast %cst_68 : f32 to vector<8x256xf32>
    %223 = arith.subf %222, %220 : vector<8x256xf32>
    %224 = arith.mulf %223, %216 : vector<8x256xf32>
    %225 = arith.addf %221, %224 : vector<8x256xf32>
    %cst_69 = arith.constant 1.250000e+00 : f32
    %226 = vector.broadcast %cst_69 : f32 to vector<8x256xf32>
    %227 = arith.mulf %188, %226 : vector<8x256xf32>
    %228 = arith.mulf %197, %195 : vector<8x256xf32>
    %cst_70 = arith.constant 1.000000e+00 : f32
    %229 = vector.broadcast %cst_70 : f32 to vector<8x256xf32>
    %230 = arith.subf %229, %227 : vector<8x256xf32>
    %231 = arith.mulf %230, %225 : vector<8x256xf32>
    %232 = arith.addf %228, %231 : vector<8x256xf32>
    %cst_71 = arith.constant 0.833333313 : f32
    %233 = vector.broadcast %cst_71 : f32 to vector<8x256xf32>
    %234 = arith.mulf %158, %233 : vector<8x256xf32>
    %235 = arith.mulf %204, %202 : vector<8x256xf32>
    %cst_72 = arith.constant 1.000000e+00 : f32
    %236 = vector.broadcast %cst_72 : f32 to vector<8x256xf32>
    %237 = arith.subf %236, %234 : vector<8x256xf32>
    %238 = arith.mulf %237, %232 : vector<8x256xf32>
    %239 = arith.addf %235, %238 : vector<8x256xf32>
    %240 = arith.truncf %239 : vector<8x256xf32> to vector<8x256xbf16>
    %c288 = arith.constant 288 : index
    %c0_73 = arith.constant 0 : index
    %241 = vector.load %arg5[%c288, %c0_73] : memref<432x256xbf16, #tpu.memory_space<vmem>>, vector<8x256xbf16>
    tpu.vector_store %arg5[%c288, %c0_73], %240 {strides = array<i32>} : memref<432x256xbf16, #tpu.memory_space<vmem>>, vector<8x256xbf16>,
    %cst_74 = arith.constant 1.800000e+00 : f32
    %242 = vector.broadcast %cst_74 : f32 to vector<8x256xf32>
    %243 = arith.cmpf oge, %1, %242 : vector<8x256xf32>
    %244 = arith.extui %243 : vector<8x256xi1> to vector<8x256xi32>
    %245 = arith.sitofp %244 : vector<8x256xi32> to vector<8x256xf32>
    %246 = arith.subf %215, %245 : vector<8x256xf32>
    %cst_75 = arith.constant 1.400000e+00 : f32
    %247 = vector.broadcast %cst_75 : f32 to vector<8x256xf32>
    %248 = arith.subf %1, %247 : vector<8x256xf32>
    %cst_76 = arith.constant 2.500000e+00 : f32
    %249 = vector.broadcast %cst_76 : f32 to vector<8x256xf32>
    %250 = arith.mulf %248, %249 : vector<8x256xf32>
    %251 = arith.mulf %220, %216 : vector<8x256xf32>
    %cst_77 = arith.constant 1.000000e+00 : f32
    %252 = vector.broadcast %cst_77 : f32 to vector<8x256xf32>
    %253 = arith.subf %252, %250 : vector<8x256xf32>
    %254 = arith.mulf %253, %246 : vector<8x256xf32>
    %255 = arith.addf %251, %254 : vector<8x256xf32>
    %cst_78 = arith.constant 1.250000e+00 : f32
    %256 = vector.broadcast %cst_78 : f32 to vector<8x256xf32>
    %257 = arith.mulf %218, %256 : vector<8x256xf32>
    %258 = arith.mulf %227, %225 : vector<8x256xf32>
    %cst_79 = arith.constant 1.000000e+00 : f32
    %259 = vector.broadcast %cst_79 : f32 to vector<8x256xf32>
    %260 = arith.subf %259, %257 : vector<8x256xf32>
    %261 = arith.mulf %260, %255 : vector<8x256xf32>
    %262 = arith.addf %258, %261 : vector<8x256xf32>
    %cst_80 = arith.constant 0.833333313 : f32
    %263 = vector.broadcast %cst_80 : f32 to vector<8x256xf32>
    %264 = arith.mulf %188, %263 : vector<8x256xf32>
    %265 = arith.mulf %234, %232 : vector<8x256xf32>
    %cst_81 = arith.constant 1.000000e+00 : f32
    %266 = vector.broadcast %cst_81 : f32 to vector<8x256xf32>
    %267 = arith.subf %266, %264 : vector<8x256xf32>
    %268 = arith.mulf %267, %262 : vector<8x256xf32>
    %269 = arith.addf %265, %268 : vector<8x256xf32>
    %270 = arith.truncf %269 : vector<8x256xf32> to vector<8x256xbf16>
    %c336 = arith.constant 336 : index
    %c0_82 = arith.constant 0 : index
    %271 = vector.load %arg5[%c336, %c0_82] : memref<432x256xbf16, #tpu.memory_space<vmem>>, vector<8x256xbf16>
    tpu.vector_store %arg5[%c336, %c0_82], %270 {strides = array<i32>} : memref<432x256xbf16, #tpu.memory_space<vmem>>, vector<8x256xbf16>,
    %cst_83 = arith.constant 2.200000e+00 : f32
    %272 = vector.broadcast %cst_83 : f32 to vector<8x256xf32>
    %273 = arith.cmpf oge, %1, %272 : vector<8x256xf32>
    %274 = arith.extui %273 : vector<8x256xi1> to vector<8x256xi32>
    %275 = arith.sitofp %274 : vector<8x256xi32> to vector<8x256xf32>
    %276 = arith.subf %245, %275 : vector<8x256xf32>
    %cst_84 = arith.constant 1.800000e+00 : f32
    %277 = vector.broadcast %cst_84 : f32 to vector<8x256xf32>
    %278 = arith.subf %1, %277 : vector<8x256xf32>
    %cst_85 = arith.constant 2.500000e+00 : f32
    %279 = vector.broadcast %cst_85 : f32 to vector<8x256xf32>
    %280 = arith.mulf %278, %279 : vector<8x256xf32>
    %281 = arith.mulf %250, %246 : vector<8x256xf32>
    %cst_86 = arith.constant 1.000000e+00 : f32
    %282 = vector.broadcast %cst_86 : f32 to vector<8x256xf32>
    %283 = arith.subf %282, %280 : vector<8x256xf32>
    %284 = arith.mulf %283, %276 : vector<8x256xf32>
    %285 = arith.addf %281, %284 : vector<8x256xf32>
    %cst_87 = arith.constant 1.250000e+00 : f32
    %286 = vector.broadcast %cst_87 : f32 to vector<8x256xf32>
    %287 = arith.mulf %248, %286 : vector<8x256xf32>
    %288 = arith.mulf %257, %255 : vector<8x256xf32>
    %cst_88 = arith.constant 1.000000e+00 : f32
    %289 = vector.broadcast %cst_88 : f32 to vector<8x256xf32>
    %290 = arith.subf %289, %287 : vector<8x256xf32>
    %291 = arith.mulf %290, %285 : vector<8x256xf32>
    %292 = arith.addf %288, %291 : vector<8x256xf32>
    %cst_89 = arith.constant 0.833333313 : f32
    %293 = vector.broadcast %cst_89 : f32 to vector<8x256xf32>
    %294 = arith.mulf %218, %293 : vector<8x256xf32>
    %295 = arith.mulf %264, %262 : vector<8x256xf32>
    %cst_90 = arith.constant 1.000000e+00 : f32
    %296 = vector.broadcast %cst_90 : f32 to vector<8x256xf32>
    %297 = arith.subf %296, %294 : vector<8x256xf32>
    %298 = arith.mulf %297, %292 : vector<8x256xf32>
    %299 = arith.addf %295, %298 : vector<8x256xf32>
    %300 = arith.truncf %299 : vector<8x256xf32> to vector<8x256xbf16>
    %c384 = arith.constant 384 : index
    %c0_91 = arith.constant 0 : index
    %301 = vector.load %arg5[%c384, %c0_91] : memref<432x256xbf16, #tpu.memory_space<vmem>>, vector<8x256xbf16>
    tpu.vector_store %arg5[%c384, %c0_91], %300 {strides = array<i32>} : memref<432x256xbf16, #tpu.memory_space<vmem>>, vector<8x256xbf16>,
    %c0_92 = arith.constant 0 : index
    %c8 = arith.constant 8 : index
    %c0_93 = arith.constant 0 : index
    %302 = vector.load %arg2[%c0_92, %c8, %c0_93] : memref<1x48x256xf32, #tpu.memory_space<vmem>>, vector<1x8x256xf32>
    %303 = vector.shape_cast %302 : vector<1x8x256xf32> to vector<8x256xf32>
    %304 = arith.negf %303 : vector<8x256xf32>
    %305 = math.exp %304 : vector<8x256xf32>
    %cst_94 = arith.constant 1.000000e+00 : f32
    %306 = vector.broadcast %cst_94 : f32 to vector<8x256xf32>
    %307 = arith.addf %306, %305 : vector<8x256xf32>
    %308 = arith.divf %306, %307 : vector<8x256xf32>
    %309 = arith.mulf %303, %308 : vector<8x256xf32>
    %310 = arith.truncf %309 : vector<8x256xf32> to vector<8x256xbf16>
    %c8_95 = arith.constant 8 : index
    %c0_96 = arith.constant 0 : index
    %311 = vector.load %arg5[%c8_95, %c0_96] : memref<432x256xbf16, #tpu.memory_space<vmem>>, vector<8x256xbf16>
    tpu.vector_store %arg5[%c8_95, %c0_96], %310 {strides = array<i32>} : memref<432x256xbf16, #tpu.memory_space<vmem>>, vector<8x256xbf16>,
    %cst_97 = arith.constant -2.200000e+00 : f32
    %312 = vector.broadcast %cst_97 : f32 to vector<8x256xf32>
    %313 = arith.cmpf oge, %303, %312 : vector<8x256xf32>
    %314 = arith.extui %313 : vector<8x256xi1> to vector<8x256xi32>
    %315 = arith.sitofp %314 : vector<8x256xi32> to vector<8x256xf32>
    %cst_98 = arith.constant -1.800000e+00 : f32
    %316 = vector.broadcast %cst_98 : f32 to vector<8x256xf32>
    %317 = arith.cmpf oge, %303, %316 : vector<8x256xf32>
    %318 = arith.extui %317 : vector<8x256xi1> to vector<8x256xi32>
    %319 = arith.sitofp %318 : vector<8x256xi32> to vector<8x256xf32>
    %320 = arith.subf %315, %319 : vector<8x256xf32>
    %cst_99 = arith.constant -2.200000e+00 : f32
    %321 = vector.broadcast %cst_99 : f32 to vector<8x256xf32>
    %322 = arith.subf %303, %321 : vector<8x256xf32>
    %cst_100 = arith.constant -1.400000e+00 : f32
    %323 = vector.broadcast %cst_100 : f32 to vector<8x256xf32>
    %324 = arith.cmpf oge, %303, %323 : vector<8x256xf32>
    %325 = arith.extui %324 : vector<8x256xi1> to vector<8x256xi32>
    %326 = arith.sitofp %325 : vector<8x256xi32> to vector<8x256xf32>
    %327 = arith.subf %319, %326 : vector<8x256xf32>
    %cst_101 = arith.constant -1.800000e+00 : f32
    %328 = vector.broadcast %cst_101 : f32 to vector<8x256xf32>
    %329 = arith.subf %303, %328 : vector<8x256xf32>
    %cst_102 = arith.constant 2.500000e+00 : f32
    %330 = vector.broadcast %cst_102 : f32 to vector<8x256xf32>
    %331 = arith.mulf %322, %330 : vector<8x256xf32>
    %cst_103 = arith.constant 2.500000e+00 : f32
    %332 = vector.broadcast %cst_103 : f32 to vector<8x256xf32>
    %333 = arith.mulf %329, %332 : vector<8x256xf32>
    %334 = arith.mulf %331, %320 : vector<8x256xf32>
    %cst_104 = arith.constant 1.000000e+00 : f32
    %335 = vector.broadcast %cst_104 : f32 to vector<8x256xf32>
    %336 = arith.subf %335, %333 : vector<8x256xf32>
    %337 = arith.mulf %336, %327 : vector<8x256xf32>
    %338 = arith.addf %334, %337 : vector<8x256xf32>
    %cst_105 = arith.constant -1.000000e+00 : f32
    %339 = vector.broadcast %cst_105 : f32 to vector<8x256xf32>
    %340 = arith.cmpf oge, %303, %339 : vector<8x256xf32>
    %341 = arith.extui %340 : vector<8x256xi1> to vector<8x256xi32>
    %342 = arith.sitofp %341 : vector<8x256xi32> to vector<8x256xf32>
    %343 = arith.subf %326, %342 : vector<8x256xf32>
    %cst_106 = arith.constant -1.400000e+00 : f32
    %344 = vector.broadcast %cst_106 : f32 to vector<8x256xf32>
    %345 = arith.subf %303, %344 : vector<8x256xf32>
    %cst_107 = arith.constant 2.500000e+00 : f32
    %346 = vector.broadcast %cst_107 : f32 to vector<8x256xf32>
    %347 = arith.mulf %345, %346 : vector<8x256xf32>
    %348 = arith.mulf %333, %327 : vector<8x256xf32>
    %cst_108 = arith.constant 1.000000e+00 : f32
    %349 = vector.broadcast %cst_108 : f32 to vector<8x256xf32>
    %350 = arith.subf %349, %347 : vector<8x256xf32>
    %351 = arith.mulf %350, %343 : vector<8x256xf32>
    %352 = arith.addf %348, %351 : vector<8x256xf32>
    %cst_109 = arith.constant 1.250000e+00 : f32
    %353 = vector.broadcast %cst_109 : f32 to vector<8x256xf32>
    %354 = arith.mulf %322, %353 : vector<8x256xf32>
    %cst_110 = arith.constant 1.250000e+00 : f32
    %355 = vector.broadcast %cst_110 : f32 to vector<8x256xf32>
    %356 = arith.mulf %329, %355 : vector<8x256xf32>
    %357 = arith.mulf %354, %338 : vector<8x256xf32>
    %cst_111 = arith.constant 1.000000e+00 : f32
    %358 = vector.broadcast %cst_111 : f32 to vector<8x256xf32>
    %359 = arith.subf %358, %356 : vector<8x256xf32>
    %360 = arith.mulf %359, %352 : vector<8x256xf32>
    %361 = arith.addf %357, %360 : vector<8x256xf32>
    %cst_112 = arith.constant -6.000000e-01 : f32
    %362 = vector.broadcast %cst_112 : f32 to vector<8x256xf32>
    %363 = arith.cmpf oge, %303, %362 : vector<8x256xf32>
    %364 = arith.extui %363 : vector<8x256xi1> to vector<8x256xi32>
    %365 = arith.sitofp %364 : vector<8x256xi32> to vector<8x256xf32>
    %366 = arith.subf %342, %365 : vector<8x256xf32>
    %cst_113 = arith.constant -1.000000e+00 : f32
    %367 = vector.broadcast %cst_113 : f32 to vector<8x256xf32>
    %368 = arith.subf %303, %367 : vector<8x256xf32>
    %cst_114 = arith.constant 2.500000e+00 : f32
    %369 = vector.broadcast %cst_114 : f32 to vector<8x256xf32>
    %370 = arith.mulf %368, %369 : vector<8x256xf32>
    %371 = arith.mulf %347, %343 : vector<8x256xf32>
    %cst_115 = arith.constant 1.000000e+00 : f32
    %372 = vector.broadcast %cst_115 : f32 to vector<8x256xf32>
    %373 = arith.subf %372, %370 : vector<8x256xf32>
    %374 = arith.mulf %373, %366 : vector<8x256xf32>
    %375 = arith.addf %371, %374 : vector<8x256xf32>
    %cst_116 = arith.constant 1.250000e+00 : f32
    %376 = vector.broadcast %cst_116 : f32 to vector<8x256xf32>
    %377 = arith.mulf %345, %376 : vector<8x256xf32>
    %378 = arith.mulf %356, %352 : vector<8x256xf32>
    %cst_117 = arith.constant 1.000000e+00 : f32
    %379 = vector.broadcast %cst_117 : f32 to vector<8x256xf32>
    %380 = arith.subf %379, %377 : vector<8x256xf32>
    %381 = arith.mulf %380, %375 : vector<8x256xf32>
    %382 = arith.addf %378, %381 : vector<8x256xf32>
    %cst_118 = arith.constant 0.833333313 : f32
    %383 = vector.broadcast %cst_118 : f32 to vector<8x256xf32>
    %384 = arith.mulf %322, %383 : vector<8x256xf32>
    %cst_119 = arith.constant 0.833333313 : f32
    %385 = vector.broadcast %cst_119 : f32 to vector<8x256xf32>
    %386 = arith.mulf %329, %385 : vector<8x256xf32>
    %387 = arith.mulf %384, %361 : vector<8x256xf32>
    %cst_120 = arith.constant 1.000000e+00 : f32
    %388 = vector.broadcast %cst_120 : f32 to vector<8x256xf32>
    %389 = arith.subf %388, %386 : vector<8x256xf32>
    %390 = arith.mulf %389, %382 : vector<8x256xf32>
    %391 = arith.addf %387, %390 : vector<8x256xf32>
    %392 = arith.truncf %391 : vector<8x256xf32> to vector<8x256xbf16>
    %c56 = arith.constant 56 : index
    %c0_121 = arith.constant 0 : index
    %393 = vector.load %arg5[%c56, %c0_121] : memref<432x256xbf16, #tpu.memory_space<vmem>>, vector<8x256xbf16>
    tpu.vector_store %arg5[%c56, %c0_121], %392 {strides = array<i32>} : memref<432x256xbf16, #tpu.memory_space<vmem>>, vector<8x256xbf16>,
    %cst_122 = arith.constant -2.000000e-01 : f32
    %394 = vector.broadcast %cst_122 : f32 to vector<8x256xf32>
    %395 = arith.cmpf oge, %303, %394 : vector<8x256xf32>
    %396 = arith.extui %395 : vector<8x256xi1> to vector<8x256xi32>
    %397 = arith.sitofp %396 : vector<8x256xi32> to vector<8x256xf32>
    %398 = arith.subf %365, %397 : vector<8x256xf32>
    %cst_123 = arith.constant -6.000000e-01 : f32
    %399 = vector.broadcast %cst_123 : f32 to vector<8x256xf32>
    %400 = arith.subf %303, %399 : vector<8x256xf32>
    %cst_124 = arith.constant 2.500000e+00 : f32
    %401 = vector.broadcast %cst_124 : f32 to vector<8x256xf32>
    %402 = arith.mulf %400, %401 : vector<8x256xf32>
    %403 = arith.mulf %370, %366 : vector<8x256xf32>
    %cst_125 = arith.constant 1.000000e+00 : f32
    %404 = vector.broadcast %cst_125 : f32 to vector<8x256xf32>
    %405 = arith.subf %404, %402 : vector<8x256xf32>
    %406 = arith.mulf %405, %398 : vector<8x256xf32>
    %407 = arith.addf %403, %406 : vector<8x256xf32>
    %cst_126 = arith.constant 1.250000e+00 : f32
    %408 = vector.broadcast %cst_126 : f32 to vector<8x256xf32>
    %409 = arith.mulf %368, %408 : vector<8x256xf32>
    %410 = arith.mulf %377, %375 : vector<8x256xf32>
    %cst_127 = arith.constant 1.000000e+00 : f32
    %411 = vector.broadcast %cst_127 : f32 to vector<8x256xf32>
    %412 = arith.subf %411, %409 : vector<8x256xf32>
    %413 = arith.mulf %412, %407 : vector<8x256xf32>
    %414 = arith.addf %410, %413 : vector<8x256xf32>
    %cst_128 = arith.constant 0.833333313 : f32
    %415 = vector.broadcast %cst_128 : f32 to vector<8x256xf32>
    %416 = arith.mulf %345, %415 : vector<8x256xf32>
    %417 = arith.mulf %386, %382 : vector<8x256xf32>
    %cst_129 = arith.constant 1.000000e+00 : f32
    %418 = vector.broadcast %cst_129 : f32 to vector<8x256xf32>
    %419 = arith.subf %418, %416 : vector<8x256xf32>
    %420 = arith.mulf %419, %414 : vector<8x256xf32>
    %421 = arith.addf %417, %420 : vector<8x256xf32>
    %422 = arith.truncf %421 : vector<8x256xf32> to vector<8x256xbf16>
    %c104 = arith.constant 104 : index
    %c0_130 = arith.constant 0 : index
    %423 = vector.load %arg5[%c104, %c0_130] : memref<432x256xbf16, #tpu.memory_space<vmem>>, vector<8x256xbf16>
    tpu.vector_store %arg5[%c104, %c0_130], %422 {strides = array<i32>} : memref<432x256xbf16, #tpu.memory_space<vmem>>, vector<8x256xbf16>,
    %cst_131 = arith.constant 2.000000e-01 : f32
    %424 = vector.broadcast %cst_131 : f32 to vector<8x256xf32>
    %425 = arith.cmpf oge, %303, %424 : vector<8x256xf32>
    %426 = arith.extui %425 : vector<8x256xi1> to vector<8x256xi32>
    %427 = arith.sitofp %426 : vector<8x256xi32> to vector<8x256xf32>
    %428 = arith.subf %397, %427 : vector<8x256xf32>
    %cst_132 = arith.constant -2.000000e-01 : f32
    %429 = vector.broadcast %cst_132 : f32 to vector<8x256xf32>
    %430 = arith.subf %303, %429 : vector<8x256xf32>
    %cst_133 = arith.constant 2.500000e+00 : f32
    %431 = vector.broadcast %cst_133 : f32 to vector<8x256xf32>
    %432 = arith.mulf %430, %431 : vector<8x256xf32>
    %433 = arith.mulf %402, %398 : vector<8x256xf32>
    %cst_134 = arith.constant 1.000000e+00 : f32
    %434 = vector.broadcast %cst_134 : f32 to vector<8x256xf32>
    %435 = arith.subf %434, %432 : vector<8x256xf32>
    %436 = arith.mulf %435, %428 : vector<8x256xf32>
    %437 = arith.addf %433, %436 : vector<8x256xf32>
    %cst_135 = arith.constant 1.250000e+00 : f32
    %438 = vector.broadcast %cst_135 : f32 to vector<8x256xf32>
    %439 = arith.mulf %400, %438 : vector<8x256xf32>
    %440 = arith.mulf %409, %407 : vector<8x256xf32>
    %cst_136 = arith.constant 1.000000e+00 : f32
    %441 = vector.broadcast %cst_136 : f32 to vector<8x256xf32>
    %442 = arith.subf %441, %439 : vector<8x256xf32>
    %443 = arith.mulf %442, %437 : vector<8x256xf32>
    %444 = arith.addf %440, %443 : vector<8x256xf32>
    %cst_137 = arith.constant 0.833333313 : f32
    %445 = vector.broadcast %cst_137 : f32 to vector<8x256xf32>
    %446 = arith.mulf %368, %445 : vector<8x256xf32>
    %447 = arith.mulf %416, %414 : vector<8x256xf32>
    %cst_138 = arith.constant 1.000000e+00 : f32
    %448 = vector.broadcast %cst_138 : f32 to vector<8x256xf32>
    %449 = arith.subf %448, %446 : vector<8x256xf32>
    %450 = arith.mulf %449, %444 : vector<8x256xf32>
    %451 = arith.addf %447, %450 : vector<8x256xf32>
    %452 = arith.truncf %451 : vector<8x256xf32> to vector<8x256xbf16>
    %c152 = arith.constant 152 : index
    %c0_139 = arith.constant 0 : index
    %453 = vector.load %arg5[%c152, %c0_139] : memref<432x256xbf16, #tpu.memory_space<vmem>>, vector<8x256xbf16>
    tpu.vector_store %arg5[%c152, %c0_139], %452 {strides = array<i32>} : memref<432x256xbf16, #tpu.memory_space<vmem>>, vector<8x256xbf16>,
    %cst_140 = arith.constant 6.000000e-01 : f32
    %454 = vector.broadcast %cst_140 : f32 to vector<8x256xf32>
    %455 = arith.cmpf oge, %303, %454 : vector<8x256xf32>
    %456 = arith.extui %455 : vector<8x256xi1> to vector<8x256xi32>
    %457 = arith.sitofp %456 : vector<8x256xi32> to vector<8x256xf32>
    %458 = arith.subf %427, %457 : vector<8x256xf32>
    %cst_141 = arith.constant 2.000000e-01 : f32
    %459 = vector.broadcast %cst_141 : f32 to vector<8x256xf32>
    %460 = arith.subf %303, %459 : vector<8x256xf32>
    %cst_142 = arith.constant 2.500000e+00 : f32
    %461 = vector.broadcast %cst_142 : f32 to vector<8x256xf32>
    %462 = arith.mulf %460, %461 : vector<8x256xf32>
    %463 = arith.mulf %432, %428 : vector<8x256xf32>
    %cst_143 = arith.constant 1.000000e+00 : f32
    %464 = vector.broadcast %cst_143 : f32 to vector<8x256xf32>
    %465 = arith.subf %464, %462 : vector<8x256xf32>
    %466 = arith.mulf %465, %458 : vector<8x256xf32>
    %467 = arith.addf %463, %466 : vector<8x256xf32>
    %cst_144 = arith.constant 1.250000e+00 : f32
    %468 = vector.broadcast %cst_144 : f32 to vector<8x256xf32>
    %469 = arith.mulf %430, %468 : vector<8x256xf32>
    %470 = arith.mulf %439, %437 : vector<8x256xf32>
    %cst_145 = arith.constant 1.000000e+00 : f32
    %471 = vector.broadcast %cst_145 : f32 to vector<8x256xf32>
    %472 = arith.subf %471, %469 : vector<8x256xf32>
    %473 = arith.mulf %472, %467 : vector<8x256xf32>
    %474 = arith.addf %470, %473 : vector<8x256xf32>
    %cst_146 = arith.constant 0.833333313 : f32
    %475 = vector.broadcast %cst_146 : f32 to vector<8x256xf32>
    %476 = arith.mulf %400, %475 : vector<8x256xf32>
    %477 = arith.mulf %446, %444 : vector<8x256xf32>
    %cst_147 = arith.constant 1.000000e+00 : f32
    %478 = vector.broadcast %cst_147 : f32 to vector<8x256xf32>
    %479 = arith.subf %478, %476 : vector<8x256xf32>
    %480 = arith.mulf %479, %474 : vector<8x256xf32>
    %481 = arith.addf %477, %480 : vector<8x256xf32>
    %482 = arith.truncf %481 : vector<8x256xf32> to vector<8x256xbf16>
    %c200 = arith.constant 200 : index
    %c0_148 = arith.constant 0 : index
    %483 = vector.load %arg5[%c200, %c0_148] : memref<432x256xbf16, #tpu.memory_space<vmem>>, vector<8x256xbf16>
    tpu.vector_store %arg5[%c200, %c0_148], %482 {strides = array<i32>} : memref<432x256xbf16, #tpu.memory_space<vmem>>, vector<8x256xbf16>,
    %cst_149 = arith.constant 1.000000e+00 : f32
    %484 = vector.broadcast %cst_149 : f32 to vector<8x256xf32>
    %485 = arith.cmpf oge, %303, %484 : vector<8x256xf32>
    %486 = arith.extui %485 : vector<8x256xi1> to vector<8x256xi32>
    %487 = arith.sitofp %486 : vector<8x256xi32> to vector<8x256xf32>
    %488 = arith.subf %457, %487 : vector<8x256xf32>
    %cst_150 = arith.constant 6.000000e-01 : f32
    %489 = vector.broadcast %cst_150 : f32 to vector<8x256xf32>
    %490 = arith.subf %303, %489 : vector<8x256xf32>
    %cst_151 = arith.constant 2.500000e+00 : f32
    %491 = vector.broadcast %cst_151 : f32 to vector<8x256xf32>
    %492 = arith.mulf %490, %491 : vector<8x256xf32>
    %493 = arith.mulf %462, %458 : vector<8x256xf32>
    %cst_152 = arith.constant 1.000000e+00 : f32
    %494 = vector.broadcast %cst_152 : f32 to vector<8x256xf32>
    %495 = arith.subf %494, %492 : vector<8x256xf32>
    %496 = arith.mulf %495, %488 : vector<8x256xf32>
    %497 = arith.addf %493, %496 : vector<8x256xf32>
    %cst_153 = arith.constant 1.250000e+00 : f32
    %498 = vector.broadcast %cst_153 : f32 to vector<8x256xf32>
    %499 = arith.mulf %460, %498 : vector<8x256xf32>
    %500 = arith.mulf %469, %467 : vector<8x256xf32>
    %cst_154 = arith.constant 1.000000e+00 : f32
    %501 = vector.broadcast %cst_154 : f32 to vector<8x256xf32>
    %502 = arith.subf %501, %499 : vector<8x256xf32>
    %503 = arith.mulf %502, %497 : vector<8x256xf32>
    %504 = arith.addf %500, %503 : vector<8x256xf32>
    %cst_155 = arith.constant 0.833333313 : f32
    %505 = vector.broadcast %cst_155 : f32 to vector<8x256xf32>
    %506 = arith.mulf %430, %505 : vector<8x256xf32>
    %507 = arith.mulf %476, %474 : vector<8x256xf32>
    %cst_156 = arith.constant 1.000000e+00 : f32
    %508 = vector.broadcast %cst_156 : f32 to vector<8x256xf32>
    %509 = arith.subf %508, %506 : vector<8x256xf32>
    %510 = arith.mulf %509, %504 : vector<8x256xf32>
    %511 = arith.addf %507, %510 : vector<8x256xf32>
    %512 = arith.truncf %511 : vector<8x256xf32> to vector<8x256xbf16>
    %c248 = arith.constant 248 : index
    %c0_157 = arith.constant 0 : index
    %513 = vector.load %arg5[%c248, %c0_157] : memref<432x256xbf16, #tpu.memory_space<vmem>>, vector<8x256xbf16>
    tpu.vector_store %arg5[%c248, %c0_157], %512 {strides = array<i32>} : memref<432x256xbf16, #tpu.memory_space<vmem>>, vector<8x256xbf16>,
    %cst_158 = arith.constant 1.400000e+00 : f32
    %514 = vector.broadcast %cst_158 : f32 to vector<8x256xf32>
    %515 = arith.cmpf oge, %303, %514 : vector<8x256xf32>
    %516 = arith.extui %515 : vector<8x256xi1> to vector<8x256xi32>
    %517 = arith.sitofp %516 : vector<8x256xi32> to vector<8x256xf32>
    %518 = arith.subf %487, %517 : vector<8x256xf32>
    %cst_159 = arith.constant 1.000000e+00 : f32
    %519 = vector.broadcast %cst_159 : f32 to vector<8x256xf32>
    %520 = arith.subf %303, %519 : vector<8x256xf32>
    %cst_160 = arith.constant 2.500000e+00 : f32
    %521 = vector.broadcast %cst_160 : f32 to vector<8x256xf32>
    %522 = arith.mulf %520, %521 : vector<8x256xf32>
    %523 = arith.mulf %492, %488 : vector<8x256xf32>
    %cst_161 = arith.constant 1.000000e+00 : f32
    %524 = vector.broadcast %cst_161 : f32 to vector<8x256xf32>
    %525 = arith.subf %524, %522 : vector<8x256xf32>
    %526 = arith.mulf %525, %518 : vector<8x256xf32>
    %527 = arith.addf %523, %526 : vector<8x256xf32>
    %cst_162 = arith.constant 1.250000e+00 : f32
    %528 = vector.broadcast %cst_162 : f32 to vector<8x256xf32>
    %529 = arith.mulf %490, %528 : vector<8x256xf32>
    %530 = arith.mulf %499, %497 : vector<8x256xf32>
    %cst_163 = arith.constant 1.000000e+00 : f32
    %531 = vector.broadcast %cst_163 : f32 to vector<8x256xf32>
    %532 = arith.subf %531, %529 : vector<8x256xf32>
    %533 = arith.mulf %532, %527 : vector<8x256xf32>
    %534 = arith.addf %530, %533 : vector<8x256xf32>
    %cst_164 = arith.constant 0.833333313 : f32
    %535 = vector.broadcast %cst_164 : f32 to vector<8x256xf32>
    %536 = arith.mulf %460, %535 : vector<8x256xf32>
    %537 = arith.mulf %506, %504 : vector<8x256xf32>
    %cst_165 = arith.constant 1.000000e+00 : f32
    %538 = vector.broadcast %cst_165 : f32 to vector<8x256xf32>
    %539 = arith.subf %538, %536 : vector<8x256xf32>
    %540 = arith.mulf %539, %534 : vector<8x256xf32>
    %541 = arith.addf %537, %540 : vector<8x256xf32>
    %542 = arith.truncf %541 : vector<8x256xf32> to vector<8x256xbf16>
    %c296 = arith.constant 296 : index
    %c0_166 = arith.constant 0 : index
    %543 = vector.load %arg5[%c296, %c0_166] : memref<432x256xbf16, #tpu.memory_space<vmem>>, vector<8x256xbf16>
    tpu.vector_store %arg5[%c296, %c0_166], %542 {strides = array<i32>} : memref<432x256xbf16, #tpu.memory_space<vmem>>, vector<8x256xbf16>,
    %cst_167 = arith.constant 1.800000e+00 : f32
    %544 = vector.broadcast %cst_167 : f32 to vector<8x256xf32>
    %545 = arith.cmpf oge, %303, %544 : vector<8x256xf32>
    %546 = arith.extui %545 : vector<8x256xi1> to vector<8x256xi32>
    %547 = arith.sitofp %546 : vector<8x256xi32> to vector<8x256xf32>
    %548 = arith.subf %517, %547 : vector<8x256xf32>
    %cst_168 = arith.constant 1.400000e+00 : f32
    %549 = vector.broadcast %cst_168 : f32 to vector<8x256xf32>
    %550 = arith.subf %303, %549 : vector<8x256xf32>
    %cst_169 = arith.constant 2.500000e+00 : f32
    %551 = vector.broadcast %cst_169 : f32 to vector<8x256xf32>
    %552 = arith.mulf %550, %551 : vector<8x256xf32>
    %553 = arith.mulf %522, %518 : vector<8x256xf32>
    %cst_170 = arith.constant 1.000000e+00 : f32
    %554 = vector.broadcast %cst_170 : f32 to vector<8x256xf32>
    %555 = arith.subf %554, %552 : vector<8x256xf32>
    %556 = arith.mulf %555, %548 : vector<8x256xf32>
    %557 = arith.addf %553, %556 : vector<8x256xf32>
    %cst_171 = arith.constant 1.250000e+00 : f32
    %558 = vector.broadcast %cst_171 : f32 to vector<8x256xf32>
    %559 = arith.mulf %520, %558 : vector<8x256xf32>
    %560 = arith.mulf %529, %527 : vector<8x256xf32>
    %cst_172 = arith.constant 1.000000e+00 : f32
    %561 = vector.broadcast %cst_172 : f32 to vector<8x256xf32>
    %562 = arith.subf %561, %559 : vector<8x256xf32>
    %563 = arith.mulf %562, %557 : vector<8x256xf32>
    %564 = arith.addf %560, %563 : vector<8x256xf32>
    %cst_173 = arith.constant 0.833333313 : f32
    %565 = vector.broadcast %cst_173 : f32 to vector<8x256xf32>
    %566 = arith.mulf %490, %565 : vector<8x256xf32>
    %567 = arith.mulf %536, %534 : vector<8x256xf32>
    %cst_174 = arith.constant 1.000000e+00 : f32
    %568 = vector.broadcast %cst_174 : f32 to vector<8x256xf32>
    %569 = arith.subf %568, %566 : vector<8x256xf32>
    %570 = arith.mulf %569, %564 : vector<8x256xf32>
    %571 = arith.addf %567, %570 : vector<8x256xf32>
    %572 = arith.truncf %571 : vector<8x256xf32> to vector<8x256xbf16>
    %c344 = arith.constant 344 : index
    %c0_175 = arith.constant 0 : index
    %573 = vector.load %arg5[%c344, %c0_175] : memref<432x256xbf16, #tpu.memory_space<vmem>>, vector<8x256xbf16>
    tpu.vector_store %arg5[%c344, %c0_175], %572 {strides = array<i32>} : memref<432x256xbf16, #tpu.memory_space<vmem>>, vector<8x256xbf16>,
    %cst_176 = arith.constant 2.200000e+00 : f32
    %574 = vector.broadcast %cst_176 : f32 to vector<8x256xf32>
    %575 = arith.cmpf oge, %303, %574 : vector<8x256xf32>
    %576 = arith.extui %575 : vector<8x256xi1> to vector<8x256xi32>
    %577 = arith.sitofp %576 : vector<8x256xi32> to vector<8x256xf32>
    %578 = arith.subf %547, %577 : vector<8x256xf32>
    %cst_177 = arith.constant 1.800000e+00 : f32
    %579 = vector.broadcast %cst_177 : f32 to vector<8x256xf32>
    %580 = arith.subf %303, %579 : vector<8x256xf32>
    %cst_178 = arith.constant 2.500000e+00 : f32
    %581 = vector.broadcast %cst_178 : f32 to vector<8x256xf32>
    %582 = arith.mulf %580, %581 : vector<8x256xf32>
    %583 = arith.mulf %552, %548 : vector<8x256xf32>
    %cst_179 = arith.constant 1.000000e+00 : f32
    %584 = vector.broadcast %cst_179 : f32 to vector<8x256xf32>
    %585 = arith.subf %584, %582 : vector<8x256xf32>
    %586 = arith.mulf %585, %578 : vector<8x256xf32>
    %587 = arith.addf %583, %586 : vector<8x256xf32>
    %cst_180 = arith.constant 1.250000e+00 : f32
    %588 = vector.broadcast %cst_180 : f32 to vector<8x256xf32>
    %589 = arith.mulf %550, %588 : vector<8x256xf32>
    %590 = arith.mulf %559, %557 : vector<8x256xf32>
    %cst_181 = arith.constant 1.000000e+00 : f32
    %591 = vector.broadcast %cst_181 : f32 to vector<8x256xf32>
    %592 = arith.subf %591, %589 : vector<8x256xf32>
    %593 = arith.mulf %592, %587 : vector<8x256xf32>
    %594 = arith.addf %590, %593 : vector<8x256xf32>
    %cst_182 = arith.constant 0.833333313 : f32
    %595 = vector.broadcast %cst_182 : f32 to vector<8x256xf32>
    %596 = arith.mulf %520, %595 : vector<8x256xf32>
    %597 = arith.mulf %566, %564 : vector<8x256xf32>
    %cst_183 = arith.constant 1.000000e+00 : f32
    %598 = vector.broadcast %cst_183 : f32 to vector<8x256xf32>
    %599 = arith.subf %598, %596 : vector<8x256xf32>
    %600 = arith.mulf %599, %594 : vector<8x256xf32>
    %601 = arith.addf %597, %600 : vector<8x256xf32>
    %602 = arith.truncf %601 : vector<8x256xf32> to vector<8x256xbf16>
    %c392 = arith.constant 392 : index
    %c0_184 = arith.constant 0 : index
    %603 = vector.load %arg5[%c392, %c0_184] : memref<432x256xbf16, #tpu.memory_space<vmem>>, vector<8x256xbf16>
    tpu.vector_store %arg5[%c392, %c0_184], %602 {strides = array<i32>} : memref<432x256xbf16, #tpu.memory_space<vmem>>, vector<8x256xbf16>,
    %c0_185 = arith.constant 0 : index
    %c16 = arith.constant 16 : index
    %c0_186 = arith.constant 0 : index
    %604 = vector.load %arg2[%c0_185, %c16, %c0_186] : memref<1x48x256xf32, #tpu.memory_space<vmem>>, vector<1x8x256xf32>
    %605 = vector.shape_cast %604 : vector<1x8x256xf32> to vector<8x256xf32>
    %606 = arith.negf %605 : vector<8x256xf32>
    %607 = math.exp %606 : vector<8x256xf32>
    %cst_187 = arith.constant 1.000000e+00 : f32
    %608 = vector.broadcast %cst_187 : f32 to vector<8x256xf32>
    %609 = arith.addf %608, %607 : vector<8x256xf32>
    %610 = arith.divf %608, %609 : vector<8x256xf32>
    %611 = arith.mulf %605, %610 : vector<8x256xf32>
    %612 = arith.truncf %611 : vector<8x256xf32> to vector<8x256xbf16>
    %c16_188 = arith.constant 16 : index
    %c0_189 = arith.constant 0 : index
    %613 = vector.load %arg5[%c16_188, %c0_189] : memref<432x256xbf16, #tpu.memory_space<vmem>>, vector<8x256xbf16>
    tpu.vector_store %arg5[%c16_188, %c0_189], %612 {strides = array<i32>} : memref<432x256xbf16, #tpu.memory_space<vmem>>, vector<8x256xbf16>,
    %cst_190 = arith.constant -2.200000e+00 : f32
    %614 = vector.broadcast %cst_190 : f32 to vector<8x256xf32>
    %615 = arith.cmpf oge, %605, %614 : vector<8x256xf32>
    %616 = arith.extui %615 : vector<8x256xi1> to vector<8x256xi32>
    %617 = arith.sitofp %616 : vector<8x256xi32> to vector<8x256xf32>
    %cst_191 = arith.constant -1.800000e+00 : f32
    %618 = vector.broadcast %cst_191 : f32 to vector<8x256xf32>
    %619 = arith.cmpf oge, %605, %618 : vector<8x256xf32>
    %620 = arith.extui %619 : vector<8x256xi1> to vector<8x256xi32>
    %621 = arith.sitofp %620 : vector<8x256xi32> to vector<8x256xf32>
    %622 = arith.subf %617, %621 : vector<8x256xf32>
    %cst_192 = arith.constant -2.200000e+00 : f32
    %623 = vector.broadcast %cst_192 : f32 to vector<8x256xf32>
    %624 = arith.subf %605, %623 : vector<8x256xf32>
    %cst_193 = arith.constant -1.400000e+00 : f32
    %625 = vector.broadcast %cst_193 : f32 to vector<8x256xf32>
    %626 = arith.cmpf oge, %605, %625 : vector<8x256xf32>
    %627 = arith.extui %626 : vector<8x256xi1> to vector<8x256xi32>
    %628 = arith.sitofp %627 : vector<8x256xi32> to vector<8x256xf32>
    %629 = arith.subf %621, %628 : vector<8x256xf32>
    %cst_194 = arith.constant -1.800000e+00 : f32
    %630 = vector.broadcast %cst_194 : f32 to vector<8x256xf32>
    %631 = arith.subf %605, %630 : vector<8x256xf32>
    %cst_195 = arith.constant 2.500000e+00 : f32
    %632 = vector.broadcast %cst_195 : f32 to vector<8x256xf32>
    %633 = arith.mulf %624, %632 : vector<8x256xf32>
    %cst_196 = arith.constant 2.500000e+00 : f32
    %634 = vector.broadcast %cst_196 : f32 to vector<8x256xf32>
    %635 = arith.mulf %631, %634 : vector<8x256xf32>
    %636 = arith.mulf %633, %622 : vector<8x256xf32>
    %cst_197 = arith.constant 1.000000e+00 : f32
    %637 = vector.broadcast %cst_197 : f32 to vector<8x256xf32>
    %638 = arith.subf %637, %635 : vector<8x256xf32>
    %639 = arith.mulf %638, %629 : vector<8x256xf32>
    %640 = arith.addf %636, %639 : vector<8x256xf32>
    %cst_198 = arith.constant -1.000000e+00 : f32
    %641 = vector.broadcast %cst_198 : f32 to vector<8x256xf32>
    %642 = arith.cmpf oge, %605, %641 : vector<8x256xf32>
    %643 = arith.extui %642 : vector<8x256xi1> to vector<8x256xi32>
    %644 = arith.sitofp %643 : vector<8x256xi32> to vector<8x256xf32>
    %645 = arith.subf %628, %644 : vector<8x256xf32>
    %cst_199 = arith.constant -1.400000e+00 : f32
    %646 = vector.broadcast %cst_199 : f32 to vector<8x256xf32>
    %647 = arith.subf %605, %646 : vector<8x256xf32>
    %cst_200 = arith.constant 2.500000e+00 : f32
    %648 = vector.broadcast %cst_200 : f32 to vector<8x256xf32>
    %649 = arith.mulf %647, %648 : vector<8x256xf32>
    %650 = arith.mulf %635, %629 : vector<8x256xf32>
    %cst_201 = arith.constant 1.000000e+00 : f32
    %651 = vector.broadcast %cst_201 : f32 to vector<8x256xf32>
    %652 = arith.subf %651, %649 : vector<8x256xf32>
    %653 = arith.mulf %652, %645 : vector<8x256xf32>
    %654 = arith.addf %650, %653 : vector<8x256xf32>
    %cst_202 = arith.constant 1.250000e+00 : f32
    %655 = vector.broadcast %cst_202 : f32 to vector<8x256xf32>
    %656 = arith.mulf %624, %655 : vector<8x256xf32>
    %cst_203 = arith.constant 1.250000e+00 : f32
    %657 = vector.broadcast %cst_203 : f32 to vector<8x256xf32>
    %658 = arith.mulf %631, %657 : vector<8x256xf32>
    %659 = arith.mulf %656, %640 : vector<8x256xf32>
    %cst_204 = arith.constant 1.000000e+00 : f32
    %660 = vector.broadcast %cst_204 : f32 to vector<8x256xf32>
    %661 = arith.subf %660, %658 : vector<8x256xf32>
    %662 = arith.mulf %661, %654 : vector<8x256xf32>
    %663 = arith.addf %659, %662 : vector<8x256xf32>
    %cst_205 = arith.constant -6.000000e-01 : f32
    %664 = vector.broadcast %cst_205 : f32 to vector<8x256xf32>
    %665 = arith.cmpf oge, %605, %664 : vector<8x256xf32>
    %666 = arith.extui %665 : vector<8x256xi1> to vector<8x256xi32>
    %667 = arith.sitofp %666 : vector<8x256xi32> to vector<8x256xf32>
    %668 = arith.subf %644, %667 : vector<8x256xf32>
    %cst_206 = arith.constant -1.000000e+00 : f32
    %669 = vector.broadcast %cst_206 : f32 to vector<8x256xf32>
    %670 = arith.subf %605, %669 : vector<8x256xf32>
    %cst_207 = arith.constant 2.500000e+00 : f32
    %671 = vector.broadcast %cst_207 : f32 to vector<8x256xf32>
    %672 = arith.mulf %670, %671 : vector<8x256xf32>
    %673 = arith.mulf %649, %645 : vector<8x256xf32>
    %cst_208 = arith.constant 1.000000e+00 : f32
    %674 = vector.broadcast %cst_208 : f32 to vector<8x256xf32>
    %675 = arith.subf %674, %672 : vector<8x256xf32>
    %676 = arith.mulf %675, %668 : vector<8x256xf32>
    %677 = arith.addf %673, %676 : vector<8x256xf32>
    %cst_209 = arith.constant 1.250000e+00 : f32
    %678 = vector.broadcast %cst_209 : f32 to vector<8x256xf32>
    %679 = arith.mulf %647, %678 : vector<8x256xf32>
    %680 = arith.mulf %658, %654 : vector<8x256xf32>
    %cst_210 = arith.constant 1.000000e+00 : f32
    %681 = vector.broadcast %cst_210 : f32 to vector<8x256xf32>
    %682 = arith.subf %681, %679 : vector<8x256xf32>
    %683 = arith.mulf %682, %677 : vector<8x256xf32>
    %684 = arith.addf %680, %683 : vector<8x256xf32>
    %cst_211 = arith.constant 0.833333313 : f32
    %685 = vector.broadcast %cst_211 : f32 to vector<8x256xf32>
    %686 = arith.mulf %624, %685 : vector<8x256xf32>
    %cst_212 = arith.constant 0.833333313 : f32
    %687 = vector.broadcast %cst_212 : f32 to vector<8x256xf32>
    %688 = arith.mulf %631, %687 : vector<8x256xf32>
    %689 = arith.mulf %686, %663 : vector<8x256xf32>
    %cst_213 = arith.constant 1.000000e+00 : f32
    %690 = vector.broadcast %cst_213 : f32 to vector<8x256xf32>
    %691 = arith.subf %690, %688 : vector<8x256xf32>
    %692 = arith.mulf %691, %684 : vector<8x256xf32>
    %693 = arith.addf %689, %692 : vector<8x256xf32>
    %694 = arith.truncf %693 : vector<8x256xf32> to vector<8x256xbf16>
    %c64 = arith.constant 64 : index
    %c0_214 = arith.constant 0 : index
    %695 = vector.load %arg5[%c64, %c0_214] : memref<432x256xbf16, #tpu.memory_space<vmem>>, vector<8x256xbf16>
    tpu.vector_store %arg5[%c64, %c0_214], %694 {strides = array<i32>} : memref<432x256xbf16, #tpu.memory_space<vmem>>, vector<8x256xbf16>,
    %cst_215 = arith.constant -2.000000e-01 : f32
    %696 = vector.broadcast %cst_215 : f32 to vector<8x256xf32>
    %697 = arith.cmpf oge, %605, %696 : vector<8x256xf32>
    %698 = arith.extui %697 : vector<8x256xi1> to vector<8x256xi32>
    %699 = arith.sitofp %698 : vector<8x256xi32> to vector<8x256xf32>
    %700 = arith.subf %667, %699 : vector<8x256xf32>
    %cst_216 = arith.constant -6.000000e-01 : f32
    %701 = vector.broadcast %cst_216 : f32 to vector<8x256xf32>
    %702 = arith.subf %605, %701 : vector<8x256xf32>
    %cst_217 = arith.constant 2.500000e+00 : f32
    %703 = vector.broadcast %cst_217 : f32 to vector<8x256xf32>
    %704 = arith.mulf %702, %703 : vector<8x256xf32>
    %705 = arith.mulf %672, %668 : vector<8x256xf32>
    %cst_218 = arith.constant 1.000000e+00 : f32
    %706 = vector.broadcast %cst_218 : f32 to vector<8x256xf32>
    %707 = arith.subf %706, %704 : vector<8x256xf32>
    %708 = arith.mulf %707, %700 : vector<8x256xf32>
    %709 = arith.addf %705, %708 : vector<8x256xf32>
    %cst_219 = arith.constant 1.250000e+00 : f32
    %710 = vector.broadcast %cst_219 : f32 to vector<8x256xf32>
    %711 = arith.mulf %670, %710 : vector<8x256xf32>
    %712 = arith.mulf %679, %677 : vector<8x256xf32>
    %cst_220 = arith.constant 1.000000e+00 : f32
    %713 = vector.broadcast %cst_220 : f32 to vector<8x256xf32>
    %714 = arith.subf %713, %711 : vector<8x256xf32>
    %715 = arith.mulf %714, %709 : vector<8x256xf32>
    %716 = arith.addf %712, %715 : vector<8x256xf32>
    %cst_221 = arith.constant 0.833333313 : f32
    %717 = vector.broadcast %cst_221 : f32 to vector<8x256xf32>
    %718 = arith.mulf %647, %717 : vector<8x256xf32>
    %719 = arith.mulf %688, %684 : vector<8x256xf32>
    %cst_222 = arith.constant 1.000000e+00 : f32
    %720 = vector.broadcast %cst_222 : f32 to vector<8x256xf32>
    %721 = arith.subf %720, %718 : vector<8x256xf32>
    %722 = arith.mulf %721, %716 : vector<8x256xf32>
    %723 = arith.addf %719, %722 : vector<8x256xf32>
    %724 = arith.truncf %723 : vector<8x256xf32> to vector<8x256xbf16>
    %c112 = arith.constant 112 : index
    %c0_223 = arith.constant 0 : index
    %725 = vector.load %arg5[%c112, %c0_223] : memref<432x256xbf16, #tpu.memory_space<vmem>>, vector<8x256xbf16>
    tpu.vector_store %arg5[%c112, %c0_223], %724 {strides = array<i32>} : memref<432x256xbf16, #tpu.memory_space<vmem>>, vector<8x256xbf16>,
    %cst_224 = arith.constant 2.000000e-01 : f32
    %726 = vector.broadcast %cst_224 : f32 to vector<8x256xf32>
    %727 = arith.cmpf oge, %605, %726 : vector<8x256xf32>
    %728 = arith.extui %727 : vector<8x256xi1> to vector<8x256xi32>
    %729 = arith.sitofp %728 : vector<8x256xi32> to vector<8x256xf32>
    %730 = arith.subf %699, %729 : vector<8x256xf32>
    %cst_225 = arith.constant -2.000000e-01 : f32
    %731 = vector.broadcast %cst_225 : f32 to vector<8x256xf32>
    %732 = arith.subf %605, %731 : vector<8x256xf32>
    %cst_226 = arith.constant 2.500000e+00 : f32
    %733 = vector.broadcast %cst_226 : f32 to vector<8x256xf32>
    %734 = arith.mulf %732, %733 : vector<8x256xf32>
    %735 = arith.mulf %704, %700 : vector<8x256xf32>
    %cst_227 = arith.constant 1.000000e+00 : f32
    %736 = vector.broadcast %cst_227 : f32 to vector<8x256xf32>
    %737 = arith.subf %736, %734 : vector<8x256xf32>
    %738 = arith.mulf %737, %730 : vector<8x256xf32>
    %739 = arith.addf %735, %738 : vector<8x256xf32>
    %cst_228 = arith.constant 1.250000e+00 : f32
    %740 = vector.broadcast %cst_228 : f32 to vector<8x256xf32>
    %741 = arith.mulf %702, %740 : vector<8x256xf32>
    %742 = arith.mulf %711, %709 : vector<8x256xf32>
    %cst_229 = arith.constant 1.000000e+00 : f32
    %743 = vector.broadcast %cst_229 : f32 to vector<8x256xf32>
    %744 = arith.subf %743, %741 : vector<8x256xf32>
    %745 = arith.mulf %744, %739 : vector<8x256xf32>
    %746 = arith.addf %742, %745 : vector<8x256xf32>
    %cst_230 = arith.constant 0.833333313 : f32
    %747 = vector.broadcast %cst_230 : f32 to vector<8x256xf32>
    %748 = arith.mulf %670, %747 : vector<8x256xf32>
    %749 = arith.mulf %718, %716 : vector<8x256xf32>
    %cst_231 = arith.constant 1.000000e+00 : f32
    %750 = vector.broadcast %cst_231 : f32 to vector<8x256xf32>
    %751 = arith.subf %750, %748 : vector<8x256xf32>
    %752 = arith.mulf %751, %746 : vector<8x256xf32>
    %753 = arith.addf %749, %752 : vector<8x256xf32>
    %754 = arith.truncf %753 : vector<8x256xf32> to vector<8x256xbf16>
    %c160 = arith.constant 160 : index
    %c0_232 = arith.constant 0 : index
    %755 = vector.load %arg5[%c160, %c0_232] : memref<432x256xbf16, #tpu.memory_space<vmem>>, vector<8x256xbf16>
    tpu.vector_store %arg5[%c160, %c0_232], %754 {strides = array<i32>} : memref<432x256xbf16, #tpu.memory_space<vmem>>, vector<8x256xbf16>,
    %cst_233 = arith.constant 6.000000e-01 : f32
    %756 = vector.broadcast %cst_233 : f32 to vector<8x256xf32>
    %757 = arith.cmpf oge, %605, %756 : vector<8x256xf32>
    %758 = arith.extui %757 : vector<8x256xi1> to vector<8x256xi32>
    %759 = arith.sitofp %758 : vector<8x256xi32> to vector<8x256xf32>
    %760 = arith.subf %729, %759 : vector<8x256xf32>
    %cst_234 = arith.constant 2.000000e-01 : f32
    %761 = vector.broadcast %cst_234 : f32 to vector<8x256xf32>
    %762 = arith.subf %605, %761 : vector<8x256xf32>
    %cst_235 = arith.constant 2.500000e+00 : f32
    %763 = vector.broadcast %cst_235 : f32 to vector<8x256xf32>
    %764 = arith.mulf %762, %763 : vector<8x256xf32>
    %765 = arith.mulf %734, %730 : vector<8x256xf32>
    %cst_236 = arith.constant 1.000000e+00 : f32
    %766 = vector.broadcast %cst_236 : f32 to vector<8x256xf32>
    %767 = arith.subf %766, %764 : vector<8x256xf32>
    %768 = arith.mulf %767, %760 : vector<8x256xf32>
    %769 = arith.addf %765, %768 : vector<8x256xf32>
    %cst_237 = arith.constant 1.250000e+00 : f32
    %770 = vector.broadcast %cst_237 : f32 to vector<8x256xf32>
    %771 = arith.mulf %732, %770 : vector<8x256xf32>
    %772 = arith.mulf %741, %739 : vector<8x256xf32>
    %cst_238 = arith.constant 1.000000e+00 : f32
    %773 = vector.broadcast %cst_238 : f32 to vector<8x256xf32>
    %774 = arith.subf %773, %771 : vector<8x256xf32>
    %775 = arith.mulf %774, %769 : vector<8x256xf32>
    %776 = arith.addf %772, %775 : vector<8x256xf32>
    %cst_239 = arith.constant 0.833333313 : f32
    %777 = vector.broadcast %cst_239 : f32 to vector<8x256xf32>
    %778 = arith.mulf %702, %777 : vector<8x256xf32>
    %779 = arith.mulf %748, %746 : vector<8x256xf32>
    %cst_240 = arith.constant 1.000000e+00 : f32
    %780 = vector.broadcast %cst_240 : f32 to vector<8x256xf32>
    %781 = arith.subf %780, %778 : vector<8x256xf32>
    %782 = arith.mulf %781, %776 : vector<8x256xf32>
    %783 = arith.addf %779, %782 : vector<8x256xf32>
    %784 = arith.truncf %783 : vector<8x256xf32> to vector<8x256xbf16>
    %c208 = arith.constant 208 : index
    %c0_241 = arith.constant 0 : index
    %785 = vector.load %arg5[%c208, %c0_241] : memref<432x256xbf16, #tpu.memory_space<vmem>>, vector<8x256xbf16>
    tpu.vector_store %arg5[%c208, %c0_241], %784 {strides = array<i32>} : memref<432x256xbf16, #tpu.memory_space<vmem>>, vector<8x256xbf16>,
    %cst_242 = arith.constant 1.000000e+00 : f32
    %786 = vector.broadcast %cst_242 : f32 to vector<8x256xf32>
    %787 = arith.cmpf oge, %605, %786 : vector<8x256xf32>
    %788 = arith.extui %787 : vector<8x256xi1> to vector<8x256xi32>
    %789 = arith.sitofp %788 : vector<8x256xi32> to vector<8x256xf32>
    %790 = arith.subf %759, %789 : vector<8x256xf32>
    %cst_243 = arith.constant 6.000000e-01 : f32
    %791 = vector.broadcast %cst_243 : f32 to vector<8x256xf32>
    %792 = arith.subf %605, %791 : vector<8x256xf32>
    %cst_244 = arith.constant 2.500000e+00 : f32
    %793 = vector.broadcast %cst_244 : f32 to vector<8x256xf32>
    %794 = arith.mulf %792, %793 : vector<8x256xf32>
    %795 = arith.mulf %764, %760 : vector<8x256xf32>
    %cst_245 = arith.constant 1.000000e+00 : f32
    %796 = vector.broadcast %cst_245 : f32 to vector<8x256xf32>
    %797 = arith.subf %796, %794 : vector<8x256xf32>
    %798 = arith.mulf %797, %790 : vector<8x256xf32>
    %799 = arith.addf %795, %798 : vector<8x256xf32>
    %cst_246 = arith.constant 1.250000e+00 : f32
    %800 = vector.broadcast %cst_246 : f32 to vector<8x256xf32>
    %801 = arith.mulf %762, %800 : vector<8x256xf32>
    %802 = arith.mulf %771, %769 : vector<8x256xf32>
    %cst_247 = arith.constant 1.000000e+00 : f32
    %803 = vector.broadcast %cst_247 : f32 to vector<8x256xf32>
    %804 = arith.subf %803, %801 : vector<8x256xf32>
    %805 = arith.mulf %804, %799 : vector<8x256xf32>
    %806 = arith.addf %802, %805 : vector<8x256xf32>
    %cst_248 = arith.constant 0.833333313 : f32
    %807 = vector.broadcast %cst_248 : f32 to vector<8x256xf32>
    %808 = arith.mulf %732, %807 : vector<8x256xf32>
    %809 = arith.mulf %778, %776 : vector<8x256xf32>
    %cst_249 = arith.constant 1.000000e+00 : f32
    %810 = vector.broadcast %cst_249 : f32 to vector<8x256xf32>
    %811 = arith.subf %810, %808 : vector<8x256xf32>
    %812 = arith.mulf %811, %806 : vector<8x256xf32>
    %813 = arith.addf %809, %812 : vector<8x256xf32>
    %814 = arith.truncf %813 : vector<8x256xf32> to vector<8x256xbf16>
    %c256 = arith.constant 256 : index
    %c0_250 = arith.constant 0 : index
    %815 = vector.load %arg5[%c256, %c0_250] : memref<432x256xbf16, #tpu.memory_space<vmem>>, vector<8x256xbf16>
    tpu.vector_store %arg5[%c256, %c0_250], %814 {strides = array<i32>} : memref<432x256xbf16, #tpu.memory_space<vmem>>, vector<8x256xbf16>,
    %cst_251 = arith.constant 1.400000e+00 : f32
    %816 = vector.broadcast %cst_251 : f32 to vector<8x256xf32>
    %817 = arith.cmpf oge, %605, %816 : vector<8x256xf32>
    %818 = arith.extui %817 : vector<8x256xi1> to vector<8x256xi32>
    %819 = arith.sitofp %818 : vector<8x256xi32> to vector<8x256xf32>
    %820 = arith.subf %789, %819 : vector<8x256xf32>
    %cst_252 = arith.constant 1.000000e+00 : f32
    %821 = vector.broadcast %cst_252 : f32 to vector<8x256xf32>
    %822 = arith.subf %605, %821 : vector<8x256xf32>
    %cst_253 = arith.constant 2.500000e+00 : f32
    %823 = vector.broadcast %cst_253 : f32 to vector<8x256xf32>
    %824 = arith.mulf %822, %823 : vector<8x256xf32>
    %825 = arith.mulf %794, %790 : vector<8x256xf32>
    %cst_254 = arith.constant 1.000000e+00 : f32
    %826 = vector.broadcast %cst_254 : f32 to vector<8x256xf32>
    %827 = arith.subf %826, %824 : vector<8x256xf32>
    %828 = arith.mulf %827, %820 : vector<8x256xf32>
    %829 = arith.addf %825, %828 : vector<8x256xf32>
    %cst_255 = arith.constant 1.250000e+00 : f32
    %830 = vector.broadcast %cst_255 : f32 to vector<8x256xf32>
    %831 = arith.mulf %792, %830 : vector<8x256xf32>
    %832 = arith.mulf %801, %799 : vector<8x256xf32>
    %cst_256 = arith.constant 1.000000e+00 : f32
    %833 = vector.broadcast %cst_256 : f32 to vector<8x256xf32>
    %834 = arith.subf %833, %831 : vector<8x256xf32>
    %835 = arith.mulf %834, %829 : vector<8x256xf32>
    %836 = arith.addf %832, %835 : vector<8x256xf32>
    %cst_257 = arith.constant 0.833333313 : f32
    %837 = vector.broadcast %cst_257 : f32 to vector<8x256xf32>
    %838 = arith.mulf %762, %837 : vector<8x256xf32>
    %839 = arith.mulf %808, %806 : vector<8x256xf32>
    %cst_258 = arith.constant 1.000000e+00 : f32
    %840 = vector.broadcast %cst_258 : f32 to vector<8x256xf32>
    %841 = arith.subf %840, %838 : vector<8x256xf32>
    %842 = arith.mulf %841, %836 : vector<8x256xf32>
    %843 = arith.addf %839, %842 : vector<8x256xf32>
    %844 = arith.truncf %843 : vector<8x256xf32> to vector<8x256xbf16>
    %c304 = arith.constant 304 : index
    %c0_259 = arith.constant 0 : index
    %845 = vector.load %arg5[%c304, %c0_259] : memref<432x256xbf16, #tpu.memory_space<vmem>>, vector<8x256xbf16>
    tpu.vector_store %arg5[%c304, %c0_259], %844 {strides = array<i32>} : memref<432x256xbf16, #tpu.memory_space<vmem>>, vector<8x256xbf16>,
    %cst_260 = arith.constant 1.800000e+00 : f32
    %846 = vector.broadcast %cst_260 : f32 to vector<8x256xf32>
    %847 = arith.cmpf oge, %605, %846 : vector<8x256xf32>
    %848 = arith.extui %847 : vector<8x256xi1> to vector<8x256xi32>
    %849 = arith.sitofp %848 : vector<8x256xi32> to vector<8x256xf32>
    %850 = arith.subf %819, %849 : vector<8x256xf32>
    %cst_261 = arith.constant 1.400000e+00 : f32
    %851 = vector.broadcast %cst_261 : f32 to vector<8x256xf32>
    %852 = arith.subf %605, %851 : vector<8x256xf32>
    %cst_262 = arith.constant 2.500000e+00 : f32
    %853 = vector.broadcast %cst_262 : f32 to vector<8x256xf32>
    %854 = arith.mulf %852, %853 : vector<8x256xf32>
    %855 = arith.mulf %824, %820 : vector<8x256xf32>
    %cst_263 = arith.constant 1.000000e+00 : f32
    %856 = vector.broadcast %cst_263 : f32 to vector<8x256xf32>
    %857 = arith.subf %856, %854 : vector<8x256xf32>
    %858 = arith.mulf %857, %850 : vector<8x256xf32>
    %859 = arith.addf %855, %858 : vector<8x256xf32>
    %cst_264 = arith.constant 1.250000e+00 : f32
    %860 = vector.broadcast %cst_264 : f32 to vector<8x256xf32>
    %861 = arith.mulf %822, %860 : vector<8x256xf32>
    %862 = arith.mulf %831, %829 : vector<8x256xf32>
    %cst_265 = arith.constant 1.000000e+00 : f32
    %863 = vector.broadcast %cst_265 : f32 to vector<8x256xf32>
    %864 = arith.subf %863, %861 : vector<8x256xf32>
    %865 = arith.mulf %864, %859 : vector<8x256xf32>
    %866 = arith.addf %862, %865 : vector<8x256xf32>
    %cst_266 = arith.constant 0.833333313 : f32
    %867 = vector.broadcast %cst_266 : f32 to vector<8x256xf32>
    %868 = arith.mulf %792, %867 : vector<8x256xf32>
    %869 = arith.mulf %838, %836 : vector<8x256xf32>
    %cst_267 = arith.constant 1.000000e+00 : f32
    %870 = vector.broadcast %cst_267 : f32 to vector<8x256xf32>
    %871 = arith.subf %870, %868 : vector<8x256xf32>
    %872 = arith.mulf %871, %866 : vector<8x256xf32>
    %873 = arith.addf %869, %872 : vector<8x256xf32>
    %874 = arith.truncf %873 : vector<8x256xf32> to vector<8x256xbf16>
    %c352 = arith.constant 352 : index
    %c0_268 = arith.constant 0 : index
    %875 = vector.load %arg5[%c352, %c0_268] : memref<432x256xbf16, #tpu.memory_space<vmem>>, vector<8x256xbf16>
    tpu.vector_store %arg5[%c352, %c0_268], %874 {strides = array<i32>} : memref<432x256xbf16, #tpu.memory_space<vmem>>, vector<8x256xbf16>,
    %cst_269 = arith.constant 2.200000e+00 : f32
    %876 = vector.broadcast %cst_269 : f32 to vector<8x256xf32>
    %877 = arith.cmpf oge, %605, %876 : vector<8x256xf32>
    %878 = arith.extui %877 : vector<8x256xi1> to vector<8x256xi32>
    %879 = arith.sitofp %878 : vector<8x256xi32> to vector<8x256xf32>
    %880 = arith.subf %849, %879 : vector<8x256xf32>
    %cst_270 = arith.constant 1.800000e+00 : f32
    %881 = vector.broadcast %cst_270 : f32 to vector<8x256xf32>
    %882 = arith.subf %605, %881 : vector<8x256xf32>
    %cst_271 = arith.constant 2.500000e+00 : f32
    %883 = vector.broadcast %cst_271 : f32 to vector<8x256xf32>
    %884 = arith.mulf %882, %883 : vector<8x256xf32>
    %885 = arith.mulf %854, %850 : vector<8x256xf32>
    %cst_272 = arith.constant 1.000000e+00 : f32
    %886 = vector.broadcast %cst_272 : f32 to vector<8x256xf32>
    %887 = arith.subf %886, %884 : vector<8x256xf32>
    %888 = arith.mulf %887, %880 : vector<8x256xf32>
    %889 = arith.addf %885, %888 : vector<8x256xf32>
    %cst_273 = arith.constant 1.250000e+00 : f32
    %890 = vector.broadcast %cst_273 : f32 to vector<8x256xf32>
    %891 = arith.mulf %852, %890 : vector<8x256xf32>
    %892 = arith.mulf %861, %859 : vector<8x256xf32>
    %cst_274 = arith.constant 1.000000e+00 : f32
    %893 = vector.broadcast %cst_274 : f32 to vector<8x256xf32>
    %894 = arith.subf %893, %891 : vector<8x256xf32>
    %895 = arith.mulf %894, %889 : vector<8x256xf32>
    %896 = arith.addf %892, %895 : vector<8x256xf32>
    %cst_275 = arith.constant 0.833333313 : f32
    %897 = vector.broadcast %cst_275 : f32 to vector<8x256xf32>
    %898 = arith.mulf %822, %897 : vector<8x256xf32>
    %899 = arith.mulf %868, %866 : vector<8x256xf32>
    %cst_276 = arith.constant 1.000000e+00 : f32
    %900 = vector.broadcast %cst_276 : f32 to vector<8x256xf32>
    %901 = arith.subf %900, %898 : vector<8x256xf32>
    %902 = arith.mulf %901, %896 : vector<8x256xf32>
    %903 = arith.addf %899, %902 : vector<8x256xf32>
    %904 = arith.truncf %903 : vector<8x256xf32> to vector<8x256xbf16>
    %c400 = arith.constant 400 : index
    %c0_277 = arith.constant 0 : index
    %905 = vector.load %arg5[%c400, %c0_277] : memref<432x256xbf16, #tpu.memory_space<vmem>>, vector<8x256xbf16>
    tpu.vector_store %arg5[%c400, %c0_277], %904 {strides = array<i32>} : memref<432x256xbf16, #tpu.memory_space<vmem>>, vector<8x256xbf16>,
    %c0_278 = arith.constant 0 : index
    %c24 = arith.constant 24 : index
    %c0_279 = arith.constant 0 : index
    %906 = vector.load %arg2[%c0_278, %c24, %c0_279] : memref<1x48x256xf32, #tpu.memory_space<vmem>>, vector<1x8x256xf32>
    %907 = vector.shape_cast %906 : vector<1x8x256xf32> to vector<8x256xf32>
    %908 = arith.negf %907 : vector<8x256xf32>
    %909 = math.exp %908 : vector<8x256xf32>
    %cst_280 = arith.constant 1.000000e+00 : f32
    %910 = vector.broadcast %cst_280 : f32 to vector<8x256xf32>
    %911 = arith.addf %910, %909 : vector<8x256xf32>
    %912 = arith.divf %910, %911 : vector<8x256xf32>
    %913 = arith.mulf %907, %912 : vector<8x256xf32>
    %914 = arith.truncf %913 : vector<8x256xf32> to vector<8x256xbf16>
    %c24_281 = arith.constant 24 : index
    %c0_282 = arith.constant 0 : index
    %915 = vector.load %arg5[%c24_281, %c0_282] : memref<432x256xbf16, #tpu.memory_space<vmem>>, vector<8x256xbf16>
    tpu.vector_store %arg5[%c24_281, %c0_282], %914 {strides = array<i32>} : memref<432x256xbf16, #tpu.memory_space<vmem>>, vector<8x256xbf16>,
    %cst_283 = arith.constant -2.200000e+00 : f32
    %916 = vector.broadcast %cst_283 : f32 to vector<8x256xf32>
    %917 = arith.cmpf oge, %907, %916 : vector<8x256xf32>
    %918 = arith.extui %917 : vector<8x256xi1> to vector<8x256xi32>
    %919 = arith.sitofp %918 : vector<8x256xi32> to vector<8x256xf32>
    %cst_284 = arith.constant -1.800000e+00 : f32
    %920 = vector.broadcast %cst_284 : f32 to vector<8x256xf32>
    %921 = arith.cmpf oge, %907, %920 : vector<8x256xf32>
    %922 = arith.extui %921 : vector<8x256xi1> to vector<8x256xi32>
    %923 = arith.sitofp %922 : vector<8x256xi32> to vector<8x256xf32>
    %924 = arith.subf %919, %923 : vector<8x256xf32>
    %cst_285 = arith.constant -2.200000e+00 : f32
    %925 = vector.broadcast %cst_285 : f32 to vector<8x256xf32>
    %926 = arith.subf %907, %925 : vector<8x256xf32>
    %cst_286 = arith.constant -1.400000e+00 : f32
    %927 = vector.broadcast %cst_286 : f32 to vector<8x256xf32>
    %928 = arith.cmpf oge, %907, %927 : vector<8x256xf32>
    %929 = arith.extui %928 : vector<8x256xi1> to vector<8x256xi32>
    %930 = arith.sitofp %929 : vector<8x256xi32> to vector<8x256xf32>
    %931 = arith.subf %923, %930 : vector<8x256xf32>
    %cst_287 = arith.constant -1.800000e+00 : f32
    %932 = vector.broadcast %cst_287 : f32 to vector<8x256xf32>
    %933 = arith.subf %907, %932 : vector<8x256xf32>
    %cst_288 = arith.constant 2.500000e+00 : f32
    %934 = vector.broadcast %cst_288 : f32 to vector<8x256xf32>
    %935 = arith.mulf %926, %934 : vector<8x256xf32>
    %cst_289 = arith.constant 2.500000e+00 : f32
    %936 = vector.broadcast %cst_289 : f32 to vector<8x256xf32>
    %937 = arith.mulf %933, %936 : vector<8x256xf32>
    %938 = arith.mulf %935, %924 : vector<8x256xf32>
    %cst_290 = arith.constant 1.000000e+00 : f32
    %939 = vector.broadcast %cst_290 : f32 to vector<8x256xf32>
    %940 = arith.subf %939, %937 : vector<8x256xf32>
    %941 = arith.mulf %940, %931 : vector<8x256xf32>
    %942 = arith.addf %938, %941 : vector<8x256xf32>
    %cst_291 = arith.constant -1.000000e+00 : f32
    %943 = vector.broadcast %cst_291 : f32 to vector<8x256xf32>
    %944 = arith.cmpf oge, %907, %943 : vector<8x256xf32>
    %945 = arith.extui %944 : vector<8x256xi1> to vector<8x256xi32>
    %946 = arith.sitofp %945 : vector<8x256xi32> to vector<8x256xf32>
    %947 = arith.subf %930, %946 : vector<8x256xf32>
    %cst_292 = arith.constant -1.400000e+00 : f32
    %948 = vector.broadcast %cst_292 : f32 to vector<8x256xf32>
    %949 = arith.subf %907, %948 : vector<8x256xf32>
    %cst_293 = arith.constant 2.500000e+00 : f32
    %950 = vector.broadcast %cst_293 : f32 to vector<8x256xf32>
    %951 = arith.mulf %949, %950 : vector<8x256xf32>
    %952 = arith.mulf %937, %931 : vector<8x256xf32>
    %cst_294 = arith.constant 1.000000e+00 : f32
    %953 = vector.broadcast %cst_294 : f32 to vector<8x256xf32>
    %954 = arith.subf %953, %951 : vector<8x256xf32>
    %955 = arith.mulf %954, %947 : vector<8x256xf32>
    %956 = arith.addf %952, %955 : vector<8x256xf32>
    %cst_295 = arith.constant 1.250000e+00 : f32
    %957 = vector.broadcast %cst_295 : f32 to vector<8x256xf32>
    %958 = arith.mulf %926, %957 : vector<8x256xf32>
    %cst_296 = arith.constant 1.250000e+00 : f32
    %959 = vector.broadcast %cst_296 : f32 to vector<8x256xf32>
    %960 = arith.mulf %933, %959 : vector<8x256xf32>
    %961 = arith.mulf %958, %942 : vector<8x256xf32>
    %cst_297 = arith.constant 1.000000e+00 : f32
    %962 = vector.broadcast %cst_297 : f32 to vector<8x256xf32>
    %963 = arith.subf %962, %960 : vector<8x256xf32>
    %964 = arith.mulf %963, %956 : vector<8x256xf32>
    %965 = arith.addf %961, %964 : vector<8x256xf32>
    %cst_298 = arith.constant -6.000000e-01 : f32
    %966 = vector.broadcast %cst_298 : f32 to vector<8x256xf32>
    %967 = arith.cmpf oge, %907, %966 : vector<8x256xf32>
    %968 = arith.extui %967 : vector<8x256xi1> to vector<8x256xi32>
    %969 = arith.sitofp %968 : vector<8x256xi32> to vector<8x256xf32>
    %970 = arith.subf %946, %969 : vector<8x256xf32>
    %cst_299 = arith.constant -1.000000e+00 : f32
    %971 = vector.broadcast %cst_299 : f32 to vector<8x256xf32>
    %972 = arith.subf %907, %971 : vector<8x256xf32>
    %cst_300 = arith.constant 2.500000e+00 : f32
    %973 = vector.broadcast %cst_300 : f32 to vector<8x256xf32>
    %974 = arith.mulf %972, %973 : vector<8x256xf32>
    %975 = arith.mulf %951, %947 : vector<8x256xf32>
    %cst_301 = arith.constant 1.000000e+00 : f32
    %976 = vector.broadcast %cst_301 : f32 to vector<8x256xf32>
    %977 = arith.subf %976, %974 : vector<8x256xf32>
    %978 = arith.mulf %977, %970 : vector<8x256xf32>
    %979 = arith.addf %975, %978 : vector<8x256xf32>
    %cst_302 = arith.constant 1.250000e+00 : f32
    %980 = vector.broadcast %cst_302 : f32 to vector<8x256xf32>
    %981 = arith.mulf %949, %980 : vector<8x256xf32>
    %982 = arith.mulf %960, %956 : vector<8x256xf32>
    %cst_303 = arith.constant 1.000000e+00 : f32
    %983 = vector.broadcast %cst_303 : f32 to vector<8x256xf32>
    %984 = arith.subf %983, %981 : vector<8x256xf32>
    %985 = arith.mulf %984, %979 : vector<8x256xf32>
    %986 = arith.addf %982, %985 : vector<8x256xf32>
    %cst_304 = arith.constant 0.833333313 : f32
    %987 = vector.broadcast %cst_304 : f32 to vector<8x256xf32>
    %988 = arith.mulf %926, %987 : vector<8x256xf32>
    %cst_305 = arith.constant 0.833333313 : f32
    %989 = vector.broadcast %cst_305 : f32 to vector<8x256xf32>
    %990 = arith.mulf %933, %989 : vector<8x256xf32>
    %991 = arith.mulf %988, %965 : vector<8x256xf32>
    %cst_306 = arith.constant 1.000000e+00 : f32
    %992 = vector.broadcast %cst_306 : f32 to vector<8x256xf32>
    %993 = arith.subf %992, %990 : vector<8x256xf32>
    %994 = arith.mulf %993, %986 : vector<8x256xf32>
    %995 = arith.addf %991, %994 : vector<8x256xf32>
    %996 = arith.truncf %995 : vector<8x256xf32> to vector<8x256xbf16>
    %c72 = arith.constant 72 : index
    %c0_307 = arith.constant 0 : index
    %997 = vector.load %arg5[%c72, %c0_307] : memref<432x256xbf16, #tpu.memory_space<vmem>>, vector<8x256xbf16>
    tpu.vector_store %arg5[%c72, %c0_307], %996 {strides = array<i32>} : memref<432x256xbf16, #tpu.memory_space<vmem>>, vector<8x256xbf16>,
    %cst_308 = arith.constant -2.000000e-01 : f32
    %998 = vector.broadcast %cst_308 : f32 to vector<8x256xf32>
    %999 = arith.cmpf oge, %907, %998 : vector<8x256xf32>
    %1000 = arith.extui %999 : vector<8x256xi1> to vector<8x256xi32>
    %1001 = arith.sitofp %1000 : vector<8x256xi32> to vector<8x256xf32>
    %1002 = arith.subf %969, %1001 : vector<8x256xf32>
    %cst_309 = arith.constant -6.000000e-01 : f32
    %1003 = vector.broadcast %cst_309 : f32 to vector<8x256xf32>
    %1004 = arith.subf %907, %1003 : vector<8x256xf32>
    %cst_310 = arith.constant 2.500000e+00 : f32
    %1005 = vector.broadcast %cst_310 : f32 to vector<8x256xf32>
    %1006 = arith.mulf %1004, %1005 : vector<8x256xf32>
    %1007 = arith.mulf %974, %970 : vector<8x256xf32>
    %cst_311 = arith.constant 1.000000e+00 : f32
    %1008 = vector.broadcast %cst_311 : f32 to vector<8x256xf32>
    %1009 = arith.subf %1008, %1006 : vector<8x256xf32>
    %1010 = arith.mulf %1009, %1002 : vector<8x256xf32>
    %1011 = arith.addf %1007, %1010 : vector<8x256xf32>
    %cst_312 = arith.constant 1.250000e+00 : f32
    %1012 = vector.broadcast %cst_312 : f32 to vector<8x256xf32>
    %1013 = arith.mulf %972, %1012 : vector<8x256xf32>
    %1014 = arith.mulf %981, %979 : vector<8x256xf32>
    %cst_313 = arith.constant 1.000000e+00 : f32
    %1015 = vector.broadcast %cst_313 : f32 to vector<8x256xf32>
    %1016 = arith.subf %1015, %1013 : vector<8x256xf32>
    %1017 = arith.mulf %1016, %1011 : vector<8x256xf32>
    %1018 = arith.addf %1014, %1017 : vector<8x256xf32>
    %cst_314 = arith.constant 0.833333313 : f32
    %1019 = vector.broadcast %cst_314 : f32 to vector<8x256xf32>
    %1020 = arith.mulf %949, %1019 : vector<8x256xf32>
    %1021 = arith.mulf %990, %986 : vector<8x256xf32>
    %cst_315 = arith.constant 1.000000e+00 : f32
    %1022 = vector.broadcast %cst_315 : f32 to vector<8x256xf32>
    %1023 = arith.subf %1022, %1020 : vector<8x256xf32>
    %1024 = arith.mulf %1023, %1018 : vector<8x256xf32>
    %1025 = arith.addf %1021, %1024 : vector<8x256xf32>
    %1026 = arith.truncf %1025 : vector<8x256xf32> to vector<8x256xbf16>
    %c120 = arith.constant 120 : index
    %c0_316 = arith.constant 0 : index
    %1027 = vector.load %arg5[%c120, %c0_316] : memref<432x256xbf16, #tpu.memory_space<vmem>>, vector<8x256xbf16>
    tpu.vector_store %arg5[%c120, %c0_316], %1026 {strides = array<i32>} : memref<432x256xbf16, #tpu.memory_space<vmem>>, vector<8x256xbf16>,
    %cst_317 = arith.constant 2.000000e-01 : f32
    %1028 = vector.broadcast %cst_317 : f32 to vector<8x256xf32>
    %1029 = arith.cmpf oge, %907, %1028 : vector<8x256xf32>
    %1030 = arith.extui %1029 : vector<8x256xi1> to vector<8x256xi32>
    %1031 = arith.sitofp %1030 : vector<8x256xi32> to vector<8x256xf32>
    %1032 = arith.subf %1001, %1031 : vector<8x256xf32>
    %cst_318 = arith.constant -2.000000e-01 : f32
    %1033 = vector.broadcast %cst_318 : f32 to vector<8x256xf32>
    %1034 = arith.subf %907, %1033 : vector<8x256xf32>
    %cst_319 = arith.constant 2.500000e+00 : f32
    %1035 = vector.broadcast %cst_319 : f32 to vector<8x256xf32>
    %1036 = arith.mulf %1034, %1035 : vector<8x256xf32>
    %1037 = arith.mulf %1006, %1002 : vector<8x256xf32>
    %cst_320 = arith.constant 1.000000e+00 : f32
    %1038 = vector.broadcast %cst_320 : f32 to vector<8x256xf32>
    %1039 = arith.subf %1038, %1036 : vector<8x256xf32>
    %1040 = arith.mulf %1039, %1032 : vector<8x256xf32>
    %1041 = arith.addf %1037, %1040 : vector<8x256xf32>
    %cst_321 = arith.constant 1.250000e+00 : f32
    %1042 = vector.broadcast %cst_321 : f32 to vector<8x256xf32>
    %1043 = arith.mulf %1004, %1042 : vector<8x256xf32>
    %1044 = arith.mulf %1013, %1011 : vector<8x256xf32>
    %cst_322 = arith.constant 1.000000e+00 : f32
    %1045 = vector.broadcast %cst_322 : f32 to vector<8x256xf32>
    %1046 = arith.subf %1045, %1043 : vector<8x256xf32>
    %1047 = arith.mulf %1046, %1041 : vector<8x256xf32>
    %1048 = arith.addf %1044, %1047 : vector<8x256xf32>
    %cst_323 = arith.constant 0.833333313 : f32
    %1049 = vector.broadcast %cst_323 : f32 to vector<8x256xf32>
    %1050 = arith.mulf %972, %1049 : vector<8x256xf32>
    %1051 = arith.mulf %1020, %1018 : vector<8x256xf32>
    %cst_324 = arith.constant 1.000000e+00 : f32
    %1052 = vector.broadcast %cst_324 : f32 to vector<8x256xf32>
    %1053 = arith.subf %1052, %1050 : vector<8x256xf32>
    %1054 = arith.mulf %1053, %1048 : vector<8x256xf32>
    %1055 = arith.addf %1051, %1054 : vector<8x256xf32>
    %1056 = arith.truncf %1055 : vector<8x256xf32> to vector<8x256xbf16>
    %c168 = arith.constant 168 : index
    %c0_325 = arith.constant 0 : index
    %1057 = vector.load %arg5[%c168, %c0_325] : memref<432x256xbf16, #tpu.memory_space<vmem>>, vector<8x256xbf16>
    tpu.vector_store %arg5[%c168, %c0_325], %1056 {strides = array<i32>} : memref<432x256xbf16, #tpu.memory_space<vmem>>, vector<8x256xbf16>,
    %cst_326 = arith.constant 6.000000e-01 : f32
    %1058 = vector.broadcast %cst_326 : f32 to vector<8x256xf32>
    %1059 = arith.cmpf oge, %907, %1058 : vector<8x256xf32>
    %1060 = arith.extui %1059 : vector<8x256xi1> to vector<8x256xi32>
    %1061 = arith.sitofp %1060 : vector<8x256xi32> to vector<8x256xf32>
    %1062 = arith.subf %1031, %1061 : vector<8x256xf32>
    %cst_327 = arith.constant 2.000000e-01 : f32
    %1063 = vector.broadcast %cst_327 : f32 to vector<8x256xf32>
    %1064 = arith.subf %907, %1063 : vector<8x256xf32>
    %cst_328 = arith.constant 2.500000e+00 : f32
    %1065 = vector.broadcast %cst_328 : f32 to vector<8x256xf32>
    %1066 = arith.mulf %1064, %1065 : vector<8x256xf32>
    %1067 = arith.mulf %1036, %1032 : vector<8x256xf32>
    %cst_329 = arith.constant 1.000000e+00 : f32
    %1068 = vector.broadcast %cst_329 : f32 to vector<8x256xf32>
    %1069 = arith.subf %1068, %1066 : vector<8x256xf32>
    %1070 = arith.mulf %1069, %1062 : vector<8x256xf32>
    %1071 = arith.addf %1067, %1070 : vector<8x256xf32>
    %cst_330 = arith.constant 1.250000e+00 : f32
    %1072 = vector.broadcast %cst_330 : f32 to vector<8x256xf32>
    %1073 = arith.mulf %1034, %1072 : vector<8x256xf32>
    %1074 = arith.mulf %1043, %1041 : vector<8x256xf32>
    %cst_331 = arith.constant 1.000000e+00 : f32
    %1075 = vector.broadcast %cst_331 : f32 to vector<8x256xf32>
    %1076 = arith.subf %1075, %1073 : vector<8x256xf32>
    %1077 = arith.mulf %1076, %1071 : vector<8x256xf32>
    %1078 = arith.addf %1074, %1077 : vector<8x256xf32>
    %cst_332 = arith.constant 0.833333313 : f32
    %1079 = vector.broadcast %cst_332 : f32 to vector<8x256xf32>
    %1080 = arith.mulf %1004, %1079 : vector<8x256xf32>
    %1081 = arith.mulf %1050, %1048 : vector<8x256xf32>
    %cst_333 = arith.constant 1.000000e+00 : f32
    %1082 = vector.broadcast %cst_333 : f32 to vector<8x256xf32>
    %1083 = arith.subf %1082, %1080 : vector<8x256xf32>
    %1084 = arith.mulf %1083, %1078 : vector<8x256xf32>
    %1085 = arith.addf %1081, %1084 : vector<8x256xf32>
    %1086 = arith.truncf %1085 : vector<8x256xf32> to vector<8x256xbf16>
    %c216 = arith.constant 216 : index
    %c0_334 = arith.constant 0 : index
    %1087 = vector.load %arg5[%c216, %c0_334] : memref<432x256xbf16, #tpu.memory_space<vmem>>, vector<8x256xbf16>
    tpu.vector_store %arg5[%c216, %c0_334], %1086 {strides = array<i32>} : memref<432x256xbf16, #tpu.memory_space<vmem>>, vector<8x256xbf16>,
    %cst_335 = arith.constant 1.000000e+00 : f32
    %1088 = vector.broadcast %cst_335 : f32 to vector<8x256xf32>
    %1089 = arith.cmpf oge, %907, %1088 : vector<8x256xf32>
    %1090 = arith.extui %1089 : vector<8x256xi1> to vector<8x256xi32>
    %1091 = arith.sitofp %1090 : vector<8x256xi32> to vector<8x256xf32>
    %1092 = arith.subf %1061, %1091 : vector<8x256xf32>
    %cst_336 = arith.constant 6.000000e-01 : f32
    %1093 = vector.broadcast %cst_336 : f32 to vector<8x256xf32>
    %1094 = arith.subf %907, %1093 : vector<8x256xf32>
    %cst_337 = arith.constant 2.500000e+00 : f32
    %1095 = vector.broadcast %cst_337 : f32 to vector<8x256xf32>
    %1096 = arith.mulf %1094, %1095 : vector<8x256xf32>
    %1097 = arith.mulf %1066, %1062 : vector<8x256xf32>
    %cst_338 = arith.constant 1.000000e+00 : f32
    %1098 = vector.broadcast %cst_338 : f32 to vector<8x256xf32>
    %1099 = arith.subf %1098, %1096 : vector<8x256xf32>
    %1100 = arith.mulf %1099, %1092 : vector<8x256xf32>
    %1101 = arith.addf %1097, %1100 : vector<8x256xf32>
    %cst_339 = arith.constant 1.250000e+00 : f32
    %1102 = vector.broadcast %cst_339 : f32 to vector<8x256xf32>
    %1103 = arith.mulf %1064, %1102 : vector<8x256xf32>
    %1104 = arith.mulf %1073, %1071 : vector<8x256xf32>
    %cst_340 = arith.constant 1.000000e+00 : f32
    %1105 = vector.broadcast %cst_340 : f32 to vector<8x256xf32>
    %1106 = arith.subf %1105, %1103 : vector<8x256xf32>
    %1107 = arith.mulf %1106, %1101 : vector<8x256xf32>
    %1108 = arith.addf %1104, %1107 : vector<8x256xf32>
    %cst_341 = arith.constant 0.833333313 : f32
    %1109 = vector.broadcast %cst_341 : f32 to vector<8x256xf32>
    %1110 = arith.mulf %1034, %1109 : vector<8x256xf32>
    %1111 = arith.mulf %1080, %1078 : vector<8x256xf32>
    %cst_342 = arith.constant 1.000000e+00 : f32
    %1112 = vector.broadcast %cst_342 : f32 to vector<8x256xf32>
    %1113 = arith.subf %1112, %1110 : vector<8x256xf32>
    %1114 = arith.mulf %1113, %1108 : vector<8x256xf32>
    %1115 = arith.addf %1111, %1114 : vector<8x256xf32>
    %1116 = arith.truncf %1115 : vector<8x256xf32> to vector<8x256xbf16>
    %c264 = arith.constant 264 : index
    %c0_343 = arith.constant 0 : index
    %1117 = vector.load %arg5[%c264, %c0_343] : memref<432x256xbf16, #tpu.memory_space<vmem>>, vector<8x256xbf16>
    tpu.vector_store %arg5[%c264, %c0_343], %1116 {strides = array<i32>} : memref<432x256xbf16, #tpu.memory_space<vmem>>, vector<8x256xbf16>,
    %cst_344 = arith.constant 1.400000e+00 : f32
    %1118 = vector.broadcast %cst_344 : f32 to vector<8x256xf32>
    %1119 = arith.cmpf oge, %907, %1118 : vector<8x256xf32>
    %1120 = arith.extui %1119 : vector<8x256xi1> to vector<8x256xi32>
    %1121 = arith.sitofp %1120 : vector<8x256xi32> to vector<8x256xf32>
    %1122 = arith.subf %1091, %1121 : vector<8x256xf32>
    %cst_345 = arith.constant 1.000000e+00 : f32
    %1123 = vector.broadcast %cst_345 : f32 to vector<8x256xf32>
    %1124 = arith.subf %907, %1123 : vector<8x256xf32>
    %cst_346 = arith.constant 2.500000e+00 : f32
    %1125 = vector.broadcast %cst_346 : f32 to vector<8x256xf32>
    %1126 = arith.mulf %1124, %1125 : vector<8x256xf32>
    %1127 = arith.mulf %1096, %1092 : vector<8x256xf32>
    %cst_347 = arith.constant 1.000000e+00 : f32
    %1128 = vector.broadcast %cst_347 : f32 to vector<8x256xf32>
    %1129 = arith.subf %1128, %1126 : vector<8x256xf32>
    %1130 = arith.mulf %1129, %1122 : vector<8x256xf32>
    %1131 = arith.addf %1127, %1130 : vector<8x256xf32>
    %cst_348 = arith.constant 1.250000e+00 : f32
    %1132 = vector.broadcast %cst_348 : f32 to vector<8x256xf32>
    %1133 = arith.mulf %1094, %1132 : vector<8x256xf32>
    %1134 = arith.mulf %1103, %1101 : vector<8x256xf32>
    %cst_349 = arith.constant 1.000000e+00 : f32
    %1135 = vector.broadcast %cst_349 : f32 to vector<8x256xf32>
    %1136 = arith.subf %1135, %1133 : vector<8x256xf32>
    %1137 = arith.mulf %1136, %1131 : vector<8x256xf32>
    %1138 = arith.addf %1134, %1137 : vector<8x256xf32>
    %cst_350 = arith.constant 0.833333313 : f32
    %1139 = vector.broadcast %cst_350 : f32 to vector<8x256xf32>
    %1140 = arith.mulf %1064, %1139 : vector<8x256xf32>
    %1141 = arith.mulf %1110, %1108 : vector<8x256xf32>
    %cst_351 = arith.constant 1.000000e+00 : f32
    %1142 = vector.broadcast %cst_351 : f32 to vector<8x256xf32>
    %1143 = arith.subf %1142, %1140 : vector<8x256xf32>
    %1144 = arith.mulf %1143, %1138 : vector<8x256xf32>
    %1145 = arith.addf %1141, %1144 : vector<8x256xf32>
    %1146 = arith.truncf %1145 : vector<8x256xf32> to vector<8x256xbf16>
    %c312 = arith.constant 312 : index
    %c0_352 = arith.constant 0 : index
    %1147 = vector.load %arg5[%c312, %c0_352] : memref<432x256xbf16, #tpu.memory_space<vmem>>, vector<8x256xbf16>
    tpu.vector_store %arg5[%c312, %c0_352], %1146 {strides = array<i32>} : memref<432x256xbf16, #tpu.memory_space<vmem>>, vector<8x256xbf16>,
    %cst_353 = arith.constant 1.800000e+00 : f32
    %1148 = vector.broadcast %cst_353 : f32 to vector<8x256xf32>
    %1149 = arith.cmpf oge, %907, %1148 : vector<8x256xf32>
    %1150 = arith.extui %1149 : vector<8x256xi1> to vector<8x256xi32>
    %1151 = arith.sitofp %1150 : vector<8x256xi32> to vector<8x256xf32>
    %1152 = arith.subf %1121, %1151 : vector<8x256xf32>
    %cst_354 = arith.constant 1.400000e+00 : f32
    %1153 = vector.broadcast %cst_354 : f32 to vector<8x256xf32>
    %1154 = arith.subf %907, %1153 : vector<8x256xf32>
    %cst_355 = arith.constant 2.500000e+00 : f32
    %1155 = vector.broadcast %cst_355 : f32 to vector<8x256xf32>
    %1156 = arith.mulf %1154, %1155 : vector<8x256xf32>
    %1157 = arith.mulf %1126, %1122 : vector<8x256xf32>
    %cst_356 = arith.constant 1.000000e+00 : f32
    %1158 = vector.broadcast %cst_356 : f32 to vector<8x256xf32>
    %1159 = arith.subf %1158, %1156 : vector<8x256xf32>
    %1160 = arith.mulf %1159, %1152 : vector<8x256xf32>
    %1161 = arith.addf %1157, %1160 : vector<8x256xf32>
    %cst_357 = arith.constant 1.250000e+00 : f32
    %1162 = vector.broadcast %cst_357 : f32 to vector<8x256xf32>
    %1163 = arith.mulf %1124, %1162 : vector<8x256xf32>
    %1164 = arith.mulf %1133, %1131 : vector<8x256xf32>
    %cst_358 = arith.constant 1.000000e+00 : f32
    %1165 = vector.broadcast %cst_358 : f32 to vector<8x256xf32>
    %1166 = arith.subf %1165, %1163 : vector<8x256xf32>
    %1167 = arith.mulf %1166, %1161 : vector<8x256xf32>
    %1168 = arith.addf %1164, %1167 : vector<8x256xf32>
    %cst_359 = arith.constant 0.833333313 : f32
    %1169 = vector.broadcast %cst_359 : f32 to vector<8x256xf32>
    %1170 = arith.mulf %1094, %1169 : vector<8x256xf32>
    %1171 = arith.mulf %1140, %1138 : vector<8x256xf32>
    %cst_360 = arith.constant 1.000000e+00 : f32
    %1172 = vector.broadcast %cst_360 : f32 to vector<8x256xf32>
    %1173 = arith.subf %1172, %1170 : vector<8x256xf32>
    %1174 = arith.mulf %1173, %1168 : vector<8x256xf32>
    %1175 = arith.addf %1171, %1174 : vector<8x256xf32>
    %1176 = arith.truncf %1175 : vector<8x256xf32> to vector<8x256xbf16>
    %c360 = arith.constant 360 : index
    %c0_361 = arith.constant 0 : index
    %1177 = vector.load %arg5[%c360, %c0_361] : memref<432x256xbf16, #tpu.memory_space<vmem>>, vector<8x256xbf16>
    tpu.vector_store %arg5[%c360, %c0_361], %1176 {strides = array<i32>} : memref<432x256xbf16, #tpu.memory_space<vmem>>, vector<8x256xbf16>,
    %cst_362 = arith.constant 2.200000e+00 : f32
    %1178 = vector.broadcast %cst_362 : f32 to vector<8x256xf32>
    %1179 = arith.cmpf oge, %907, %1178 : vector<8x256xf32>
    %1180 = arith.extui %1179 : vector<8x256xi1> to vector<8x256xi32>
    %1181 = arith.sitofp %1180 : vector<8x256xi32> to vector<8x256xf32>
    %1182 = arith.subf %1151, %1181 : vector<8x256xf32>
    %cst_363 = arith.constant 1.800000e+00 : f32
    %1183 = vector.broadcast %cst_363 : f32 to vector<8x256xf32>
    %1184 = arith.subf %907, %1183 : vector<8x256xf32>
    %cst_364 = arith.constant 2.500000e+00 : f32
    %1185 = vector.broadcast %cst_364 : f32 to vector<8x256xf32>
    %1186 = arith.mulf %1184, %1185 : vector<8x256xf32>
    %1187 = arith.mulf %1156, %1152 : vector<8x256xf32>
    %cst_365 = arith.constant 1.000000e+00 : f32
    %1188 = vector.broadcast %cst_365 : f32 to vector<8x256xf32>
    %1189 = arith.subf %1188, %1186 : vector<8x256xf32>
    %1190 = arith.mulf %1189, %1182 : vector<8x256xf32>
    %1191 = arith.addf %1187, %1190 : vector<8x256xf32>
    %cst_366 = arith.constant 1.250000e+00 : f32
    %1192 = vector.broadcast %cst_366 : f32 to vector<8x256xf32>
    %1193 = arith.mulf %1154, %1192 : vector<8x256xf32>
    %1194 = arith.mulf %1163, %1161 : vector<8x256xf32>
    %cst_367 = arith.constant 1.000000e+00 : f32
    %1195 = vector.broadcast %cst_367 : f32 to vector<8x256xf32>
    %1196 = arith.subf %1195, %1193 : vector<8x256xf32>
    %1197 = arith.mulf %1196, %1191 : vector<8x256xf32>
    %1198 = arith.addf %1194, %1197 : vector<8x256xf32>
    %cst_368 = arith.constant 0.833333313 : f32
    %1199 = vector.broadcast %cst_368 : f32 to vector<8x256xf32>
    %1200 = arith.mulf %1124, %1199 : vector<8x256xf32>
    %1201 = arith.mulf %1170, %1168 : vector<8x256xf32>
    %cst_369 = arith.constant 1.000000e+00 : f32
    %1202 = vector.broadcast %cst_369 : f32 to vector<8x256xf32>
    %1203 = arith.subf %1202, %1200 : vector<8x256xf32>
    %1204 = arith.mulf %1203, %1198 : vector<8x256xf32>
    %1205 = arith.addf %1201, %1204 : vector<8x256xf32>
    %1206 = arith.truncf %1205 : vector<8x256xf32> to vector<8x256xbf16>
    %c408 = arith.constant 408 : index
    %c0_370 = arith.constant 0 : index
    %1207 = vector.load %arg5[%c408, %c0_370] : memref<432x256xbf16, #tpu.memory_space<vmem>>, vector<8x256xbf16>
    tpu.vector_store %arg5[%c408, %c0_370], %1206 {strides = array<i32>} : memref<432x256xbf16, #tpu.memory_space<vmem>>, vector<8x256xbf16>,
    %c0_371 = arith.constant 0 : index
    %c32 = arith.constant 32 : index
    %c0_372 = arith.constant 0 : index
    %1208 = vector.load %arg2[%c0_371, %c32, %c0_372] : memref<1x48x256xf32, #tpu.memory_space<vmem>>, vector<1x8x256xf32>
    %1209 = vector.shape_cast %1208 : vector<1x8x256xf32> to vector<8x256xf32>
    %1210 = arith.negf %1209 : vector<8x256xf32>
    %1211 = math.exp %1210 : vector<8x256xf32>
    %cst_373 = arith.constant 1.000000e+00 : f32
    %1212 = vector.broadcast %cst_373 : f32 to vector<8x256xf32>
    %1213 = arith.addf %1212, %1211 : vector<8x256xf32>
    %1214 = arith.divf %1212, %1213 : vector<8x256xf32>
    %1215 = arith.mulf %1209, %1214 : vector<8x256xf32>
    %1216 = arith.truncf %1215 : vector<8x256xf32> to vector<8x256xbf16>
    %c32_374 = arith.constant 32 : index
    %c0_375 = arith.constant 0 : index
    %1217 = vector.load %arg5[%c32_374, %c0_375] : memref<432x256xbf16, #tpu.memory_space<vmem>>, vector<8x256xbf16>
    tpu.vector_store %arg5[%c32_374, %c0_375], %1216 {strides = array<i32>} : memref<432x256xbf16, #tpu.memory_space<vmem>>, vector<8x256xbf16>,
    %cst_376 = arith.constant -2.200000e+00 : f32
    %1218 = vector.broadcast %cst_376 : f32 to vector<8x256xf32>
    %1219 = arith.cmpf oge, %1209, %1218 : vector<8x256xf32>
    %1220 = arith.extui %1219 : vector<8x256xi1> to vector<8x256xi32>
    %1221 = arith.sitofp %1220 : vector<8x256xi32> to vector<8x256xf32>
    %cst_377 = arith.constant -1.800000e+00 : f32
    %1222 = vector.broadcast %cst_377 : f32 to vector<8x256xf32>
    %1223 = arith.cmpf oge, %1209, %1222 : vector<8x256xf32>
    %1224 = arith.extui %1223 : vector<8x256xi1> to vector<8x256xi32>
    %1225 = arith.sitofp %1224 : vector<8x256xi32> to vector<8x256xf32>
    %1226 = arith.subf %1221, %1225 : vector<8x256xf32>
    %cst_378 = arith.constant -2.200000e+00 : f32
    %1227 = vector.broadcast %cst_378 : f32 to vector<8x256xf32>
    %1228 = arith.subf %1209, %1227 : vector<8x256xf32>
    %cst_379 = arith.constant -1.400000e+00 : f32
    %1229 = vector.broadcast %cst_379 : f32 to vector<8x256xf32>
    %1230 = arith.cmpf oge, %1209, %1229 : vector<8x256xf32>
    %1231 = arith.extui %1230 : vector<8x256xi1> to vector<8x256xi32>
    %1232 = arith.sitofp %1231 : vector<8x256xi32> to vector<8x256xf32>
    %1233 = arith.subf %1225, %1232 : vector<8x256xf32>
    %cst_380 = arith.constant -1.800000e+00 : f32
    %1234 = vector.broadcast %cst_380 : f32 to vector<8x256xf32>
    %1235 = arith.subf %1209, %1234 : vector<8x256xf32>
    %cst_381 = arith.constant 2.500000e+00 : f32
    %1236 = vector.broadcast %cst_381 : f32 to vector<8x256xf32>
    %1237 = arith.mulf %1228, %1236 : vector<8x256xf32>
    %cst_382 = arith.constant 2.500000e+00 : f32
    %1238 = vector.broadcast %cst_382 : f32 to vector<8x256xf32>
    %1239 = arith.mulf %1235, %1238 : vector<8x256xf32>
    %1240 = arith.mulf %1237, %1226 : vector<8x256xf32>
    %cst_383 = arith.constant 1.000000e+00 : f32
    %1241 = vector.broadcast %cst_383 : f32 to vector<8x256xf32>
    %1242 = arith.subf %1241, %1239 : vector<8x256xf32>
    %1243 = arith.mulf %1242, %1233 : vector<8x256xf32>
    %1244 = arith.addf %1240, %1243 : vector<8x256xf32>
    %cst_384 = arith.constant -1.000000e+00 : f32
    %1245 = vector.broadcast %cst_384 : f32 to vector<8x256xf32>
    %1246 = arith.cmpf oge, %1209, %1245 : vector<8x256xf32>
    %1247 = arith.extui %1246 : vector<8x256xi1> to vector<8x256xi32>
    %1248 = arith.sitofp %1247 : vector<8x256xi32> to vector<8x256xf32>
    %1249 = arith.subf %1232, %1248 : vector<8x256xf32>
    %cst_385 = arith.constant -1.400000e+00 : f32
    %1250 = vector.broadcast %cst_385 : f32 to vector<8x256xf32>
    %1251 = arith.subf %1209, %1250 : vector<8x256xf32>
    %cst_386 = arith.constant 2.500000e+00 : f32
    %1252 = vector.broadcast %cst_386 : f32 to vector<8x256xf32>
    %1253 = arith.mulf %1251, %1252 : vector<8x256xf32>
    %1254 = arith.mulf %1239, %1233 : vector<8x256xf32>
    %cst_387 = arith.constant 1.000000e+00 : f32
    %1255 = vector.broadcast %cst_387 : f32 to vector<8x256xf32>
    %1256 = arith.subf %1255, %1253 : vector<8x256xf32>
    %1257 = arith.mulf %1256, %1249 : vector<8x256xf32>
    %1258 = arith.addf %1254, %1257 : vector<8x256xf32>
    %cst_388 = arith.constant 1.250000e+00 : f32
    %1259 = vector.broadcast %cst_388 : f32 to vector<8x256xf32>
    %1260 = arith.mulf %1228, %1259 : vector<8x256xf32>
    %cst_389 = arith.constant 1.250000e+00 : f32
    %1261 = vector.broadcast %cst_389 : f32 to vector<8x256xf32>
    %1262 = arith.mulf %1235, %1261 : vector<8x256xf32>
    %1263 = arith.mulf %1260, %1244 : vector<8x256xf32>
    %cst_390 = arith.constant 1.000000e+00 : f32
    %1264 = vector.broadcast %cst_390 : f32 to vector<8x256xf32>
    %1265 = arith.subf %1264, %1262 : vector<8x256xf32>
    %1266 = arith.mulf %1265, %1258 : vector<8x256xf32>
    %1267 = arith.addf %1263, %1266 : vector<8x256xf32>
    %cst_391 = arith.constant -6.000000e-01 : f32
    %1268 = vector.broadcast %cst_391 : f32 to vector<8x256xf32>
    %1269 = arith.cmpf oge, %1209, %1268 : vector<8x256xf32>
    %1270 = arith.extui %1269 : vector<8x256xi1> to vector<8x256xi32>
    %1271 = arith.sitofp %1270 : vector<8x256xi32> to vector<8x256xf32>
    %1272 = arith.subf %1248, %1271 : vector<8x256xf32>
    %cst_392 = arith.constant -1.000000e+00 : f32
    %1273 = vector.broadcast %cst_392 : f32 to vector<8x256xf32>
    %1274 = arith.subf %1209, %1273 : vector<8x256xf32>
    %cst_393 = arith.constant 2.500000e+00 : f32
    %1275 = vector.broadcast %cst_393 : f32 to vector<8x256xf32>
    %1276 = arith.mulf %1274, %1275 : vector<8x256xf32>
    %1277 = arith.mulf %1253, %1249 : vector<8x256xf32>
    %cst_394 = arith.constant 1.000000e+00 : f32
    %1278 = vector.broadcast %cst_394 : f32 to vector<8x256xf32>
    %1279 = arith.subf %1278, %1276 : vector<8x256xf32>
    %1280 = arith.mulf %1279, %1272 : vector<8x256xf32>
    %1281 = arith.addf %1277, %1280 : vector<8x256xf32>
    %cst_395 = arith.constant 1.250000e+00 : f32
    %1282 = vector.broadcast %cst_395 : f32 to vector<8x256xf32>
    %1283 = arith.mulf %1251, %1282 : vector<8x256xf32>
    %1284 = arith.mulf %1262, %1258 : vector<8x256xf32>
    %cst_396 = arith.constant 1.000000e+00 : f32
    %1285 = vector.broadcast %cst_396 : f32 to vector<8x256xf32>
    %1286 = arith.subf %1285, %1283 : vector<8x256xf32>
    %1287 = arith.mulf %1286, %1281 : vector<8x256xf32>
    %1288 = arith.addf %1284, %1287 : vector<8x256xf32>
    %cst_397 = arith.constant 0.833333313 : f32
    %1289 = vector.broadcast %cst_397 : f32 to vector<8x256xf32>
    %1290 = arith.mulf %1228, %1289 : vector<8x256xf32>
    %cst_398 = arith.constant 0.833333313 : f32
    %1291 = vector.broadcast %cst_398 : f32 to vector<8x256xf32>
    %1292 = arith.mulf %1235, %1291 : vector<8x256xf32>
    %1293 = arith.mulf %1290, %1267 : vector<8x256xf32>
    %cst_399 = arith.constant 1.000000e+00 : f32
    %1294 = vector.broadcast %cst_399 : f32 to vector<8x256xf32>
    %1295 = arith.subf %1294, %1292 : vector<8x256xf32>
    %1296 = arith.mulf %1295, %1288 : vector<8x256xf32>
    %1297 = arith.addf %1293, %1296 : vector<8x256xf32>
    %1298 = arith.truncf %1297 : vector<8x256xf32> to vector<8x256xbf16>
    %c80 = arith.constant 80 : index
    %c0_400 = arith.constant 0 : index
    %1299 = vector.load %arg5[%c80, %c0_400] : memref<432x256xbf16, #tpu.memory_space<vmem>>, vector<8x256xbf16>
    tpu.vector_store %arg5[%c80, %c0_400], %1298 {strides = array<i32>} : memref<432x256xbf16, #tpu.memory_space<vmem>>, vector<8x256xbf16>,
    %cst_401 = arith.constant -2.000000e-01 : f32
    %1300 = vector.broadcast %cst_401 : f32 to vector<8x256xf32>
    %1301 = arith.cmpf oge, %1209, %1300 : vector<8x256xf32>
    %1302 = arith.extui %1301 : vector<8x256xi1> to vector<8x256xi32>
    %1303 = arith.sitofp %1302 : vector<8x256xi32> to vector<8x256xf32>
    %1304 = arith.subf %1271, %1303 : vector<8x256xf32>
    %cst_402 = arith.constant -6.000000e-01 : f32
    %1305 = vector.broadcast %cst_402 : f32 to vector<8x256xf32>
    %1306 = arith.subf %1209, %1305 : vector<8x256xf32>
    %cst_403 = arith.constant 2.500000e+00 : f32
    %1307 = vector.broadcast %cst_403 : f32 to vector<8x256xf32>
    %1308 = arith.mulf %1306, %1307 : vector<8x256xf32>
    %1309 = arith.mulf %1276, %1272 : vector<8x256xf32>
    %cst_404 = arith.constant 1.000000e+00 : f32
    %1310 = vector.broadcast %cst_404 : f32 to vector<8x256xf32>
    %1311 = arith.subf %1310, %1308 : vector<8x256xf32>
    %1312 = arith.mulf %1311, %1304 : vector<8x256xf32>
    %1313 = arith.addf %1309, %1312 : vector<8x256xf32>
    %cst_405 = arith.constant 1.250000e+00 : f32
    %1314 = vector.broadcast %cst_405 : f32 to vector<8x256xf32>
    %1315 = arith.mulf %1274, %1314 : vector<8x256xf32>
    %1316 = arith.mulf %1283, %1281 : vector<8x256xf32>
    %cst_406 = arith.constant 1.000000e+00 : f32
    %1317 = vector.broadcast %cst_406 : f32 to vector<8x256xf32>
    %1318 = arith.subf %1317, %1315 : vector<8x256xf32>
    %1319 = arith.mulf %1318, %1313 : vector<8x256xf32>
    %1320 = arith.addf %1316, %1319 : vector<8x256xf32>
    %cst_407 = arith.constant 0.833333313 : f32
    %1321 = vector.broadcast %cst_407 : f32 to vector<8x256xf32>
    %1322 = arith.mulf %1251, %1321 : vector<8x256xf32>
    %1323 = arith.mulf %1292, %1288 : vector<8x256xf32>
    %cst_408 = arith.constant 1.000000e+00 : f32
    %1324 = vector.broadcast %cst_408 : f32 to vector<8x256xf32>
    %1325 = arith.subf %1324, %1322 : vector<8x256xf32>
    %1326 = arith.mulf %1325, %1320 : vector<8x256xf32>
    %1327 = arith.addf %1323, %1326 : vector<8x256xf32>
    %1328 = arith.truncf %1327 : vector<8x256xf32> to vector<8x256xbf16>
    %c128 = arith.constant 128 : index
    %c0_409 = arith.constant 0 : index
    %1329 = vector.load %arg5[%c128, %c0_409] : memref<432x256xbf16, #tpu.memory_space<vmem>>, vector<8x256xbf16>
    tpu.vector_store %arg5[%c128, %c0_409], %1328 {strides = array<i32>} : memref<432x256xbf16, #tpu.memory_space<vmem>>, vector<8x256xbf16>,
    %cst_410 = arith.constant 2.000000e-01 : f32
    %1330 = vector.broadcast %cst_410 : f32 to vector<8x256xf32>
    %1331 = arith.cmpf oge, %1209, %1330 : vector<8x256xf32>
    %1332 = arith.extui %1331 : vector<8x256xi1> to vector<8x256xi32>
    %1333 = arith.sitofp %1332 : vector<8x256xi32> to vector<8x256xf32>
    %1334 = arith.subf %1303, %1333 : vector<8x256xf32>
    %cst_411 = arith.constant -2.000000e-01 : f32
    %1335 = vector.broadcast %cst_411 : f32 to vector<8x256xf32>
    %1336 = arith.subf %1209, %1335 : vector<8x256xf32>
    %cst_412 = arith.constant 2.500000e+00 : f32
    %1337 = vector.broadcast %cst_412 : f32 to vector<8x256xf32>
    %1338 = arith.mulf %1336, %1337 : vector<8x256xf32>
    %1339 = arith.mulf %1308, %1304 : vector<8x256xf32>
    %cst_413 = arith.constant 1.000000e+00 : f32
    %1340 = vector.broadcast %cst_413 : f32 to vector<8x256xf32>
    %1341 = arith.subf %1340, %1338 : vector<8x256xf32>
    %1342 = arith.mulf %1341, %1334 : vector<8x256xf32>
    %1343 = arith.addf %1339, %1342 : vector<8x256xf32>
    %cst_414 = arith.constant 1.250000e+00 : f32
    %1344 = vector.broadcast %cst_414 : f32 to vector<8x256xf32>
    %1345 = arith.mulf %1306, %1344 : vector<8x256xf32>
    %1346 = arith.mulf %1315, %1313 : vector<8x256xf32>
    %cst_415 = arith.constant 1.000000e+00 : f32
    %1347 = vector.broadcast %cst_415 : f32 to vector<8x256xf32>
    %1348 = arith.subf %1347, %1345 : vector<8x256xf32>
    %1349 = arith.mulf %1348, %1343 : vector<8x256xf32>
    %1350 = arith.addf %1346, %1349 : vector<8x256xf32>
    %cst_416 = arith.constant 0.833333313 : f32
    %1351 = vector.broadcast %cst_416 : f32 to vector<8x256xf32>
    %1352 = arith.mulf %1274, %1351 : vector<8x256xf32>
    %1353 = arith.mulf %1322, %1320 : vector<8x256xf32>
    %cst_417 = arith.constant 1.000000e+00 : f32
    %1354 = vector.broadcast %cst_417 : f32 to vector<8x256xf32>
    %1355 = arith.subf %1354, %1352 : vector<8x256xf32>
    %1356 = arith.mulf %1355, %1350 : vector<8x256xf32>
    %1357 = arith.addf %1353, %1356 : vector<8x256xf32>
    %1358 = arith.truncf %1357 : vector<8x256xf32> to vector<8x256xbf16>
    %c176 = arith.constant 176 : index
    %c0_418 = arith.constant 0 : index
    %1359 = vector.load %arg5[%c176, %c0_418] : memref<432x256xbf16, #tpu.memory_space<vmem>>, vector<8x256xbf16>
    tpu.vector_store %arg5[%c176, %c0_418], %1358 {strides = array<i32>} : memref<432x256xbf16, #tpu.memory_space<vmem>>, vector<8x256xbf16>,
    %cst_419 = arith.constant 6.000000e-01 : f32
    %1360 = vector.broadcast %cst_419 : f32 to vector<8x256xf32>
    %1361 = arith.cmpf oge, %1209, %1360 : vector<8x256xf32>
    %1362 = arith.extui %1361 : vector<8x256xi1> to vector<8x256xi32>
    %1363 = arith.sitofp %1362 : vector<8x256xi32> to vector<8x256xf32>
    %1364 = arith.subf %1333, %1363 : vector<8x256xf32>
    %cst_420 = arith.constant 2.000000e-01 : f32
    %1365 = vector.broadcast %cst_420 : f32 to vector<8x256xf32>
    %1366 = arith.subf %1209, %1365 : vector<8x256xf32>
    %cst_421 = arith.constant 2.500000e+00 : f32
    %1367 = vector.broadcast %cst_421 : f32 to vector<8x256xf32>
    %1368 = arith.mulf %1366, %1367 : vector<8x256xf32>
    %1369 = arith.mulf %1338, %1334 : vector<8x256xf32>
    %cst_422 = arith.constant 1.000000e+00 : f32
    %1370 = vector.broadcast %cst_422 : f32 to vector<8x256xf32>
    %1371 = arith.subf %1370, %1368 : vector<8x256xf32>
    %1372 = arith.mulf %1371, %1364 : vector<8x256xf32>
    %1373 = arith.addf %1369, %1372 : vector<8x256xf32>
    %cst_423 = arith.constant 1.250000e+00 : f32
    %1374 = vector.broadcast %cst_423 : f32 to vector<8x256xf32>
    %1375 = arith.mulf %1336, %1374 : vector<8x256xf32>
    %1376 = arith.mulf %1345, %1343 : vector<8x256xf32>
    %cst_424 = arith.constant 1.000000e+00 : f32
    %1377 = vector.broadcast %cst_424 : f32 to vector<8x256xf32>
    %1378 = arith.subf %1377, %1375 : vector<8x256xf32>
    %1379 = arith.mulf %1378, %1373 : vector<8x256xf32>
    %1380 = arith.addf %1376, %1379 : vector<8x256xf32>
    %cst_425 = arith.constant 0.833333313 : f32
    %1381 = vector.broadcast %cst_425 : f32 to vector<8x256xf32>
    %1382 = arith.mulf %1306, %1381 : vector<8x256xf32>
    %1383 = arith.mulf %1352, %1350 : vector<8x256xf32>
    %cst_426 = arith.constant 1.000000e+00 : f32
    %1384 = vector.broadcast %cst_426 : f32 to vector<8x256xf32>
    %1385 = arith.subf %1384, %1382 : vector<8x256xf32>
    %1386 = arith.mulf %1385, %1380 : vector<8x256xf32>
    %1387 = arith.addf %1383, %1386 : vector<8x256xf32>
    %1388 = arith.truncf %1387 : vector<8x256xf32> to vector<8x256xbf16>
    %c224 = arith.constant 224 : index
    %c0_427 = arith.constant 0 : index
    %1389 = vector.load %arg5[%c224, %c0_427] : memref<432x256xbf16, #tpu.memory_space<vmem>>, vector<8x256xbf16>
    tpu.vector_store %arg5[%c224, %c0_427], %1388 {strides = array<i32>} : memref<432x256xbf16, #tpu.memory_space<vmem>>, vector<8x256xbf16>,
    %cst_428 = arith.constant 1.000000e+00 : f32
    %1390 = vector.broadcast %cst_428 : f32 to vector<8x256xf32>
    %1391 = arith.cmpf oge, %1209, %1390 : vector<8x256xf32>
    %1392 = arith.extui %1391 : vector<8x256xi1> to vector<8x256xi32>
    %1393 = arith.sitofp %1392 : vector<8x256xi32> to vector<8x256xf32>
    %1394 = arith.subf %1363, %1393 : vector<8x256xf32>
    %cst_429 = arith.constant 6.000000e-01 : f32
    %1395 = vector.broadcast %cst_429 : f32 to vector<8x256xf32>
    %1396 = arith.subf %1209, %1395 : vector<8x256xf32>
    %cst_430 = arith.constant 2.500000e+00 : f32
    %1397 = vector.broadcast %cst_430 : f32 to vector<8x256xf32>
    %1398 = arith.mulf %1396, %1397 : vector<8x256xf32>
    %1399 = arith.mulf %1368, %1364 : vector<8x256xf32>
    %cst_431 = arith.constant 1.000000e+00 : f32
    %1400 = vector.broadcast %cst_431 : f32 to vector<8x256xf32>
    %1401 = arith.subf %1400, %1398 : vector<8x256xf32>
    %1402 = arith.mulf %1401, %1394 : vector<8x256xf32>
    %1403 = arith.addf %1399, %1402 : vector<8x256xf32>
    %cst_432 = arith.constant 1.250000e+00 : f32
    %1404 = vector.broadcast %cst_432 : f32 to vector<8x256xf32>
    %1405 = arith.mulf %1366, %1404 : vector<8x256xf32>
    %1406 = arith.mulf %1375, %1373 : vector<8x256xf32>
    %cst_433 = arith.constant 1.000000e+00 : f32
    %1407 = vector.broadcast %cst_433 : f32 to vector<8x256xf32>
    %1408 = arith.subf %1407, %1405 : vector<8x256xf32>
    %1409 = arith.mulf %1408, %1403 : vector<8x256xf32>
    %1410 = arith.addf %1406, %1409 : vector<8x256xf32>
    %cst_434 = arith.constant 0.833333313 : f32
    %1411 = vector.broadcast %cst_434 : f32 to vector<8x256xf32>
    %1412 = arith.mulf %1336, %1411 : vector<8x256xf32>
    %1413 = arith.mulf %1382, %1380 : vector<8x256xf32>
    %cst_435 = arith.constant 1.000000e+00 : f32
    %1414 = vector.broadcast %cst_435 : f32 to vector<8x256xf32>
    %1415 = arith.subf %1414, %1412 : vector<8x256xf32>
    %1416 = arith.mulf %1415, %1410 : vector<8x256xf32>
    %1417 = arith.addf %1413, %1416 : vector<8x256xf32>
    %1418 = arith.truncf %1417 : vector<8x256xf32> to vector<8x256xbf16>
    %c272 = arith.constant 272 : index
    %c0_436 = arith.constant 0 : index
    %1419 = vector.load %arg5[%c272, %c0_436] : memref<432x256xbf16, #tpu.memory_space<vmem>>, vector<8x256xbf16>
    tpu.vector_store %arg5[%c272, %c0_436], %1418 {strides = array<i32>} : memref<432x256xbf16, #tpu.memory_space<vmem>>, vector<8x256xbf16>,
    %cst_437 = arith.constant 1.400000e+00 : f32
    %1420 = vector.broadcast %cst_437 : f32 to vector<8x256xf32>
    %1421 = arith.cmpf oge, %1209, %1420 : vector<8x256xf32>
    %1422 = arith.extui %1421 : vector<8x256xi1> to vector<8x256xi32>
    %1423 = arith.sitofp %1422 : vector<8x256xi32> to vector<8x256xf32>
    %1424 = arith.subf %1393, %1423 : vector<8x256xf32>
    %cst_438 = arith.constant 1.000000e+00 : f32
    %1425 = vector.broadcast %cst_438 : f32 to vector<8x256xf32>
    %1426 = arith.subf %1209, %1425 : vector<8x256xf32>
    %cst_439 = arith.constant 2.500000e+00 : f32
    %1427 = vector.broadcast %cst_439 : f32 to vector<8x256xf32>
    %1428 = arith.mulf %1426, %1427 : vector<8x256xf32>
    %1429 = arith.mulf %1398, %1394 : vector<8x256xf32>
    %cst_440 = arith.constant 1.000000e+00 : f32
    %1430 = vector.broadcast %cst_440 : f32 to vector<8x256xf32>
    %1431 = arith.subf %1430, %1428 : vector<8x256xf32>
    %1432 = arith.mulf %1431, %1424 : vector<8x256xf32>
    %1433 = arith.addf %1429, %1432 : vector<8x256xf32>
    %cst_441 = arith.constant 1.250000e+00 : f32
    %1434 = vector.broadcast %cst_441 : f32 to vector<8x256xf32>
    %1435 = arith.mulf %1396, %1434 : vector<8x256xf32>
    %1436 = arith.mulf %1405, %1403 : vector<8x256xf32>
    %cst_442 = arith.constant 1.000000e+00 : f32
    %1437 = vector.broadcast %cst_442 : f32 to vector<8x256xf32>
    %1438 = arith.subf %1437, %1435 : vector<8x256xf32>
    %1439 = arith.mulf %1438, %1433 : vector<8x256xf32>
    %1440 = arith.addf %1436, %1439 : vector<8x256xf32>
    %cst_443 = arith.constant 0.833333313 : f32
    %1441 = vector.broadcast %cst_443 : f32 to vector<8x256xf32>
    %1442 = arith.mulf %1366, %1441 : vector<8x256xf32>
    %1443 = arith.mulf %1412, %1410 : vector<8x256xf32>
    %cst_444 = arith.constant 1.000000e+00 : f32
    %1444 = vector.broadcast %cst_444 : f32 to vector<8x256xf32>
    %1445 = arith.subf %1444, %1442 : vector<8x256xf32>
    %1446 = arith.mulf %1445, %1440 : vector<8x256xf32>
    %1447 = arith.addf %1443, %1446 : vector<8x256xf32>
    %1448 = arith.truncf %1447 : vector<8x256xf32> to vector<8x256xbf16>
    %c320 = arith.constant 320 : index
    %c0_445 = arith.constant 0 : index
    %1449 = vector.load %arg5[%c320, %c0_445] : memref<432x256xbf16, #tpu.memory_space<vmem>>, vector<8x256xbf16>
    tpu.vector_store %arg5[%c320, %c0_445], %1448 {strides = array<i32>} : memref<432x256xbf16, #tpu.memory_space<vmem>>, vector<8x256xbf16>,
    %cst_446 = arith.constant 1.800000e+00 : f32
    %1450 = vector.broadcast %cst_446 : f32 to vector<8x256xf32>
    %1451 = arith.cmpf oge, %1209, %1450 : vector<8x256xf32>
    %1452 = arith.extui %1451 : vector<8x256xi1> to vector<8x256xi32>
    %1453 = arith.sitofp %1452 : vector<8x256xi32> to vector<8x256xf32>
    %1454 = arith.subf %1423, %1453 : vector<8x256xf32>
    %cst_447 = arith.constant 1.400000e+00 : f32
    %1455 = vector.broadcast %cst_447 : f32 to vector<8x256xf32>
    %1456 = arith.subf %1209, %1455 : vector<8x256xf32>
    %cst_448 = arith.constant 2.500000e+00 : f32
    %1457 = vector.broadcast %cst_448 : f32 to vector<8x256xf32>
    %1458 = arith.mulf %1456, %1457 : vector<8x256xf32>
    %1459 = arith.mulf %1428, %1424 : vector<8x256xf32>
    %cst_449 = arith.constant 1.000000e+00 : f32
    %1460 = vector.broadcast %cst_449 : f32 to vector<8x256xf32>
    %1461 = arith.subf %1460, %1458 : vector<8x256xf32>
    %1462 = arith.mulf %1461, %1454 : vector<8x256xf32>
    %1463 = arith.addf %1459, %1462 : vector<8x256xf32>
    %cst_450 = arith.constant 1.250000e+00 : f32
    %1464 = vector.broadcast %cst_450 : f32 to vector<8x256xf32>
    %1465 = arith.mulf %1426, %1464 : vector<8x256xf32>
    %1466 = arith.mulf %1435, %1433 : vector<8x256xf32>
    %cst_451 = arith.constant 1.000000e+00 : f32
    %1467 = vector.broadcast %cst_451 : f32 to vector<8x256xf32>
    %1468 = arith.subf %1467, %1465 : vector<8x256xf32>
    %1469 = arith.mulf %1468, %1463 : vector<8x256xf32>
    %1470 = arith.addf %1466, %1469 : vector<8x256xf32>
    %cst_452 = arith.constant 0.833333313 : f32
    %1471 = vector.broadcast %cst_452 : f32 to vector<8x256xf32>
    %1472 = arith.mulf %1396, %1471 : vector<8x256xf32>
    %1473 = arith.mulf %1442, %1440 : vector<8x256xf32>
    %cst_453 = arith.constant 1.000000e+00 : f32
    %1474 = vector.broadcast %cst_453 : f32 to vector<8x256xf32>
    %1475 = arith.subf %1474, %1472 : vector<8x256xf32>
    %1476 = arith.mulf %1475, %1470 : vector<8x256xf32>
    %1477 = arith.addf %1473, %1476 : vector<8x256xf32>
    %1478 = arith.truncf %1477 : vector<8x256xf32> to vector<8x256xbf16>
    %c368 = arith.constant 368 : index
    %c0_454 = arith.constant 0 : index
    %1479 = vector.load %arg5[%c368, %c0_454] : memref<432x256xbf16, #tpu.memory_space<vmem>>, vector<8x256xbf16>
    tpu.vector_store %arg5[%c368, %c0_454], %1478 {strides = array<i32>} : memref<432x256xbf16, #tpu.memory_space<vmem>>, vector<8x256xbf16>,
    %cst_455 = arith.constant 2.200000e+00 : f32
    %1480 = vector.broadcast %cst_455 : f32 to vector<8x256xf32>
    %1481 = arith.cmpf oge, %1209, %1480 : vector<8x256xf32>
    %1482 = arith.extui %1481 : vector<8x256xi1> to vector<8x256xi32>
    %1483 = arith.sitofp %1482 : vector<8x256xi32> to vector<8x256xf32>
    %1484 = arith.subf %1453, %1483 : vector<8x256xf32>
    %cst_456 = arith.constant 1.800000e+00 : f32
    %1485 = vector.broadcast %cst_456 : f32 to vector<8x256xf32>
    %1486 = arith.subf %1209, %1485 : vector<8x256xf32>
    %cst_457 = arith.constant 2.500000e+00 : f32
    %1487 = vector.broadcast %cst_457 : f32 to vector<8x256xf32>
    %1488 = arith.mulf %1486, %1487 : vector<8x256xf32>
    %1489 = arith.mulf %1458, %1454 : vector<8x256xf32>
    %cst_458 = arith.constant 1.000000e+00 : f32
    %1490 = vector.broadcast %cst_458 : f32 to vector<8x256xf32>
    %1491 = arith.subf %1490, %1488 : vector<8x256xf32>
    %1492 = arith.mulf %1491, %1484 : vector<8x256xf32>
    %1493 = arith.addf %1489, %1492 : vector<8x256xf32>
    %cst_459 = arith.constant 1.250000e+00 : f32
    %1494 = vector.broadcast %cst_459 : f32 to vector<8x256xf32>
    %1495 = arith.mulf %1456, %1494 : vector<8x256xf32>
    %1496 = arith.mulf %1465, %1463 : vector<8x256xf32>
    %cst_460 = arith.constant 1.000000e+00 : f32
    %1497 = vector.broadcast %cst_460 : f32 to vector<8x256xf32>
    %1498 = arith.subf %1497, %1495 : vector<8x256xf32>
    %1499 = arith.mulf %1498, %1493 : vector<8x256xf32>
    %1500 = arith.addf %1496, %1499 : vector<8x256xf32>
    %cst_461 = arith.constant 0.833333313 : f32
    %1501 = vector.broadcast %cst_461 : f32 to vector<8x256xf32>
    %1502 = arith.mulf %1426, %1501 : vector<8x256xf32>
    %1503 = arith.mulf %1472, %1470 : vector<8x256xf32>
    %cst_462 = arith.constant 1.000000e+00 : f32
    %1504 = vector.broadcast %cst_462 : f32 to vector<8x256xf32>
    %1505 = arith.subf %1504, %1502 : vector<8x256xf32>
    %1506 = arith.mulf %1505, %1500 : vector<8x256xf32>
    %1507 = arith.addf %1503, %1506 : vector<8x256xf32>
    %1508 = arith.truncf %1507 : vector<8x256xf32> to vector<8x256xbf16>
    %c416 = arith.constant 416 : index
    %c0_463 = arith.constant 0 : index
    %1509 = vector.load %arg5[%c416, %c0_463] : memref<432x256xbf16, #tpu.memory_space<vmem>>, vector<8x256xbf16>
    tpu.vector_store %arg5[%c416, %c0_463], %1508 {strides = array<i32>} : memref<432x256xbf16, #tpu.memory_space<vmem>>, vector<8x256xbf16>,
    %c0_464 = arith.constant 0 : index
    %c40 = arith.constant 40 : index
    %c0_465 = arith.constant 0 : index
    %1510 = vector.load %arg2[%c0_464, %c40, %c0_465] : memref<1x48x256xf32, #tpu.memory_space<vmem>>, vector<1x8x256xf32>
    %1511 = vector.shape_cast %1510 : vector<1x8x256xf32> to vector<8x256xf32>
    %1512 = arith.negf %1511 : vector<8x256xf32>
    %1513 = math.exp %1512 : vector<8x256xf32>
    %cst_466 = arith.constant 1.000000e+00 : f32
    %1514 = vector.broadcast %cst_466 : f32 to vector<8x256xf32>
    %1515 = arith.addf %1514, %1513 : vector<8x256xf32>
    %1516 = arith.divf %1514, %1515 : vector<8x256xf32>
    %1517 = arith.mulf %1511, %1516 : vector<8x256xf32>
    %1518 = arith.truncf %1517 : vector<8x256xf32> to vector<8x256xbf16>
    %c40_467 = arith.constant 40 : index
    %c0_468 = arith.constant 0 : index
    %1519 = vector.load %arg5[%c40_467, %c0_468] : memref<432x256xbf16, #tpu.memory_space<vmem>>, vector<8x256xbf16>
    tpu.vector_store %arg5[%c40_467, %c0_468], %1518 {strides = array<i32>} : memref<432x256xbf16, #tpu.memory_space<vmem>>, vector<8x256xbf16>,
    %cst_469 = arith.constant -2.200000e+00 : f32
    %1520 = vector.broadcast %cst_469 : f32 to vector<8x256xf32>
    %1521 = arith.cmpf oge, %1511, %1520 : vector<8x256xf32>
    %1522 = arith.extui %1521 : vector<8x256xi1> to vector<8x256xi32>
    %1523 = arith.sitofp %1522 : vector<8x256xi32> to vector<8x256xf32>
    %cst_470 = arith.constant -1.800000e+00 : f32
    %1524 = vector.broadcast %cst_470 : f32 to vector<8x256xf32>
    %1525 = arith.cmpf oge, %1511, %1524 : vector<8x256xf32>
    %1526 = arith.extui %1525 : vector<8x256xi1> to vector<8x256xi32>
    %1527 = arith.sitofp %1526 : vector<8x256xi32> to vector<8x256xf32>
    %1528 = arith.subf %1523, %1527 : vector<8x256xf32>
    %cst_471 = arith.constant -2.200000e+00 : f32
    %1529 = vector.broadcast %cst_471 : f32 to vector<8x256xf32>
    %1530 = arith.subf %1511, %1529 : vector<8x256xf32>
    %cst_472 = arith.constant -1.400000e+00 : f32
    %1531 = vector.broadcast %cst_472 : f32 to vector<8x256xf32>
    %1532 = arith.cmpf oge, %1511, %1531 : vector<8x256xf32>
    %1533 = arith.extui %1532 : vector<8x256xi1> to vector<8x256xi32>
    %1534 = arith.sitofp %1533 : vector<8x256xi32> to vector<8x256xf32>
    %1535 = arith.subf %1527, %1534 : vector<8x256xf32>
    %cst_473 = arith.constant -1.800000e+00 : f32
    %1536 = vector.broadcast %cst_473 : f32 to vector<8x256xf32>
    %1537 = arith.subf %1511, %1536 : vector<8x256xf32>
    %cst_474 = arith.constant 2.500000e+00 : f32
    %1538 = vector.broadcast %cst_474 : f32 to vector<8x256xf32>
    %1539 = arith.mulf %1530, %1538 : vector<8x256xf32>
    %cst_475 = arith.constant 2.500000e+00 : f32
    %1540 = vector.broadcast %cst_475 : f32 to vector<8x256xf32>
    %1541 = arith.mulf %1537, %1540 : vector<8x256xf32>
    %1542 = arith.mulf %1539, %1528 : vector<8x256xf32>
    %cst_476 = arith.constant 1.000000e+00 : f32
    %1543 = vector.broadcast %cst_476 : f32 to vector<8x256xf32>
    %1544 = arith.subf %1543, %1541 : vector<8x256xf32>
    %1545 = arith.mulf %1544, %1535 : vector<8x256xf32>
    %1546 = arith.addf %1542, %1545 : vector<8x256xf32>
    %cst_477 = arith.constant -1.000000e+00 : f32
    %1547 = vector.broadcast %cst_477 : f32 to vector<8x256xf32>
    %1548 = arith.cmpf oge, %1511, %1547 : vector<8x256xf32>
    %1549 = arith.extui %1548 : vector<8x256xi1> to vector<8x256xi32>
    %1550 = arith.sitofp %1549 : vector<8x256xi32> to vector<8x256xf32>
    %1551 = arith.subf %1534, %1550 : vector<8x256xf32>
    %cst_478 = arith.constant -1.400000e+00 : f32
    %1552 = vector.broadcast %cst_478 : f32 to vector<8x256xf32>
    %1553 = arith.subf %1511, %1552 : vector<8x256xf32>
    %cst_479 = arith.constant 2.500000e+00 : f32
    %1554 = vector.broadcast %cst_479 : f32 to vector<8x256xf32>
    %1555 = arith.mulf %1553, %1554 : vector<8x256xf32>
    %1556 = arith.mulf %1541, %1535 : vector<8x256xf32>
    %cst_480 = arith.constant 1.000000e+00 : f32
    %1557 = vector.broadcast %cst_480 : f32 to vector<8x256xf32>
    %1558 = arith.subf %1557, %1555 : vector<8x256xf32>
    %1559 = arith.mulf %1558, %1551 : vector<8x256xf32>
    %1560 = arith.addf %1556, %1559 : vector<8x256xf32>
    %cst_481 = arith.constant 1.250000e+00 : f32
    %1561 = vector.broadcast %cst_481 : f32 to vector<8x256xf32>
    %1562 = arith.mulf %1530, %1561 : vector<8x256xf32>
    %cst_482 = arith.constant 1.250000e+00 : f32
    %1563 = vector.broadcast %cst_482 : f32 to vector<8x256xf32>
    %1564 = arith.mulf %1537, %1563 : vector<8x256xf32>
    %1565 = arith.mulf %1562, %1546 : vector<8x256xf32>
    %cst_483 = arith.constant 1.000000e+00 : f32
    %1566 = vector.broadcast %cst_483 : f32 to vector<8x256xf32>
    %1567 = arith.subf %1566, %1564 : vector<8x256xf32>
    %1568 = arith.mulf %1567, %1560 : vector<8x256xf32>
    %1569 = arith.addf %1565, %1568 : vector<8x256xf32>
    %cst_484 = arith.constant -6.000000e-01 : f32
    %1570 = vector.broadcast %cst_484 : f32 to vector<8x256xf32>
    %1571 = arith.cmpf oge, %1511, %1570 : vector<8x256xf32>
    %1572 = arith.extui %1571 : vector<8x256xi1> to vector<8x256xi32>
    %1573 = arith.sitofp %1572 : vector<8x256xi32> to vector<8x256xf32>
    %1574 = arith.subf %1550, %1573 : vector<8x256xf32>
    %cst_485 = arith.constant -1.000000e+00 : f32
    %1575 = vector.broadcast %cst_485 : f32 to vector<8x256xf32>
    %1576 = arith.subf %1511, %1575 : vector<8x256xf32>
    %cst_486 = arith.constant 2.500000e+00 : f32
    %1577 = vector.broadcast %cst_486 : f32 to vector<8x256xf32>
    %1578 = arith.mulf %1576, %1577 : vector<8x256xf32>
    %1579 = arith.mulf %1555, %1551 : vector<8x256xf32>
    %cst_487 = arith.constant 1.000000e+00 : f32
    %1580 = vector.broadcast %cst_487 : f32 to vector<8x256xf32>
    %1581 = arith.subf %1580, %1578 : vector<8x256xf32>
    %1582 = arith.mulf %1581, %1574 : vector<8x256xf32>
    %1583 = arith.addf %1579, %1582 : vector<8x256xf32>
    %cst_488 = arith.constant 1.250000e+00 : f32
    %1584 = vector.broadcast %cst_488 : f32 to vector<8x256xf32>
    %1585 = arith.mulf %1553, %1584 : vector<8x256xf32>
    %1586 = arith.mulf %1564, %1560 : vector<8x256xf32>
    %cst_489 = arith.constant 1.000000e+00 : f32
    %1587 = vector.broadcast %cst_489 : f32 to vector<8x256xf32>
    %1588 = arith.subf %1587, %1585 : vector<8x256xf32>
    %1589 = arith.mulf %1588, %1583 : vector<8x256xf32>
    %1590 = arith.addf %1586, %1589 : vector<8x256xf32>
    %cst_490 = arith.constant 0.833333313 : f32
    %1591 = vector.broadcast %cst_490 : f32 to vector<8x256xf32>
    %1592 = arith.mulf %1530, %1591 : vector<8x256xf32>
    %cst_491 = arith.constant 0.833333313 : f32
    %1593 = vector.broadcast %cst_491 : f32 to vector<8x256xf32>
    %1594 = arith.mulf %1537, %1593 : vector<8x256xf32>
    %1595 = arith.mulf %1592, %1569 : vector<8x256xf32>
    %cst_492 = arith.constant 1.000000e+00 : f32
    %1596 = vector.broadcast %cst_492 : f32 to vector<8x256xf32>
    %1597 = arith.subf %1596, %1594 : vector<8x256xf32>
    %1598 = arith.mulf %1597, %1590 : vector<8x256xf32>
    %1599 = arith.addf %1595, %1598 : vector<8x256xf32>
    %1600 = arith.truncf %1599 : vector<8x256xf32> to vector<8x256xbf16>
    %c88 = arith.constant 88 : index
    %c0_493 = arith.constant 0 : index
    %1601 = vector.load %arg5[%c88, %c0_493] : memref<432x256xbf16, #tpu.memory_space<vmem>>, vector<8x256xbf16>
    tpu.vector_store %arg5[%c88, %c0_493], %1600 {strides = array<i32>} : memref<432x256xbf16, #tpu.memory_space<vmem>>, vector<8x256xbf16>,
    %cst_494 = arith.constant -2.000000e-01 : f32
    %1602 = vector.broadcast %cst_494 : f32 to vector<8x256xf32>
    %1603 = arith.cmpf oge, %1511, %1602 : vector<8x256xf32>
    %1604 = arith.extui %1603 : vector<8x256xi1> to vector<8x256xi32>
    %1605 = arith.sitofp %1604 : vector<8x256xi32> to vector<8x256xf32>
    %1606 = arith.subf %1573, %1605 : vector<8x256xf32>
    %cst_495 = arith.constant -6.000000e-01 : f32
    %1607 = vector.broadcast %cst_495 : f32 to vector<8x256xf32>
    %1608 = arith.subf %1511, %1607 : vector<8x256xf32>
    %cst_496 = arith.constant 2.500000e+00 : f32
    %1609 = vector.broadcast %cst_496 : f32 to vector<8x256xf32>
    %1610 = arith.mulf %1608, %1609 : vector<8x256xf32>
    %1611 = arith.mulf %1578, %1574 : vector<8x256xf32>
    %cst_497 = arith.constant 1.000000e+00 : f32
    %1612 = vector.broadcast %cst_497 : f32 to vector<8x256xf32>
    %1613 = arith.subf %1612, %1610 : vector<8x256xf32>
    %1614 = arith.mulf %1613, %1606 : vector<8x256xf32>
    %1615 = arith.addf %1611, %1614 : vector<8x256xf32>
    %cst_498 = arith.constant 1.250000e+00 : f32
    %1616 = vector.broadcast %cst_498 : f32 to vector<8x256xf32>
    %1617 = arith.mulf %1576, %1616 : vector<8x256xf32>
    %1618 = arith.mulf %1585, %1583 : vector<8x256xf32>
    %cst_499 = arith.constant 1.000000e+00 : f32
    %1619 = vector.broadcast %cst_499 : f32 to vector<8x256xf32>
    %1620 = arith.subf %1619, %1617 : vector<8x256xf32>
    %1621 = arith.mulf %1620, %1615 : vector<8x256xf32>
    %1622 = arith.addf %1618, %1621 : vector<8x256xf32>
    %cst_500 = arith.constant 0.833333313 : f32
    %1623 = vector.broadcast %cst_500 : f32 to vector<8x256xf32>
    %1624 = arith.mulf %1553, %1623 : vector<8x256xf32>
    %1625 = arith.mulf %1594, %1590 : vector<8x256xf32>
    %cst_501 = arith.constant 1.000000e+00 : f32
    %1626 = vector.broadcast %cst_501 : f32 to vector<8x256xf32>
    %1627 = arith.subf %1626, %1624 : vector<8x256xf32>
    %1628 = arith.mulf %1627, %1622 : vector<8x256xf32>
    %1629 = arith.addf %1625, %1628 : vector<8x256xf32>
    %1630 = arith.truncf %1629 : vector<8x256xf32> to vector<8x256xbf16>
    %c136 = arith.constant 136 : index
    %c0_502 = arith.constant 0 : index
    %1631 = vector.load %arg5[%c136, %c0_502] : memref<432x256xbf16, #tpu.memory_space<vmem>>, vector<8x256xbf16>
    tpu.vector_store %arg5[%c136, %c0_502], %1630 {strides = array<i32>} : memref<432x256xbf16, #tpu.memory_space<vmem>>, vector<8x256xbf16>,
    %cst_503 = arith.constant 2.000000e-01 : f32
    %1632 = vector.broadcast %cst_503 : f32 to vector<8x256xf32>
    %1633 = arith.cmpf oge, %1511, %1632 : vector<8x256xf32>
    %1634 = arith.extui %1633 : vector<8x256xi1> to vector<8x256xi32>
    %1635 = arith.sitofp %1634 : vector<8x256xi32> to vector<8x256xf32>
    %1636 = arith.subf %1605, %1635 : vector<8x256xf32>
    %cst_504 = arith.constant -2.000000e-01 : f32
    %1637 = vector.broadcast %cst_504 : f32 to vector<8x256xf32>
    %1638 = arith.subf %1511, %1637 : vector<8x256xf32>
    %cst_505 = arith.constant 2.500000e+00 : f32
    %1639 = vector.broadcast %cst_505 : f32 to vector<8x256xf32>
    %1640 = arith.mulf %1638, %1639 : vector<8x256xf32>
    %1641 = arith.mulf %1610, %1606 : vector<8x256xf32>
    %cst_506 = arith.constant 1.000000e+00 : f32
    %1642 = vector.broadcast %cst_506 : f32 to vector<8x256xf32>
    %1643 = arith.subf %1642, %1640 : vector<8x256xf32>
    %1644 = arith.mulf %1643, %1636 : vector<8x256xf32>
    %1645 = arith.addf %1641, %1644 : vector<8x256xf32>
    %cst_507 = arith.constant 1.250000e+00 : f32
    %1646 = vector.broadcast %cst_507 : f32 to vector<8x256xf32>
    %1647 = arith.mulf %1608, %1646 : vector<8x256xf32>
    %1648 = arith.mulf %1617, %1615 : vector<8x256xf32>
    %cst_508 = arith.constant 1.000000e+00 : f32
    %1649 = vector.broadcast %cst_508 : f32 to vector<8x256xf32>
    %1650 = arith.subf %1649, %1647 : vector<8x256xf32>
    %1651 = arith.mulf %1650, %1645 : vector<8x256xf32>
    %1652 = arith.addf %1648, %1651 : vector<8x256xf32>
    %cst_509 = arith.constant 0.833333313 : f32
    %1653 = vector.broadcast %cst_509 : f32 to vector<8x256xf32>
    %1654 = arith.mulf %1576, %1653 : vector<8x256xf32>
    %1655 = arith.mulf %1624, %1622 : vector<8x256xf32>
    %cst_510 = arith.constant 1.000000e+00 : f32
    %1656 = vector.broadcast %cst_510 : f32 to vector<8x256xf32>
    %1657 = arith.subf %1656, %1654 : vector<8x256xf32>
    %1658 = arith.mulf %1657, %1652 : vector<8x256xf32>
    %1659 = arith.addf %1655, %1658 : vector<8x256xf32>
    %1660 = arith.truncf %1659 : vector<8x256xf32> to vector<8x256xbf16>
    %c184 = arith.constant 184 : index
    %c0_511 = arith.constant 0 : index
    %1661 = vector.load %arg5[%c184, %c0_511] : memref<432x256xbf16, #tpu.memory_space<vmem>>, vector<8x256xbf16>
    tpu.vector_store %arg5[%c184, %c0_511], %1660 {strides = array<i32>} : memref<432x256xbf16, #tpu.memory_space<vmem>>, vector<8x256xbf16>,
    %cst_512 = arith.constant 6.000000e-01 : f32
    %1662 = vector.broadcast %cst_512 : f32 to vector<8x256xf32>
    %1663 = arith.cmpf oge, %1511, %1662 : vector<8x256xf32>
    %1664 = arith.extui %1663 : vector<8x256xi1> to vector<8x256xi32>
    %1665 = arith.sitofp %1664 : vector<8x256xi32> to vector<8x256xf32>
    %1666 = arith.subf %1635, %1665 : vector<8x256xf32>
    %cst_513 = arith.constant 2.000000e-01 : f32
    %1667 = vector.broadcast %cst_513 : f32 to vector<8x256xf32>
    %1668 = arith.subf %1511, %1667 : vector<8x256xf32>
    %cst_514 = arith.constant 2.500000e+00 : f32
    %1669 = vector.broadcast %cst_514 : f32 to vector<8x256xf32>
    %1670 = arith.mulf %1668, %1669 : vector<8x256xf32>
    %1671 = arith.mulf %1640, %1636 : vector<8x256xf32>
    %cst_515 = arith.constant 1.000000e+00 : f32
    %1672 = vector.broadcast %cst_515 : f32 to vector<8x256xf32>
    %1673 = arith.subf %1672, %1670 : vector<8x256xf32>
    %1674 = arith.mulf %1673, %1666 : vector<8x256xf32>
    %1675 = arith.addf %1671, %1674 : vector<8x256xf32>
    %cst_516 = arith.constant 1.250000e+00 : f32
    %1676 = vector.broadcast %cst_516 : f32 to vector<8x256xf32>
    %1677 = arith.mulf %1638, %1676 : vector<8x256xf32>
    %1678 = arith.mulf %1647, %1645 : vector<8x256xf32>
    %cst_517 = arith.constant 1.000000e+00 : f32
    %1679 = vector.broadcast %cst_517 : f32 to vector<8x256xf32>
    %1680 = arith.subf %1679, %1677 : vector<8x256xf32>
    %1681 = arith.mulf %1680, %1675 : vector<8x256xf32>
    %1682 = arith.addf %1678, %1681 : vector<8x256xf32>
    %cst_518 = arith.constant 0.833333313 : f32
    %1683 = vector.broadcast %cst_518 : f32 to vector<8x256xf32>
    %1684 = arith.mulf %1608, %1683 : vector<8x256xf32>
    %1685 = arith.mulf %1654, %1652 : vector<8x256xf32>
    %cst_519 = arith.constant 1.000000e+00 : f32
    %1686 = vector.broadcast %cst_519 : f32 to vector<8x256xf32>
    %1687 = arith.subf %1686, %1684 : vector<8x256xf32>
    %1688 = arith.mulf %1687, %1682 : vector<8x256xf32>
    %1689 = arith.addf %1685, %1688 : vector<8x256xf32>
    %1690 = arith.truncf %1689 : vector<8x256xf32> to vector<8x256xbf16>
    %c232 = arith.constant 232 : index
    %c0_520 = arith.constant 0 : index
    %1691 = vector.load %arg5[%c232, %c0_520] : memref<432x256xbf16, #tpu.memory_space<vmem>>, vector<8x256xbf16>
    tpu.vector_store %arg5[%c232, %c0_520], %1690 {strides = array<i32>} : memref<432x256xbf16, #tpu.memory_space<vmem>>, vector<8x256xbf16>,
    %cst_521 = arith.constant 1.000000e+00 : f32
    %1692 = vector.broadcast %cst_521 : f32 to vector<8x256xf32>
    %1693 = arith.cmpf oge, %1511, %1692 : vector<8x256xf32>
    %1694 = arith.extui %1693 : vector<8x256xi1> to vector<8x256xi32>
    %1695 = arith.sitofp %1694 : vector<8x256xi32> to vector<8x256xf32>
    %1696 = arith.subf %1665, %1695 : vector<8x256xf32>
    %cst_522 = arith.constant 6.000000e-01 : f32
    %1697 = vector.broadcast %cst_522 : f32 to vector<8x256xf32>
    %1698 = arith.subf %1511, %1697 : vector<8x256xf32>
    %cst_523 = arith.constant 2.500000e+00 : f32
    %1699 = vector.broadcast %cst_523 : f32 to vector<8x256xf32>
    %1700 = arith.mulf %1698, %1699 : vector<8x256xf32>
    %1701 = arith.mulf %1670, %1666 : vector<8x256xf32>
    %cst_524 = arith.constant 1.000000e+00 : f32
    %1702 = vector.broadcast %cst_524 : f32 to vector<8x256xf32>
    %1703 = arith.subf %1702, %1700 : vector<8x256xf32>
    %1704 = arith.mulf %1703, %1696 : vector<8x256xf32>
    %1705 = arith.addf %1701, %1704 : vector<8x256xf32>
    %cst_525 = arith.constant 1.250000e+00 : f32
    %1706 = vector.broadcast %cst_525 : f32 to vector<8x256xf32>
    %1707 = arith.mulf %1668, %1706 : vector<8x256xf32>
    %1708 = arith.mulf %1677, %1675 : vector<8x256xf32>
    %cst_526 = arith.constant 1.000000e+00 : f32
    %1709 = vector.broadcast %cst_526 : f32 to vector<8x256xf32>
    %1710 = arith.subf %1709, %1707 : vector<8x256xf32>
    %1711 = arith.mulf %1710, %1705 : vector<8x256xf32>
    %1712 = arith.addf %1708, %1711 : vector<8x256xf32>
    %cst_527 = arith.constant 0.833333313 : f32
    %1713 = vector.broadcast %cst_527 : f32 to vector<8x256xf32>
    %1714 = arith.mulf %1638, %1713 : vector<8x256xf32>
    %1715 = arith.mulf %1684, %1682 : vector<8x256xf32>
    %cst_528 = arith.constant 1.000000e+00 : f32
    %1716 = vector.broadcast %cst_528 : f32 to vector<8x256xf32>
    %1717 = arith.subf %1716, %1714 : vector<8x256xf32>
    %1718 = arith.mulf %1717, %1712 : vector<8x256xf32>
    %1719 = arith.addf %1715, %1718 : vector<8x256xf32>
    %1720 = arith.truncf %1719 : vector<8x256xf32> to vector<8x256xbf16>
    %c280 = arith.constant 280 : index
    %c0_529 = arith.constant 0 : index
    %1721 = vector.load %arg5[%c280, %c0_529] : memref<432x256xbf16, #tpu.memory_space<vmem>>, vector<8x256xbf16>
    tpu.vector_store %arg5[%c280, %c0_529], %1720 {strides = array<i32>} : memref<432x256xbf16, #tpu.memory_space<vmem>>, vector<8x256xbf16>,
    %cst_530 = arith.constant 1.400000e+00 : f32
    %1722 = vector.broadcast %cst_530 : f32 to vector<8x256xf32>
    %1723 = arith.cmpf oge, %1511, %1722 : vector<8x256xf32>
    %1724 = arith.extui %1723 : vector<8x256xi1> to vector<8x256xi32>
    %1725 = arith.sitofp %1724 : vector<8x256xi32> to vector<8x256xf32>
    %1726 = arith.subf %1695, %1725 : vector<8x256xf32>
    %cst_531 = arith.constant 1.000000e+00 : f32
    %1727 = vector.broadcast %cst_531 : f32 to vector<8x256xf32>
    %1728 = arith.subf %1511, %1727 : vector<8x256xf32>
    %cst_532 = arith.constant 2.500000e+00 : f32
    %1729 = vector.broadcast %cst_532 : f32 to vector<8x256xf32>
    %1730 = arith.mulf %1728, %1729 : vector<8x256xf32>
    %1731 = arith.mulf %1700, %1696 : vector<8x256xf32>
    %cst_533 = arith.constant 1.000000e+00 : f32
    %1732 = vector.broadcast %cst_533 : f32 to vector<8x256xf32>
    %1733 = arith.subf %1732, %1730 : vector<8x256xf32>
    %1734 = arith.mulf %1733, %1726 : vector<8x256xf32>
    %1735 = arith.addf %1731, %1734 : vector<8x256xf32>
    %cst_534 = arith.constant 1.250000e+00 : f32
    %1736 = vector.broadcast %cst_534 : f32 to vector<8x256xf32>
    %1737 = arith.mulf %1698, %1736 : vector<8x256xf32>
    %1738 = arith.mulf %1707, %1705 : vector<8x256xf32>
    %cst_535 = arith.constant 1.000000e+00 : f32
    %1739 = vector.broadcast %cst_535 : f32 to vector<8x256xf32>
    %1740 = arith.subf %1739, %1737 : vector<8x256xf32>
    %1741 = arith.mulf %1740, %1735 : vector<8x256xf32>
    %1742 = arith.addf %1738, %1741 : vector<8x256xf32>
    %cst_536 = arith.constant 0.833333313 : f32
    %1743 = vector.broadcast %cst_536 : f32 to vector<8x256xf32>
    %1744 = arith.mulf %1668, %1743 : vector<8x256xf32>
    %1745 = arith.mulf %1714, %1712 : vector<8x256xf32>
    %cst_537 = arith.constant 1.000000e+00 : f32
    %1746 = vector.broadcast %cst_537 : f32 to vector<8x256xf32>
    %1747 = arith.subf %1746, %1744 : vector<8x256xf32>
    %1748 = arith.mulf %1747, %1742 : vector<8x256xf32>
    %1749 = arith.addf %1745, %1748 : vector<8x256xf32>
    %1750 = arith.truncf %1749 : vector<8x256xf32> to vector<8x256xbf16>
    %c328 = arith.constant 328 : index
    %c0_538 = arith.constant 0 : index
    %1751 = vector.load %arg5[%c328, %c0_538] : memref<432x256xbf16, #tpu.memory_space<vmem>>, vector<8x256xbf16>
    tpu.vector_store %arg5[%c328, %c0_538], %1750 {strides = array<i32>} : memref<432x256xbf16, #tpu.memory_space<vmem>>, vector<8x256xbf16>,
    %cst_539 = arith.constant 1.800000e+00 : f32
    %1752 = vector.broadcast %cst_539 : f32 to vector<8x256xf32>
    %1753 = arith.cmpf oge, %1511, %1752 : vector<8x256xf32>
    %1754 = arith.extui %1753 : vector<8x256xi1> to vector<8x256xi32>
    %1755 = arith.sitofp %1754 : vector<8x256xi32> to vector<8x256xf32>
    %1756 = arith.subf %1725, %1755 : vector<8x256xf32>
    %cst_540 = arith.constant 1.400000e+00 : f32
    %1757 = vector.broadcast %cst_540 : f32 to vector<8x256xf32>
    %1758 = arith.subf %1511, %1757 : vector<8x256xf32>
    %cst_541 = arith.constant 2.500000e+00 : f32
    %1759 = vector.broadcast %cst_541 : f32 to vector<8x256xf32>
    %1760 = arith.mulf %1758, %1759 : vector<8x256xf32>
    %1761 = arith.mulf %1730, %1726 : vector<8x256xf32>
    %cst_542 = arith.constant 1.000000e+00 : f32
    %1762 = vector.broadcast %cst_542 : f32 to vector<8x256xf32>
    %1763 = arith.subf %1762, %1760 : vector<8x256xf32>
    %1764 = arith.mulf %1763, %1756 : vector<8x256xf32>
    %1765 = arith.addf %1761, %1764 : vector<8x256xf32>
    %cst_543 = arith.constant 1.250000e+00 : f32
    %1766 = vector.broadcast %cst_543 : f32 to vector<8x256xf32>
    %1767 = arith.mulf %1728, %1766 : vector<8x256xf32>
    %1768 = arith.mulf %1737, %1735 : vector<8x256xf32>
    %cst_544 = arith.constant 1.000000e+00 : f32
    %1769 = vector.broadcast %cst_544 : f32 to vector<8x256xf32>
    %1770 = arith.subf %1769, %1767 : vector<8x256xf32>
    %1771 = arith.mulf %1770, %1765 : vector<8x256xf32>
    %1772 = arith.addf %1768, %1771 : vector<8x256xf32>
    %cst_545 = arith.constant 0.833333313 : f32
    %1773 = vector.broadcast %cst_545 : f32 to vector<8x256xf32>
    %1774 = arith.mulf %1698, %1773 : vector<8x256xf32>
    %1775 = arith.mulf %1744, %1742 : vector<8x256xf32>
    %cst_546 = arith.constant 1.000000e+00 : f32
    %1776 = vector.broadcast %cst_546 : f32 to vector<8x256xf32>
    %1777 = arith.subf %1776, %1774 : vector<8x256xf32>
    %1778 = arith.mulf %1777, %1772 : vector<8x256xf32>
    %1779 = arith.addf %1775, %1778 : vector<8x256xf32>
    %1780 = arith.truncf %1779 : vector<8x256xf32> to vector<8x256xbf16>
    %c376 = arith.constant 376 : index
    %c0_547 = arith.constant 0 : index
    %1781 = vector.load %arg5[%c376, %c0_547] : memref<432x256xbf16, #tpu.memory_space<vmem>>, vector<8x256xbf16>
    tpu.vector_store %arg5[%c376, %c0_547], %1780 {strides = array<i32>} : memref<432x256xbf16, #tpu.memory_space<vmem>>, vector<8x256xbf16>,
    %cst_548 = arith.constant 2.200000e+00 : f32
    %1782 = vector.broadcast %cst_548 : f32 to vector<8x256xf32>
    %1783 = arith.cmpf oge, %1511, %1782 : vector<8x256xf32>
    %1784 = arith.extui %1783 : vector<8x256xi1> to vector<8x256xi32>
    %1785 = arith.sitofp %1784 : vector<8x256xi32> to vector<8x256xf32>
    %1786 = arith.subf %1755, %1785 : vector<8x256xf32>
    %cst_549 = arith.constant 1.800000e+00 : f32
    %1787 = vector.broadcast %cst_549 : f32 to vector<8x256xf32>
    %1788 = arith.subf %1511, %1787 : vector<8x256xf32>
    %cst_550 = arith.constant 2.500000e+00 : f32
    %1789 = vector.broadcast %cst_550 : f32 to vector<8x256xf32>
    %1790 = arith.mulf %1788, %1789 : vector<8x256xf32>
    %1791 = arith.mulf %1760, %1756 : vector<8x256xf32>
    %cst_551 = arith.constant 1.000000e+00 : f32
    %1792 = vector.broadcast %cst_551 : f32 to vector<8x256xf32>
    %1793 = arith.subf %1792, %1790 : vector<8x256xf32>
    %1794 = arith.mulf %1793, %1786 : vector<8x256xf32>
    %1795 = arith.addf %1791, %1794 : vector<8x256xf32>
    %cst_552 = arith.constant 1.250000e+00 : f32
    %1796 = vector.broadcast %cst_552 : f32 to vector<8x256xf32>
    %1797 = arith.mulf %1758, %1796 : vector<8x256xf32>
    %1798 = arith.mulf %1767, %1765 : vector<8x256xf32>
    %cst_553 = arith.constant 1.000000e+00 : f32
    %1799 = vector.broadcast %cst_553 : f32 to vector<8x256xf32>
    %1800 = arith.subf %1799, %1797 : vector<8x256xf32>
    %1801 = arith.mulf %1800, %1795 : vector<8x256xf32>
    %1802 = arith.addf %1798, %1801 : vector<8x256xf32>
    %cst_554 = arith.constant 0.833333313 : f32
    %1803 = vector.broadcast %cst_554 : f32 to vector<8x256xf32>
    %1804 = arith.mulf %1728, %1803 : vector<8x256xf32>
    %1805 = arith.mulf %1774, %1772 : vector<8x256xf32>
    %cst_555 = arith.constant 1.000000e+00 : f32
    %1806 = vector.broadcast %cst_555 : f32 to vector<8x256xf32>
    %1807 = arith.subf %1806, %1804 : vector<8x256xf32>
    %1808 = arith.mulf %1807, %1802 : vector<8x256xf32>
    %1809 = arith.addf %1805, %1808 : vector<8x256xf32>
    %1810 = arith.truncf %1809 : vector<8x256xf32> to vector<8x256xbf16>
    %c424 = arith.constant 424 : index
    %c0_556 = arith.constant 0 : index
    %1811 = vector.load %arg5[%c424, %c0_556] : memref<432x256xbf16, #tpu.memory_space<vmem>>, vector<8x256xbf16>
    tpu.vector_store %arg5[%c424, %c0_556], %1810 {strides = array<i32>} : memref<432x256xbf16, #tpu.memory_space<vmem>>, vector<8x256xbf16>,
    %c0_557 = arith.constant 0 : index
    %c0_558 = arith.constant 0 : index
    %1812 = vector.load %arg3[%c0_557, %c0_558] : memref<8x432xbf16, #tpu.memory_space<vmem>>, vector<8x432xbf16>
    %c0_559 = arith.constant 0 : index
    %c0_560 = arith.constant 0 : index
    %1813 = vector.load %arg5[%c0_559, %c0_560] : memref<432x256xbf16, #tpu.memory_space<vmem>>, vector<432x256xbf16>
    %cst_561 = arith.constant dense<0.000000e+00> : vector<8x256xf32>
    %1814 = tpu.matmul %1812, %1813, %cst_561 {dimension_numbers = #tpu.dot_dimension_numbers<[1], [0], [0], [1], [0, 0, 1, 1], [], []>} : vector<8x432xbf16>, vector<432x256xbf16>, vector<8x256xf32> -> vector<8x256xf32>
    %c0_562 = arith.constant 0 : index
    %c0_563 = arith.constant 0 : index
    %c0_564 = arith.constant 0 : index
    %1815 = vector.load %arg4[%c0_562, %c0_563, %c0_564] : memref<1x8x256xf32, #tpu.memory_space<vmem>>, vector<1x8x256xf32>
    %1816 = vector.shape_cast %1815 : vector<1x8x256xf32> to vector<8x256xf32>
    %1817 = vector.shape_cast %1814 : vector<8x256xf32> to vector<1x8x256xf32>
    tpu.vector_store %arg4[%c0_562, %c0_563, %c0_564], %1817 {strides = array<i32>} : memref<1x8x256xf32, #tpu.memory_space<vmem>>, vector<1x8x256xf32>,
    return
  }
  func.func @transform_0(%arg0: i32, %arg1: i32) -> (i32, i32, i32) {
    %c0_i32 = arith.constant 0 : i32
    %c0_i32_0 = arith.constant 0 : i32
    return %arg0, %c0_i32, %arg1 : i32, i32, i32
  }
  func.func @transform_1(%arg0: i32, %arg1: i32) -> (i32, i32) {
    %c0_i32 = arith.constant 0 : i32
    %c0_i32_0 = arith.constant 0 : i32
    %c0_i32_1 = arith.constant 0 : i32
    return %c0_i32, %c0_i32_0 : i32, i32
  }
  func.func @transform_2(%arg0: i32, %arg1: i32) -> (i32, i32, i32) {
    %c0_i32 = arith.constant 0 : i32
    %c0_i32_0 = arith.constant 0 : i32
    return %arg0, %c0_i32, %arg1 : i32, i32, i32
  }
}

</mosaic_0001>

<llo_original>
// kernel: conv_kan_forward.1
$region0: #{conv_kan_forward.1}
  #allocation0 [shape = 'u32[]', space=smem, size = 0x4, offset = 0x4, fixed_abs, tag = 'smem constant byte address 0x4 - core index']
  #allocation1 [shape = 'u32[144,128]{1,0:T(1,128)}', space=vmem, size = 0x12000, scoped, tag = 'internal scratch']
  #allocation2 [shape = 'bf16[432,256]{1,0:T(16,128)(2,1)}', space=vmem, size = 0x36000, scoped, tag = 'scratch operand']
  %s0 = inlined_call_operand.vmem [shape: f32[2,48,256], index: 0, kind: input, shape index: {}]
  %s1 = inlined_call_operand.vmem [shape: bf16[8,432], index: 1, kind: input, shape index: {}]
  %s2 = inlined_call_operand.vmem [shape: f32[2,8,256], index: 2, kind: output, shape index: {}]
  %s3 = sld [smem:[#allocation0]]
  $region41: #{conv_kan_forward.1} parent=0
    _
  %s5 = ssub.s32 1, %s3
  %s6 = scalar_select 0, %s5, %s3
  loop: start=0, step=1, limit=4
  $region2: #{conv_kan_forward.1} parent=0 // loop_pre_header
    _
  $region3: #{conv_kan_forward.1} parent=0 // loop_header
    %s8 = sphi 0, %s12
    %p9 = scmp.ge.s32.totalorder %s8, 4
    %s15 = sphi 0, %s27
    %s16 = sphi 0, %s23
    %s17 = sphi 0, %s15
    %s18 = sphi 0, %s16
    %s19 = sphi 0, %s17
    %s20 = sphi 0, %s18
    %s32 = sphi 0, %s34
    %s35 = sphi 0, %s32
    %s36 = sphi 0, %s35
    %s52 = sphi 0, %s36
    %s56 = sphi 0, %s56
    %s58 = sphi 0, %s56
    %s59 = sphi 0, %s58
    %s73 = sphi 0, %s59
    %s81 = sphi 0, %s83
    %s84 = sphi 0, %s81
    %s85 = sphi 0, %s84
    %s101 = sphi 0, %s85
  $region4: #{conv_kan_forward.1} parent=0 // loop_header_branch
    %11 = sbr.rel (%p9) target = $region8
  $region5: #{conv_kan_forward.1} parent=0 // loop_body
    %s13 = ssub.s32 %s8, 1
    %s14 = ssub.s32 %s8, 2
    %s21 = sadd.s32 1, %s16
    %p22 = scmp.ge.s32.totalorder %s21, 1
    %s23 = scalar_select %p22, 0, %s21
    %s24 = sadd.s32 1, %s15
    %s25 = scalar_select %p22, %s24, %s15
    %p26 = scmp.ge.s32.totalorder %s25, 2
    %s27 = scalar_select %p26, 0, %s25
    %s28 = ssub.s32 %s15, %s27
    %s29 = ssub.s32 %s16, %s23
    %s30 = sor.u32 %s28, %s29
    %p31 = scmp.eq.s32.totalorder %s30, 0
    %s33 = sadd.s32 %s32, 1
    %s34 = scalar_select %p31, %s32, %s33
    %p37 = pneg %p31
    %p38 = scmp.eq.s32.totalorder %s8, 1
    %p39 = por %p37, %p38
    %p40 = scmp.ne.s32.totalorder %s32, %s35
    %p41 = scmp.eq.s32.totalorder %s8, 0
    %p42 = por %p40, %p41
    %p43 = scmp.ne.s32.totalorder %s32, %s35
    %p44 = scmp.eq.s32.totalorder %s13, 1
    %p45 = por %p43, %p44
    %p46 = scmp.ne.s32.totalorder %s35, %s36
    %p47 = scmp.eq.s32.totalorder %s13, 0
    %p48 = por %p46, %p47
    %p49 = scmp.ne.s32.totalorder %s35, %s36
    %p50 = scmp.eq.s32.totalorder %s14, 1
    %p51 = por %p49, %p50
    %p53 = scmp.ne.s32.totalorder %s36, %s52
    %p54 = scmp.eq.s32.totalorder %s14, 0
    %p55 = por %p53, %p54
    %s57 = sadd.s32 %s56, 1
    %p60 = scmp.eq.s32.totalorder %s8, 1
    %p61 = scmp.ne.s32.totalorder %s56, %s58
    %p62 = scmp.eq.s32.totalorder %s8, 0
    %p63 = por %p61, %p62
    %p64 = scmp.ne.s32.totalorder %s56, %s58
    %p65 = scmp.eq.s32.totalorder %s13, 1
    %p66 = por %p64, %p65
    %p67 = scmp.ne.s32.totalorder %s58, %s59
    %p68 = scmp.eq.s32.totalorder %s13, 0
    %p69 = por %p67, %p68
    %p70 = scmp.ne.s32.totalorder %s58, %s59
    %p71 = scmp.eq.s32.totalorder %s14, 1
    %p72 = por %p70, %p71
    %p74 = scmp.ne.s32.totalorder %s59, %s73
    %p75 = scmp.eq.s32.totalorder %s14, 0
    %p76 = por %p74, %p75
    %s77 = ssub.s32 %s15, %s27
    %s78 = ssub.s32 %s16, %s23
    %s79 = sor.u32 %s77, %s78
    %p80 = scmp.eq.s32.totalorder %s79, 0
    %s82 = sadd.s32 %s81, 1
    %s83 = scalar_select %p80, %s81, %s82
    %p86 = pneg %p80
    %p87 = scmp.eq.s32.totalorder %s8, 1
    %p88 = por %p86, %p87
    %p89 = scmp.ne.s32.totalorder %s81, %s84
    %p90 = scmp.eq.s32.totalorder %s8, 0
    %p91 = por %p89, %p90
    %p92 = scmp.ne.s32.totalorder %s81, %s84
    %p93 = scmp.eq.s32.totalorder %s13, 1
    %p94 = por %p92, %p93
    %p95 = scmp.ne.s32.totalorder %s84, %s85
    %p96 = scmp.eq.s32.totalorder %s13, 0
    %p97 = por %p95, %p96
    %p98 = scmp.ne.s32.totalorder %s84, %s85
    %p99 = scmp.eq.s32.totalorder %s14, 1
    %p100 = por %p98, %p99
    %p102 = scmp.ne.s32.totalorder %s85, %s101
    %p103 = scmp.eq.s32.totalorder %s14, 0
    %p104 = por %p102, %p103
    %p105 = scmp.le.s32.totalorder 1, %s8
    %p106 = scmp.lt.s32.totalorder %s8, 3
    %p107 = pnand %p105, %p106
    %p108 = pneg %p107
    // Predicated region
    $region9: #{conv_kan_forward.1} parent=5 // pred_check
      _
    $region10: #{conv_kan_forward.1} parent=5 // pred_check_branch
      %110 = sbr.rel (%p107) target = $region12
    $region11: #{conv_kan_forward.1} parent=5 // pred_region
      %s111 = ssub.s32 %s8, 1
      // Predicated region
      $region13: #{conv_kan_forward.1} parent=11 // pred_check
        %p112 = pneg %p69
      $region14: #{conv_kan_forward.1} parent=11 // pred_check_branch
        %114 = sbr.rel (%p112) target = $region16
      $region15: #{conv_kan_forward.1} parent=11 // pred_region
        _
      $region16: #{conv_kan_forward.1} parent=11 // pred_fallthru
        _
    $region12: #{conv_kan_forward.1} parent=5 // pred_fallthru
      _
    %p115 = scmp.lt.s32.totalorder %s8, 2
    // Predicated region
    $region17: #{conv_kan_forward.1} parent=5 // pred_check
      %p116 = pneg %p115
    $region18: #{conv_kan_forward.1} parent=5 // pred_check_branch
      %118 = sbr.rel (%p116) target = $region20
    $region19: #{conv_kan_forward.1} parent=5 // pred_region
      // Predicated region
      $region21: #{conv_kan_forward.1} parent=19 // pred_check
        %p119 = pneg %p42
      $region22: #{conv_kan_forward.1} parent=19 // pred_check_branch
        %121 = sbr.rel (%p119) target = $region24
      $region23: #{conv_kan_forward.1} parent=19 // pred_region
        %s122 = smul.u32 2, %s16
        %p123 = scmp.lt.s32.totalorder %s15, 1
        %s124 = scalar_select %p123, %s15, 1
        %p125 = scmp.lt.s32.totalorder %s122, 1
        %s126 = scalar_select %p125, %s122, 1
        %s127 = smul.addr %s124, 12
        %s128 = sadd.s32 %s126, %s127
        %s129 = smul.addr %s128, 8
        %s130 = scalar_lea.vmem %s0, %s129
        %s131 = smul.u32 2, %s16
      $region24: #{conv_kan_forward.1} parent=19 // pred_fallthru
        _
    $region20: #{conv_kan_forward.1} parent=5 // pred_fallthru
      _
    %p132 = scmp.le.s32.totalorder 1, %s8
    %p133 = scmp.lt.s32.totalorder %s8, 3
    %p134 = pnand %p132, %p133
    %p135 = pneg %p134
    // Predicated region
    $region25: #{conv_kan_forward.1} parent=5 // pred_check
      _
    $region26: #{conv_kan_forward.1} parent=5 // pred_check_branch
      %137 = sbr.rel (%p134) target = $region28
    $region27: #{conv_kan_forward.1} parent=5 // pred_region
      %s138 = ssub.s32 %s8, 1
      %s139 = smul.u32 2, %s18
      %p140 = scmp.lt.s32.totalorder %s17, 1
      %s141 = scalar_select %p140, %s17, 1
      %p142 = scmp.lt.s32.totalorder %s139, 1
      %s143 = scalar_select %p142, %s139, 1
      %s144 = smul.addr %s141, 12
      %s145 = sadd.s32 %s143, %s144
      %s146 = smul.addr %s145, 8
      %s147 = scalar_lea.vmem %s0, %s146
      %p148 = pneg %p48
      %p149 = pneg %p45
      %p150 = pneg %p69
      %p151 = pneg %p66
      %p152 = pneg %p97
      %p153 = pneg %p94
      %s154 = smul.u32 2, %s18
      %p155 = scmp.lt.s32.totalorder %s17, 1
      %s156 = scalar_select %p155, %s17, 1
      %p157 = scmp.lt.s32.totalorder %s154, 1
      %s158 = scalar_select %p157, %s154, 1
      %s159 = smul.addr %s156, 2
      %s160 = sadd.s32 %s158, %s159
      %s161 = smul.addr %s160, 8
      %s162 = scalar_lea.vmem %s2, %s161
      %s163 = smul.u32 2, %s18
      %p164 = scmp.lt.s32.totalorder %s17, 1
      %s165 = scalar_select %p164, %s17, 1
      %p166 = scmp.lt.s32.totalorder %s163, 1
      %s167 = scalar_select %p166, %s163, 1
      %s168 = smul.addr %s165, 12
      %s169 = sadd.s32 %s167, %s168
      %s170 = smul.addr %s169, 8
      %s171 = scalar_lea.vmem %s0, %s170
      %s172 = smul.u32 2, %s18
      %s173 = smul.u32 2, %s18
      %p174 = scmp.lt.s32.totalorder %s17, 1
      %s175 = scalar_select %p174, %s17, 1
      %p176 = scmp.lt.s32.totalorder %s173, 1
      %s177 = scalar_select %p176, %s173, 1
      %s178 = smul.addr %s175, 2
      %s179 = sadd.s32 %s177, %s178
      %s180 = smul.addr %s179, 8
      %s181 = scalar_lea.vmem %s2, %s180
      %s182 = smul.u32 2, %s18
      %v184 = vld [vmem:[%s171] sm:$0xff]
      %v185 = vld [vmem:[%s171 + $0x8] sm:$0xff]
      %v186 = vxor.u32 %v184, 2147483648
      %v187 = vxor.u32 %v185, 2147483648
      %v188 = vmul.f32 %v186, 1.442695
      %v189 = vpow.pop %v188
      %v190 = vmul.f32 %v187, 1.442695
      %v191 = vpow.pop %v190
      %v192 = vadd.f32 %v189, 1.0
      %v193 = vadd.f32 %v191, 1.0
      %v194 = vrcp.pop %v192
      %v195 = vmul.f32 1.0, %v194
      %v196 = vrcp.pop %v193
      %v197 = vmul.f32 1.0, %v196
      %v198 = vmul.f32 %v184, %v195
      %v199 = vmul.f32 %v185, %v197
      %v200 = vpack.c.bf16 %v198, %v198
      %v201 = vpack.c.bf16 %v199, %v199
      %202 = vst [vmem:[#allocation2] sm:$0xf] %v200
      %203 = vst [vmem:[#allocation2 + $0x8] sm:$0xf] %v201
      %vm204 = vcmp.ge.f32.partialorder %v184, -2.2
      %vm205 = vcmp.ge.f32.partialorder %v185, -2.2
      %v206 = vsel %vm204, 1, 0
      %v207 = vsel %vm205, 1, 0
      %v208 = vcvt.s32.f32 %v206
      %v209 = vcvt.s32.f32 %v207
      %vm210 = vcmp.ge.f32.partialorder %v184, -1.8
      %vm211 = vcmp.ge.f32.partialorder %v185, -1.8
      %v212 = vsel %vm210, 1, 0
      %v213 = vsel %vm211, 1, 0
      %v214 = vcvt.s32.f32 %v212
      %v215 = vcvt.s32.f32 %v213
      %v216 = vsub.f32 %v208, %v214
      %v217 = vsub.f32 %v209, %v215
      %v218 = vsub.f32 %v184, -2.2
      %v219 = vsub.f32 %v185, -2.2
      %vm220 = vcmp.ge.f32.partialorder %v184, -1.4
      %vm221 = vcmp.ge.f32.partialorder %v185, -1.4
      %v222 = vsel %vm220, 1, 0
      %v223 = vsel %vm221, 1, 0
      %v224 = vcvt.s32.f32 %v222
      %v225 = vcvt.s32.f32 %v223
      %v226 = vsub.f32 %v214, %v224
      %v227 = vsub.f32 %v215, %v225
      %v228 = vsub.f32 %v184, -1.8
      %v229 = vsub.f32 %v185, -1.8
      %v230 = vmul.f32 %v218, 2.5
      %v231 = vmul.f32 %v219, 2.5
      %v232 = vmul.f32 %v228, 2.5
      %v233 = vmul.f32 %v229, 2.5
      %v234 = vmul.f32 %v230, %v216
      %v235 = vmul.f32 %v231, %v217
      %v236 = vsub.f32 1.0, %v232
      %v237 = vsub.f32 1.0, %v233
      %v238 = vmul.f32 %v236, %v226
      %v239 = vmul.f32 %v237, %v227
      %v240 = vadd.f32 %v234, %v238
      %v241 = vadd.f32 %v235, %v239
      %vm242 = vcmp.ge.f32.partialorder %v184, -1.0
      %vm243 = vcmp.ge.f32.partialorder %v185, -1.0
      %v244 = vsel %vm242, 1, 0
      %v245 = vsel %vm243, 1, 0
      %v246 = vcvt.s32.f32 %v244
      %v247 = vcvt.s32.f32 %v245
      %v248 = vsub.f32 %v224, %v246
      %v249 = vsub.f32 %v225, %v247
      %v250 = vsub.f32 %v184, -1.4
      %v251 = vsub.f32 %v185, -1.4
      %v252 = vmul.f32 %v250, 2.5
      %v253 = vmul.f32 %v251, 2.5
      %v254 = vmul.f32 %v232, %v226
      %v255 = vmul.f32 %v233, %v227
      %v256 = vsub.f32 1.0, %v252
      %v257 = vsub.f32 1.0, %v253
      %v258 = vmul.f32 %v256, %v248
      %v259 = vmul.f32 %v257, %v249
      %v260 = vadd.f32 %v254, %v258
      %v261 = vadd.f32 %v255, %v259
      %v262 = vmul.f32 %v218, 1.25
      %v263 = vmul.f32 %v219, 1.25
      %v264 = vmul.f32 %v228, 1.25
      %v265 = vmul.f32 %v229, 1.25
      %v266 = vmul.f32 %v262, %v240
      %v267 = vmul.f32 %v263, %v241
      %v268 = vsub.f32 1.0, %v264
      %v269 = vsub.f32 1.0, %v265
      %v270 = vmul.f32 %v268, %v260
      %v271 = vmul.f32 %v269, %v261
      %v272 = vadd.f32 %v266, %v270
      %v273 = vadd.f32 %v267, %v271
      %vm274 = vcmp.ge.f32.partialorder %v184, -0.6
      %vm275 = vcmp.ge.f32.partialorder %v185, -0.6
      %v276 = vsel %vm274, 1, 0
      %v277 = vsel %vm275, 1, 0
      %v278 = vcvt.s32.f32 %v276
      %v279 = vcvt.s32.f32 %v277
      %v280 = vsub.f32 %v246, %v278
      %v281 = vsub.f32 %v247, %v279
      %v282 = vsub.f32 %v184, -1.0
      %v283 = vsub.f32 %v185, -1.0
      %v284 = vmul.f32 %v282, 2.5
      %v285 = vmul.f32 %v283, 2.5
      %v286 = vmul.f32 %v252, %v248
      %v287 = vmul.f32 %v253, %v249
      %v288 = vsub.f32 1.0, %v284
      %v289 = vsub.f32 1.0, %v285
      %v290 = vmul.f32 %v288, %v280
      %v291 = vmul.f32 %v289, %v281
      %v292 = vadd.f32 %v286, %v290
      %v293 = vadd.f32 %v287, %v291
      %v294 = vmul.f32 %v250, 1.25
      %v295 = vmul.f32 %v251, 1.25
      %v296 = vmul.f32 %v264, %v260
      %v297 = vmul.f32 %v265, %v261
      %v298 = vsub.f32 1.0, %v294
      %v299 = vsub.f32 1.0, %v295
      %v300 = vmul.f32 %v298, %v292
      %v301 = vmul.f32 %v299, %v293
      %v302 = vadd.f32 %v296, %v300
      %v303 = vadd.f32 %v297, %v301
      %v304 = vmul.f32 %v218, 0.8333333
      %v305 = vmul.f32 %v219, 0.8333333
      %v306 = vmul.f32 %v228, 0.8333333
      %v307 = vmul.f32 %v229, 0.8333333
      %v308 = vmul.f32 %v304, %v272
      %v309 = vmul.f32 %v305, %v273
      %v310 = vsub.f32 1.0, %v306
      %v311 = vsub.f32 1.0, %v307
      %v312 = vmul.f32 %v310, %v302
      %v313 = vmul.f32 %v311, %v303
      %v314 = vadd.f32 %v308, %v312
      %v315 = vadd.f32 %v309, %v313
      %v316 = vpack.c.bf16 %v314, %v314
      %v317 = vpack.c.bf16 %v315, %v315
      %318 = vst [vmem:[#allocation2 + $0x30] sm:$0xf] %v316
      %319 = vst [vmem:[#allocation2 + $0x38] sm:$0xf] %v317
      %vm320 = vcmp.ge.f32.partialorder %v184, -0.2
      %vm321 = vcmp.ge.f32.partialorder %v185, -0.2
      %v322 = vsel %vm320, 1, 0
      %v323 = vsel %vm321, 1, 0
      %v324 = vcvt.s32.f32 %v322
      %v325 = vcvt.s32.f32 %v323
      %v326 = vsub.f32 %v278, %v324
      %v327 = vsub.f32 %v279, %v325
      %v328 = vsub.f32 %v184, -0.6
      %v329 = vsub.f32 %v185, -0.6
      %v330 = vmul.f32 %v328, 2.5
      %v331 = vmul.f32 %v329, 2.5
      %v332 = vmul.f32 %v284, %v280
      %v333 = vmul.f32 %v285, %v281
      %v334 = vsub.f32 1.0, %v330
      %v335 = vsub.f32 1.0, %v331
      %v336 = vmul.f32 %v334, %v326
      %v337 = vmul.f32 %v335, %v327
      %v338 = vadd.f32 %v332, %v336
      %v339 = vadd.f32 %v333, %v337
      %v340 = vmul.f32 %v282, 1.25
      %v341 = vmul.f32 %v283, 1.25
      %v342 = vmul.f32 %v294, %v292
      %v343 = vmul.f32 %v295, %v293
      %v344 = vsub.f32 1.0, %v340
      %v345 = vsub.f32 1.0, %v341
      %v346 = vmul.f32 %v344, %v338
      %v347 = vmul.f32 %v345, %v339
      %v348 = vadd.f32 %v342, %v346
      %v349 = vadd.f32 %v343, %v347
      %v350 = vmul.f32 %v250, 0.8333333
      %v351 = vmul.f32 %v251, 0.8333333
      %v352 = vmul.f32 %v306, %v302
      %v353 = vmul.f32 %v307, %v303
      %v354 = vsub.f32 1.0, %v350
      %v355 = vsub.f32 1.0, %v351
      %v356 = vmul.f32 %v354, %v348
      %v357 = vmul.f32 %v355, %v349
      %v358 = vadd.f32 %v352, %v356
      %v359 = vadd.f32 %v353, %v357
      %v360 = vpack.c.bf16 %v358, %v358
      %v361 = vpack.c.bf16 %v359, %v359
      %362 = vst [vmem:[#allocation2 + $0x60] sm:$0xf] %v360
      %363 = vst [vmem:[#allocation2 + $0x68] sm:$0xf] %v361
      %vm364 = vcmp.ge.f32.partialorder %v184, 0.2
      %vm365 = vcmp.ge.f32.partialorder %v185, 0.2
      %v366 = vsel %vm364, 1, 0
      %v367 = vsel %vm365, 1, 0
      %v368 = vcvt.s32.f32 %v366
      %v369 = vcvt.s32.f32 %v367
      %v370 = vsub.f32 %v324, %v368
      %v371 = vsub.f32 %v325, %v369
      %v372 = vsub.f32 %v184, -0.2
      %v373 = vsub.f32 %v185, -0.2
      %v374 = vmul.f32 %v372, 2.5
      %v375 = vmul.f32 %v373, 2.5
      %v376 = vmul.f32 %v330, %v326
      %v377 = vmul.f32 %v331, %v327
      %v378 = vsub.f32 1.0, %v374
      %v379 = vsub.f32 1.0, %v375
      %v380 = vmul.f32 %v378, %v370
      %v381 = vmul.f32 %v379, %v371
      %v382 = vadd.f32 %v376, %v380
      %v383 = vadd.f32 %v377, %v381
      %v384 = vmul.f32 %v328, 1.25
      %v385 = vmul.f32 %v329, 1.25
      %v386 = vmul.f32 %v340, %v338
      %v387 = vmul.f32 %v341, %v339
      %v388 = vsub.f32 1.0, %v384
      %v389 = vsub.f32 1.0, %v385
      %v390 = vmul.f32 %v388, %v382
      %v391 = vmul.f32 %v389, %v383
      %v392 = vadd.f32 %v386, %v390
      %v393 = vadd.f32 %v387, %v391
      %v394 = vmul.f32 %v282, 0.8333333
      %v395 = vmul.f32 %v283, 0.8333333
      %v396 = vmul.f32 %v350, %v348
      %v397 = vmul.f32 %v351, %v349
      %v398 = vsub.f32 1.0, %v394
      %v399 = vsub.f32 1.0, %v395
      %v400 = vmul.f32 %v398, %v392
      %v401 = vmul.f32 %v399, %v393
      %v402 = vadd.f32 %v396, %v400
      %v403 = vadd.f32 %v397, %v401
      %v404 = vpack.c.bf16 %v402, %v402
      %v405 = vpack.c.bf16 %v403, %v403
      %406 = vst [vmem:[#allocation2 + $0x90] sm:$0xf] %v404
      %407 = vst [vmem:[#allocation2 + $0x98] sm:$0xf] %v405
      %vm408 = vcmp.ge.f32.partialorder %v184, 0.6
      %vm409 = vcmp.ge.f32.partialorder %v185, 0.6
      %v410 = vsel %vm408, 1, 0
      %v411 = vsel %vm409, 1, 0
      %v412 = vcvt.s32.f32 %v410
      %v413 = vcvt.s32.f32 %v411
      %v414 = vsub.f32 %v368, %v412
      %v415 = vsub.f32 %v369, %v413
      %v416 = vsub.f32 %v184, 0.2
      %v417 = vsub.f32 %v185, 0.2
      %v418 = vmul.f32 %v416, 2.5
      %v419 = vmul.f32 %v417, 2.5
      %v420 = vmul.f32 %v374, %v370
      %v421 = vmul.f32 %v375, %v371
      %v422 = vsub.f32 1.0, %v418
      %v423 = vsub.f32 1.0, %v419
      %v424 = vmul.f32 %v422, %v414
      %v425 = vmul.f32 %v423, %v415
      %v426 = vadd.f32 %v420, %v424
      %v427 = vadd.f32 %v421, %v425
      %v428 = vmul.f32 %v372, 1.25
      %v429 = vmul.f32 %v373, 1.25
      %v430 = vmul.f32 %v384, %v382
      %v431 = vmul.f32 %v385, %v383
      %v432 = vsub.f32 1.0, %v428
      %v433 = vsub.f32 1.0, %v429
      %v434 = vmul.f32 %v432, %v426
      %v435 = vmul.f32 %v433, %v427
      %v436 = vadd.f32 %v430, %v434
      %v437 = vadd.f32 %v431, %v435
      %v438 = vmul.f32 %v328, 0.8333333
      %v439 = vmul.f32 %v329, 0.8333333
      %v440 = vmul.f32 %v394, %v392
      %v441 = vmul.f32 %v395, %v393
      %v442 = vsub.f32 1.0, %v438
      %v443 = vsub.f32 1.0, %v439
      %v444 = vmul.f32 %v442, %v436
      %v445 = vmul.f32 %v443, %v437
      %v446 = vadd.f32 %v440, %v444
      %v447 = vadd.f32 %v441, %v445
      %v448 = vpack.c.bf16 %v446, %v446
      %v449 = vpack.c.bf16 %v447, %v447
      %450 = vst [vmem:[#allocation2 + $0xc0] sm:$0xf] %v448
      %451 = vst [vmem:[#allocation2 + $0xc8] sm:$0xf] %v449
      %vm452 = vcmp.ge.f32.partialorder %v184, 1.0
      %vm453 = vcmp.ge.f32.partialorder %v185, 1.0
      %v454 = vsel %vm452, 1, 0
      %v455 = vsel %vm453, 1, 0
      %v456 = vcvt.s32.f32 %v454
      %v457 = vcvt.s32.f32 %v455
      %v458 = vsub.f32 %v412, %v456
      %v459 = vsub.f32 %v413, %v457
      %v460 = vsub.f32 %v184, 0.6
      %v461 = vsub.f32 %v185, 0.6
      %v462 = vmul.f32 %v460, 2.5
      %v463 = vmul.f32 %v461, 2.5
      %v464 = vmul.f32 %v418, %v414
      %v465 = vmul.f32 %v419, %v415
      %v466 = vsub.f32 1.0, %v462
      %v467 = vsub.f32 1.0, %v463
      %v468 = vmul.f32 %v466, %v458
      %v469 = vmul.f32 %v467, %v459
      %v470 = vadd.f32 %v464, %v468
      %v471 = vadd.f32 %v465, %v469
      %v472 = vmul.f32 %v416, 1.25
      %v473 = vmul.f32 %v417, 1.25
      %v474 = vmul.f32 %v428, %v426
      %v475 = vmul.f32 %v429, %v427
      %v476 = vsub.f32 1.0, %v472
      %v477 = vsub.f32 1.0, %v473
      %v478 = vmul.f32 %v476, %v470
      %v479 = vmul.f32 %v477, %v471
      %v480 = vadd.f32 %v474, %v478
      %v481 = vadd.f32 %v475, %v479
      %v482 = vmul.f32 %v372, 0.8333333
      %v483 = vmul.f32 %v373, 0.8333333
      %v484 = vmul.f32 %v438, %v436
      %v485 = vmul.f32 %v439, %v437
      %v486 = vsub.f32 1.0, %v482
      %v487 = vsub.f32 1.0, %v483
      %v488 = vmul.f32 %v486, %v480
      %v489 = vmul.f32 %v487, %v481
      %v490 = vadd.f32 %v484, %v488
      %v491 = vadd.f32 %v485, %v489
      %v492 = vpack.c.bf16 %v490, %v490
      %v493 = vpack.c.bf16 %v491, %v491
      %494 = vst [vmem:[#allocation2 + $0xf0] sm:$0xf] %v492
      %495 = vst [vmem:[#allocation2 + $0xf8] sm:$0xf] %v493
      %vm496 = vcmp.ge.f32.partialorder %v184, 1.4
      %vm497 = vcmp.ge.f32.partialorder %v185, 1.4
      %v498 = vsel %vm496, 1, 0
      %v499 = vsel %vm497, 1, 0
      %v500 = vcvt.s32.f32 %v498
      %v501 = vcvt.s32.f32 %v499
      %v502 = vsub.f32 %v456, %v500
      %v503 = vsub.f32 %v457, %v501
      %v504 = vsub.f32 %v184, 1.0
      %v505 = vsub.f32 %v185, 1.0
      %v506 = vmul.f32 %v504, 2.5
      %v507 = vmul.f32 %v505, 2.5
      %v508 = vmul.f32 %v462, %v458
      %v509 = vmul.f32 %v463, %v459
      %v510 = vsub.f32 1.0, %v506
      %v511 = vsub.f32 1.0, %v507
      %v512 = vmul.f32 %v510, %v502
      %v513 = vmul.f32 %v511, %v503
      %v514 = vadd.f32 %v508, %v512
      %v515 = vadd.f32 %v509, %v513
      %v516 = vmul.f32 %v460, 1.25
      %v517 = vmul.f32 %v461, 1.25
      %v518 = vmul.f32 %v472, %v470
      %v519 = vmul.f32 %v473, %v471
      %v520 = vsub.f32 1.0, %v516
      %v521 = vsub.f32 1.0, %v517
      %v522 = vmul.f32 %v520, %v514
      %v523 = vmul.f32 %v521, %v515
      %v524 = vadd.f32 %v518, %v522
      %v525 = vadd.f32 %v519, %v523
      %v526 = vmul.f32 %v416, 0.8333333
      %v527 = vmul.f32 %v417, 0.8333333
      %v528 = vmul.f32 %v482, %v480
      %v529 = vmul.f32 %v483, %v481
      %v530 = vsub.f32 1.0, %v526
      %v531 = vsub.f32 1.0, %v527
      %v532 = vmul.f32 %v530, %v524
      %v533 = vmul.f32 %v531, %v525
      %v534 = vadd.f32 %v528, %v532
      %v535 = vadd.f32 %v529, %v533
      %v536 = vpack.c.bf16 %v534, %v534
      %v537 = vpack.c.bf16 %v535, %v535
      %538 = vst [vmem:[#allocation2 + $0x120] sm:$0xf] %v536
      %539 = vst [vmem:[#allocation2 + $0x128] sm:$0xf] %v537
      %vm540 = vcmp.ge.f32.partialorder %v184, 1.8
      %vm541 = vcmp.ge.f32.partialorder %v185, 1.8
      %v542 = vsel %vm540, 1, 0
      %v543 = vsel %vm541, 1, 0
      %v544 = vcvt.s32.f32 %v542
      %v545 = vcvt.s32.f32 %v543
      %v546 = vsub.f32 %v500, %v544
      %v547 = vsub.f32 %v501, %v545
      %v548 = vsub.f32 %v184, 1.4
      %v549 = vsub.f32 %v185, 1.4
      %v550 = vmul.f32 %v548, 2.5
      %v551 = vmul.f32 %v549, 2.5
      %v552 = vmul.f32 %v506, %v502
      %v553 = vmul.f32 %v507, %v503
      %v554 = vsub.f32 1.0, %v550
      %v555 = vsub.f32 1.0, %v551
      %v556 = vmul.f32 %v554, %v546
      %v557 = vmul.f32 %v555, %v547
      %v558 = vadd.f32 %v552, %v556
      %v559 = vadd.f32 %v553, %v557
      %v560 = vmul.f32 %v504, 1.25
      %v561 = vmul.f32 %v505, 1.25
      %v562 = vmul.f32 %v516, %v514
      %v563 = vmul.f32 %v517, %v515
      %v564 = vsub.f32 1.0, %v560
      %v565 = vsub.f32 1.0, %v561
      %v566 = vmul.f32 %v564, %v558
      %v567 = vmul.f32 %v565, %v559
      %v568 = vadd.f32 %v562, %v566
      %v569 = vadd.f32 %v563, %v567
      %v570 = vmul.f32 %v460, 0.8333333
      %v571 = vmul.f32 %v461, 0.8333333
      %v572 = vmul.f32 %v526, %v524
      %v573 = vmul.f32 %v527, %v525
      %v574 = vsub.f32 1.0, %v570
      %v575 = vsub.f32 1.0, %v571
      %v576 = vmul.f32 %v574, %v568
      %v577 = vmul.f32 %v575, %v569
      %v578 = vadd.f32 %v572, %v576
      %v579 = vadd.f32 %v573, %v577
      %v580 = vpack.c.bf16 %v578, %v578
      %v581 = vpack.c.bf16 %v579, %v579
      %582 = vst [vmem:[#allocation2 + $0x150] sm:$0xf] %v580
      %583 = vst [vmem:[#allocation2 + $0x158] sm:$0xf] %v581
      %vm584 = vcmp.ge.f32.partialorder %v184, 2.2
      %vm585 = vcmp.ge.f32.partialorder %v185, 2.2
      %v586 = vsel %vm584, 1, 0
      %v587 = vsel %vm585, 1, 0
      %v588 = vcvt.s32.f32 %v586
      %v589 = vcvt.s32.f32 %v587
      %v590 = vsub.f32 %v544, %v588
      %v591 = vsub.f32 %v545, %v589
      %v592 = vsub.f32 %v184, 1.8
      %v593 = vsub.f32 %v185, 1.8
      %v594 = vmul.f32 %v592, 2.5
      %v595 = vmul.f32 %v593, 2.5
      %v596 = vmul.f32 %v550, %v546
      %v597 = vmul.f32 %v551, %v547
      %v598 = vsub.f32 1.0, %v594
      %v599 = vsub.f32 1.0, %v595
      %v600 = vmul.f32 %v598, %v590
      %v601 = vmul.f32 %v599, %v591
      %v602 = vadd.f32 %v596, %v600
      %v603 = vadd.f32 %v597, %v601
      %v604 = vmul.f32 %v548, 1.25
      %v605 = vmul.f32 %v549, 1.25
      %v606 = vmul.f32 %v560, %v558
      %v607 = vmul.f32 %v561, %v559
      %v608 = vsub.f32 1.0, %v604
      %v609 = vsub.f32 1.0, %v605
      %v610 = vmul.f32 %v608, %v602
      %v611 = vmul.f32 %v609, %v603
      %v612 = vadd.f32 %v606, %v610
      %v613 = vadd.f32 %v607, %v611
      %v614 = vmul.f32 %v504, 0.8333333
      %v615 = vmul.f32 %v505, 0.8333333
      %v616 = vmul.f32 %v570, %v568
      %v617 = vmul.f32 %v571, %v569
      %v618 = vsub.f32 1.0, %v614
      %v619 = vsub.f32 1.0, %v615
      %v620 = vmul.f32 %v618, %v612
      %v621 = vmul.f32 %v619, %v613
      %v622 = vadd.f32 %v616, %v620
      %v623 = vadd.f32 %v617, %v621
      %v624 = vpack.c.bf16 %v622, %v622
      %v625 = vpack.c.bf16 %v623, %v623
      %626 = vst [vmem:[#allocation2 + $0x180] sm:$0xf] %v624
      %627 = vst [vmem:[#allocation2 + $0x188] sm:$0xf] %v625
      %v628 = vld [vmem:[%s171 + $0x10] sm:$0xff]
      %v629 = vld [vmem:[%s171 + $0x18] sm:$0xff]
      %v630 = vxor.u32 %v628, 2147483648
      %v631 = vxor.u32 %v629, 2147483648
      %v632 = vmul.f32 %v630, 1.442695
      %v633 = vpow.pop %v632
      %v634 = vmul.f32 %v631, 1.442695
      %v635 = vpow.pop %v634
      %v636 = vadd.f32 %v633, 1.0
      %v637 = vadd.f32 %v635, 1.0
      %v638 = vrcp.pop %v636
      %v639 = vmul.f32 1.0, %v638
      %v640 = vrcp.pop %v637
      %v641 = vmul.f32 1.0, %v640
      %v642 = vmul.f32 %v628, %v639
      %v643 = vmul.f32 %v629, %v641
      %v644 = vpack.c.bf16 %v642, %v642
      %v645 = vpack.c.bf16 %v643, %v643
      %v648 = vrot.slane %v644, 4
      %v649 = vrot.slane %v645, 4
      %652 = vst [vmem:[#allocation2] sm:$0xf0] %v648
      %653 = vst [vmem:[#allocation2 + $0x8] sm:$0xf0] %v649
      %vm654 = vcmp.ge.f32.partialorder %v628, -2.2
      %vm655 = vcmp.ge.f32.partialorder %v629, -2.2
      %v656 = vsel %vm654, 1, 0
      %v657 = vsel %vm655, 1, 0
      %v658 = vcvt.s32.f32 %v656
      %v659 = vcvt.s32.f32 %v657
      %vm660 = vcmp.ge.f32.partialorder %v628, -1.8
      %vm661 = vcmp.ge.f32.partialorder %v629, -1.8
      %v662 = vsel %vm660, 1, 0
      %v663 = vsel %vm661, 1, 0
      %v664 = vcvt.s32.f32 %v662
      %v665 = vcvt.s32.f32 %v663
      %v666 = vsub.f32 %v658, %v664
      %v667 = vsub.f32 %v659, %v665
      %v668 = vsub.f32 %v628, -2.2
      %v669 = vsub.f32 %v629, -2.2
      %vm670 = vcmp.ge.f32.partialorder %v628, -1.4
      %vm671 = vcmp.ge.f32.partialorder %v629, -1.4
      %v672 = vsel %vm670, 1, 0
      %v673 = vsel %vm671, 1, 0
      %v674 = vcvt.s32.f32 %v672
      %v675 = vcvt.s32.f32 %v673
      %v676 = vsub.f32 %v664, %v674
      %v677 = vsub.f32 %v665, %v675
      %v678 = vsub.f32 %v628, -1.8
      %v679 = vsub.f32 %v629, -1.8
      %v680 = vmul.f32 %v668, 2.5
      %v681 = vmul.f32 %v669, 2.5
      %v682 = vmul.f32 %v678, 2.5
      %v683 = vmul.f32 %v679, 2.5
      %v684 = vmul.f32 %v680, %v666
      %v685 = vmul.f32 %v681, %v667
      %v686 = vsub.f32 1.0, %v682
      %v687 = vsub.f32 1.0, %v683
      %v688 = vmul.f32 %v686, %v676
      %v689 = vmul.f32 %v687, %v677
      %v690 = vadd.f32 %v684, %v688
      %v691 = vadd.f32 %v685, %v689
      %vm692 = vcmp.ge.f32.partialorder %v628, -1.0
      %vm693 = vcmp.ge.f32.partialorder %v629, -1.0
      %v694 = vsel %vm692, 1, 0
      %v695 = vsel %vm693, 1, 0
      %v696 = vcvt.s32.f32 %v694
      %v697 = vcvt.s32.f32 %v695
      %v698 = vsub.f32 %v674, %v696
      %v699 = vsub.f32 %v675, %v697
      %v700 = vsub.f32 %v628, -1.4
      %v701 = vsub.f32 %v629, -1.4
      %v702 = vmul.f32 %v700, 2.5
      %v703 = vmul.f32 %v701, 2.5
      %v704 = vmul.f32 %v682, %v676
      %v705 = vmul.f32 %v683, %v677
      %v706 = vsub.f32 1.0, %v702
      %v707 = vsub.f32 1.0, %v703
      %v708 = vmul.f32 %v706, %v698
      %v709 = vmul.f32 %v707, %v699
      %v710 = vadd.f32 %v704, %v708
      %v711 = vadd.f32 %v705, %v709
      %v712 = vmul.f32 %v668, 1.25
      %v713 = vmul.f32 %v669, 1.25
      %v714 = vmul.f32 %v678, 1.25
      %v715 = vmul.f32 %v679, 1.25
      %v716 = vmul.f32 %v712, %v690
      %v717 = vmul.f32 %v713, %v691
      %v718 = vsub.f32 1.0, %v714
      %v719 = vsub.f32 1.0, %v715
      %v720 = vmul.f32 %v718, %v710
      %v721 = vmul.f32 %v719, %v711
      %v722 = vadd.f32 %v716, %v720
      %v723 = vadd.f32 %v717, %v721
      %vm724 = vcmp.ge.f32.partialorder %v628, -0.6
      %vm725 = vcmp.ge.f32.partialorder %v629, -0.6
      %v726 = vsel %vm724, 1, 0
      %v727 = vsel %vm725, 1, 0
      %v728 = vcvt.s32.f32 %v726
      %v729 = vcvt.s32.f32 %v727
      %v730 = vsub.f32 %v696, %v728
      %v731 = vsub.f32 %v697, %v729
      %v732 = vsub.f32 %v628, -1.0
      %v733 = vsub.f32 %v629, -1.0
      %v734 = vmul.f32 %v732, 2.5
      %v735 = vmul.f32 %v733, 2.5
      %v736 = vmul.f32 %v702, %v698
      %v737 = vmul.f32 %v703, %v699
      %v738 = vsub.f32 1.0, %v734
      %v739 = vsub.f32 1.0, %v735
      %v740 = vmul.f32 %v738, %v730
      %v741 = vmul.f32 %v739, %v731
      %v742 = vadd.f32 %v736, %v740
      %v743 = vadd.f32 %v737, %v741
      %v744 = vmul.f32 %v700, 1.25
      %v745 = vmul.f32 %v701, 1.25
      %v746 = vmul.f32 %v714, %v710
      %v747 = vmul.f32 %v715, %v711
      %v748 = vsub.f32 1.0, %v744
      %v749 = vsub.f32 1.0, %v745
      %v750 = vmul.f32 %v748, %v742
      %v751 = vmul.f32 %v749, %v743
      %v752 = vadd.f32 %v746, %v750
      %v753 = vadd.f32 %v747, %v751
      %v754 = vmul.f32 %v668, 0.8333333
      %v755 = vmul.f32 %v669, 0.8333333
      %v756 = vmul.f32 %v678, 0.8333333
      %v757 = vmul.f32 %v679, 0.8333333
      %v758 = vmul.f32 %v754, %v722
      %v759 = vmul.f32 %v755, %v723
      %v760 = vsub.f32 1.0, %v756
      %v761 = vsub.f32 1.0, %v757
      %v762 = vmul.f32 %v760, %v752
      %v763 = vmul.f32 %v761, %v753
      %v764 = vadd.f32 %v758, %v762
      %v765 = vadd.f32 %v759, %v763
      %v766 = vpack.c.bf16 %v764, %v764
      %v767 = vpack.c.bf16 %v765, %v765
      %v770 = vrot.slane %v766, 4
      %v771 = vrot.slane %v767, 4
      %774 = vst [vmem:[#allocation2 + $0x30] sm:$0xf0] %v770
      %775 = vst [vmem:[#allocation2 + $0x38] sm:$0xf0] %v771
      %vm776 = vcmp.ge.f32.partialorder %v628, -0.2
      %vm777 = vcmp.ge.f32.partialorder %v629, -0.2
      %v778 = vsel %vm776, 1, 0
      %v779 = vsel %vm777, 1, 0
      %v780 = vcvt.s32.f32 %v778
      %v781 = vcvt.s32.f32 %v779
      %v782 = vsub.f32 %v728, %v780
      %v783 = vsub.f32 %v729, %v781
      %v784 = vsub.f32 %v628, -0.6
      %v785 = vsub.f32 %v629, -0.6
      %v786 = vmul.f32 %v784, 2.5
      %v787 = vmul.f32 %v785, 2.5
      %v788 = vmul.f32 %v734, %v730
      %v789 = vmul.f32 %v735, %v731
      %v790 = vsub.f32 1.0, %v786
      %v791 = vsub.f32 1.0, %v787
      %v792 = vmul.f32 %v790, %v782
      %v793 = vmul.f32 %v791, %v783
      %v794 = vadd.f32 %v788, %v792
      %v795 = vadd.f32 %v789, %v793
      %v796 = vmul.f32 %v732, 1.25
      %v797 = vmul.f32 %v733, 1.25
      %v798 = vmul.f32 %v744, %v742
      %v799 = vmul.f32 %v745, %v743
      %v800 = vsub.f32 1.0, %v796
      %v801 = vsub.f32 1.0, %v797
      %v802 = vmul.f32 %v800, %v794
      %v803 = vmul.f32 %v801, %v795
      %v804 = vadd.f32 %v798, %v802
      %v805 = vadd.f32 %v799, %v803
      %v806 = vmul.f32 %v700, 0.8333333
      %v807 = vmul.f32 %v701, 0.8333333
      %v808 = vmul.f32 %v756, %v752
      %v809 = vmul.f32 %v757, %v753
      %v810 = vsub.f32 1.0, %v806
      %v811 = vsub.f32 1.0, %v807
      %v812 = vmul.f32 %v810, %v804
      %v813 = vmul.f32 %v811, %v805
      %v814 = vadd.f32 %v808, %v812
      %v815 = vadd.f32 %v809, %v813
      %v816 = vpack.c.bf16 %v814, %v814
      %v817 = vpack.c.bf16 %v815, %v815
      %v820 = vrot.slane %v816, 4
      %v821 = vrot.slane %v817, 4
      %824 = vst [vmem:[#allocation2 + $0x60] sm:$0xf0] %v820
      %825 = vst [vmem:[#allocation2 + $0x68] sm:$0xf0] %v821
      %vm826 = vcmp.ge.f32.partialorder %v628, 0.2
      %vm827 = vcmp.ge.f32.partialorder %v629, 0.2
      %v828 = vsel %vm826, 1, 0
      %v829 = vsel %vm827, 1, 0
      %v830 = vcvt.s32.f32 %v828
      %v831 = vcvt.s32.f32 %v829
      %v832 = vsub.f32 %v780, %v830
      %v833 = vsub.f32 %v781, %v831
      %v834 = vsub.f32 %v628, -0.2
      %v835 = vsub.f32 %v629, -0.2
      %v836 = vmul.f32 %v834, 2.5
      %v837 = vmul.f32 %v835, 2.5
      %v838 = vmul.f32 %v786, %v782
      %v839 = vmul.f32 %v787, %v783
      %v840 = vsub.f32 1.0, %v836
      %v841 = vsub.f32 1.0, %v837
      %v842 = vmul.f32 %v840, %v832
      %v843 = vmul.f32 %v841, %v833
      %v844 = vadd.f32 %v838, %v842
      %v845 = vadd.f32 %v839, %v843
      %v846 = vmul.f32 %v784, 1.25
      %v847 = vmul.f32 %v785, 1.25
      %v848 = vmul.f32 %v796, %v794
      %v849 = vmul.f32 %v797, %v795
      %v850 = vsub.f32 1.0, %v846
      %v851 = vsub.f32 1.0, %v847
      %v852 = vmul.f32 %v850, %v844
      %v853 = vmul.f32 %v851, %v845
      %v854 = vadd.f32 %v848, %v852
      %v855 = vadd.f32 %v849, %v853
      %v856 = vmul.f32 %v732, 0.8333333
      %v857 = vmul.f32 %v733, 0.8333333
      %v858 = vmul.f32 %v806, %v804
      %v859 = vmul.f32 %v807, %v805
      %v860 = vsub.f32 1.0, %v856
      %v861 = vsub.f32 1.0, %v857
      %v862 = vmul.f32 %v860, %v854
      %v863 = vmul.f32 %v861, %v855
      %v864 = vadd.f32 %v858, %v862
      %v865 = vadd.f32 %v859, %v863
      %v866 = vpack.c.bf16 %v864, %v864
      %v867 = vpack.c.bf16 %v865, %v865
      %v870 = vrot.slane %v866, 4
      %v871 = vrot.slane %v867, 4
      %874 = vst [vmem:[#allocation2 + $0x90] sm:$0xf0] %v870
      %875 = vst [vmem:[#allocation2 + $0x98] sm:$0xf0] %v871
      %vm876 = vcmp.ge.f32.partialorder %v628, 0.6
      %vm877 = vcmp.ge.f32.partialorder %v629, 0.6
      %v878 = vsel %vm876, 1, 0
      %v879 = vsel %vm877, 1, 0
      %v880 = vcvt.s32.f32 %v878
      %v881 = vcvt.s32.f32 %v879
      %v882 = vsub.f32 %v830, %v880
      %v883 = vsub.f32 %v831, %v881
      %v884 = vsub.f32 %v628, 0.2
      %v885 = vsub.f32 %v629, 0.2
      %v886 = vmul.f32 %v884, 2.5
      %v887 = vmul.f32 %v885, 2.5
      %v888 = vmul.f32 %v836, %v832
      %v889 = vmul.f32 %v837, %v833
      %v890 = vsub.f32 1.0, %v886
      %v891 = vsub.f32 1.0, %v887
      %v892 = vmul.f32 %v890, %v882
      %v893 = vmul.f32 %v891, %v883
      %v894 = vadd.f32 %v888, %v892
      %v895 = vadd.f32 %v889, %v893
      %v896 = vmul.f32 %v834, 1.25
      %v897 = vmul.f32 %v835, 1.25
      %v898 = vmul.f32 %v846, %v844
      %v899 = vmul.f32 %v847, %v845
      %v900 = vsub.f32 1.0, %v896
      %v901 = vsub.f32 1.0, %v897
      %v902 = vmul.f32 %v900, %v894
      %v903 = vmul.f32 %v901, %v895
      %v904 = vadd.f32 %v898, %v902
      %v905 = vadd.f32 %v899, %v903
      %v906 = vmul.f32 %v784, 0.8333333
      %v907 = vmul.f32 %v785, 0.8333333
      %v908 = vmul.f32 %v856, %v854
      %v909 = vmul.f32 %v857, %v855
      %v910 = vsub.f32 1.0, %v906
      %v911 = vsub.f32 1.0, %v907
      %v912 = vmul.f32 %v910, %v904
      %v913 = vmul.f32 %v911, %v905
      %v914 = vadd.f32 %v908, %v912
      %v915 = vadd.f32 %v909, %v913
      %v916 = vpack.c.bf16 %v914, %v914
      %v917 = vpack.c.bf16 %v915, %v915
      %v920 = vrot.slane %v916, 4
      %v921 = vrot.slane %v917, 4
      %924 = vst [vmem:[#allocation2 + $0xc0] sm:$0xf0] %v920
      %925 = vst [vmem:[#allocation2 + $0xc8] sm:$0xf0] %v921
      %vm926 = vcmp.ge.f32.partialorder %v628, 1.0
      %vm927 = vcmp.ge.f32.partialorder %v629, 1.0
      %v928 = vsel %vm926, 1, 0
      %v929 = vsel %vm927, 1, 0
      %v930 = vcvt.s32.f32 %v928
      %v931 = vcvt.s32.f32 %v929
      %v932 = vsub.f32 %v880, %v930
      %v933 = vsub.f32 %v881, %v931
      %v934 = vsub.f32 %v628, 0.6
      %v935 = vsub.f32 %v629, 0.6
      %v936 = vmul.f32 %v934, 2.5
      %v937 = vmul.f32 %v935, 2.5
      %v938 = vmul.f32 %v886, %v882
      %v939 = vmul.f32 %v887, %v883
      %v940 = vsub.f32 1.0, %v936
      %v941 = vsub.f32 1.0, %v937
      %v942 = vmul.f32 %v940, %v932
      %v943 = vmul.f32 %v941, %v933
      %v944 = vadd.f32 %v938, %v942
      %v945 = vadd.f32 %v939, %v943
      %v946 = vmul.f32 %v884, 1.25
      %v947 = vmul.f32 %v885, 1.25
      %v948 = vmul.f32 %v896, %v894
      %v949 = vmul.f32 %v897, %v895
      %v950 = vsub.f32 1.0, %v946
      %v951 = vsub.f32 1.0, %v947
      %v952 = vmul.f32 %v950, %v944
      %v953 = vmul.f32 %v951, %v945
      %v954 = vadd.f32 %v948, %v952
      %v955 = vadd.f32 %v949, %v953
      %v956 = vmul.f32 %v834, 0.8333333
      %v957 = vmul.f32 %v835, 0.8333333
      %v958 = vmul.f32 %v906, %v904
      %v959 = vmul.f32 %v907, %v905
      %v960 = vsub.f32 1.0, %v956
      %v961 = vsub.f32 1.0, %v957
      %v962 = vmul.f32 %v960, %v954
      %v963 = vmul.f32 %v961, %v955
      %v964 = vadd.f32 %v958, %v962
      %v965 = vadd.f32 %v959, %v963
      %v966 = vpack.c.bf16 %v964, %v964
      %v967 = vpack.c.bf16 %v965, %v965
      %v970 = vrot.slane %v966, 4
      %v971 = vrot.slane %v967, 4
      %974 = vst [vmem:[#allocation2 + $0xf0] sm:$0xf0] %v970
      %975 = vst [vmem:[#allocation2 + $0xf8] sm:$0xf0] %v971
      %vm976 = vcmp.ge.f32.partialorder %v628, 1.4
      %vm977 = vcmp.ge.f32.partialorder %v629, 1.4
      %v978 = vsel %vm976, 1, 0
      %v979 = vsel %vm977, 1, 0
      %v980 = vcvt.s32.f32 %v978
      %v981 = vcvt.s32.f32 %v979
      %v982 = vsub.f32 %v930, %v980
      %v983 = vsub.f32 %v931, %v981
      %v984 = vsub.f32 %v628, 1.0
      %v985 = vsub.f32 %v629, 1.0
      %v986 = vmul.f32 %v984, 2.5
      %v987 = vmul.f32 %v985, 2.5
      %v988 = vmul.f32 %v936, %v932
      %v989 = vmul.f32 %v937, %v933
      %v990 = vsub.f32 1.0, %v986
      %v991 = vsub.f32 1.0, %v987
      %v992 = vmul.f32 %v990, %v982
      %v993 = vmul.f32 %v991, %v983
      %v994 = vadd.f32 %v988, %v992
      %v995 = vadd.f32 %v989, %v993
      %v996 = vmul.f32 %v934, 1.25
      %v997 = vmul.f32 %v935, 1.25
      %v998 = vmul.f32 %v946, %v944
      %v999 = vmul.f32 %v947, %v945
      %v1000 = vsub.f32 1.0, %v996
      %v1001 = vsub.f32 1.0, %v997
      %v1002 = vmul.f32 %v1000, %v994
      %v1003 = vmul.f32 %v1001, %v995
      %v1004 = vadd.f32 %v998, %v1002
      %v1005 = vadd.f32 %v999, %v1003
      %v1006 = vmul.f32 %v884, 0.8333333
      %v1007 = vmul.f32 %v885, 0.8333333
      %v1008 = vmul.f32 %v956, %v954
      %v1009 = vmul.f32 %v957, %v955
      %v1010 = vsub.f32 1.0, %v1006
      %v1011 = vsub.f32 1.0, %v1007
      %v1012 = vmul.f32 %v1010, %v1004
      %v1013 = vmul.f32 %v1011, %v1005
      %v1014 = vadd.f32 %v1008, %v1012
      %v1015 = vadd.f32 %v1009, %v1013
      %v1016 = vpack.c.bf16 %v1014, %v1014
      %v1017 = vpack.c.bf16 %v1015, %v1015
      %v1020 = vrot.slane %v1016, 4
      %v1021 = vrot.slane %v1017, 4
      %1024 = vst [vmem:[#allocation2 + $0x120] sm:$0xf0] %v1020
      %1025 = vst [vmem:[#allocation2 + $0x128] sm:$0xf0] %v1021
      %vm1026 = vcmp.ge.f32.partialorder %v628, 1.8
      %vm1027 = vcmp.ge.f32.partialorder %v629, 1.8
      %v1028 = vsel %vm1026, 1, 0
      %v1029 = vsel %vm1027, 1, 0
      %v1030 = vcvt.s32.f32 %v1028
      %v1031 = vcvt.s32.f32 %v1029
      %v1032 = vsub.f32 %v980, %v1030
      %v1033 = vsub.f32 %v981, %v1031
      %v1034 = vsub.f32 %v628, 1.4
      %v1035 = vsub.f32 %v629, 1.4
      %v1036 = vmul.f32 %v1034, 2.5
      %v1037 = vmul.f32 %v1035, 2.5
      %v1038 = vmul.f32 %v986, %v982
      %v1039 = vmul.f32 %v987, %v983
      %v1040 = vsub.f32 1.0, %v1036
      %v1041 = vsub.f32 1.0, %v1037
      %v1042 = vmul.f32 %v1040, %v1032
      %v1043 = vmul.f32 %v1041, %v1033
      %v1044 = vadd.f32 %v1038, %v1042
      %v1045 = vadd.f32 %v1039, %v1043
      %v1046 = vmul.f32 %v984, 1.25
      %v1047 = vmul.f32 %v985, 1.25
      %v1048 = vmul.f32 %v996, %v994
      %v1049 = vmul.f32 %v997, %v995
      %v1050 = vsub.f32 1.0, %v1046
      %v1051 = vsub.f32 1.0, %v1047
      %v1052 = vmul.f32 %v1050, %v1044
      %v1053 = vmul.f32 %v1051, %v1045
      %v1054 = vadd.f32 %v1048, %v1052
      %v1055 = vadd.f32 %v1049, %v1053
      %v1056 = vmul.f32 %v934, 0.8333333
      %v1057 = vmul.f32 %v935, 0.8333333
      %v1058 = vmul.f32 %v1006, %v1004
      %v1059 = vmul.f32 %v1007, %v1005
      %v1060 = vsub.f32 1.0, %v1056
      %v1061 = vsub.f32 1.0, %v1057
      %v1062 = vmul.f32 %v1060, %v1054
      %v1063 = vmul.f32 %v1061, %v1055
      %v1064 = vadd.f32 %v1058, %v1062
      %v1065 = vadd.f32 %v1059, %v1063
      %v1066 = vpack.c.bf16 %v1064, %v1064
      %v1067 = vpack.c.bf16 %v1065, %v1065
      %v1070 = vrot.slane %v1066, 4
      %v1071 = vrot.slane %v1067, 4
      %1074 = vst [vmem:[#allocation2 + $0x150] sm:$0xf0] %v1070
      %1075 = vst [vmem:[#allocation2 + $0x158] sm:$0xf0] %v1071
      %vm1076 = vcmp.ge.f32.partialorder %v628, 2.2
      %vm1077 = vcmp.ge.f32.partialorder %v629, 2.2
      %v1078 = vsel %vm1076, 1, 0
      %v1079 = vsel %vm1077, 1, 0
      %v1080 = vcvt.s32.f32 %v1078
      %v1081 = vcvt.s32.f32 %v1079
      %v1082 = vsub.f32 %v1030, %v1080
      %v1083 = vsub.f32 %v1031, %v1081
      %v1084 = vsub.f32 %v628, 1.8
      %v1085 = vsub.f32 %v629, 1.8
      %v1086 = vmul.f32 %v1084, 2.5
      %v1087 = vmul.f32 %v1085, 2.5
      %v1088 = vmul.f32 %v1036, %v1032
      %v1089 = vmul.f32 %v1037, %v1033
      %v1090 = vsub.f32 1.0, %v1086
      %v1091 = vsub.f32 1.0, %v1087
      %v1092 = vmul.f32 %v1090, %v1082
      %v1093 = vmul.f32 %v1091, %v1083
      %v1094 = vadd.f32 %v1088, %v1092
      %v1095 = vadd.f32 %v1089, %v1093
      %v1096 = vmul.f32 %v1034, 1.25
      %v1097 = vmul.f32 %v1035, 1.25
      %v1098 = vmul.f32 %v1046, %v1044
      %v1099 = vmul.f32 %v1047, %v1045
      %v1100 = vsub.f32 1.0, %v1096
      %v1101 = vsub.f32 1.0, %v1097
      %v1102 = vmul.f32 %v1100, %v1094
      %v1103 = vmul.f32 %v1101, %v1095
      %v1104 = vadd.f32 %v1098, %v1102
      %v1105 = vadd.f32 %v1099, %v1103
      %v1106 = vmul.f32 %v984, 0.8333333
      %v1107 = vmul.f32 %v985, 0.8333333
      %v1108 = vmul.f32 %v1056, %v1054
      %v1109 = vmul.f32 %v1057, %v1055
      %v1110 = vsub.f32 1.0, %v1106
      %v1111 = vsub.f32 1.0, %v1107
      %v1112 = vmul.f32 %v1110, %v1104
      %v1113 = vmul.f32 %v1111, %v1105
      %v1114 = vadd.f32 %v1108, %v1112
      %v1115 = vadd.f32 %v1109, %v1113
      %v1116 = vpack.c.bf16 %v1114, %v1114
      %v1117 = vpack.c.bf16 %v1115, %v1115
      %v1120 = vrot.slane %v1116, 4
      %v1121 = vrot.slane %v1117, 4
      %1124 = vst [vmem:[#allocation2 + $0x180] sm:$0xf0] %v1120
      %1125 = vst [vmem:[#allocation2 + $0x188] sm:$0xf0] %v1121
      %v1126 = vld [vmem:[%s171 + $0x20] sm:$0xff]
      %v1127 = vld [vmem:[%s171 + $0x28] sm:$0xff]
      %v1128 = vxor.u32 %v1126, 2147483648
      %v1129 = vxor.u32 %v1127, 2147483648
      %v1130 = vmul.f32 %v1128, 1.442695
      %v1131 = vpow.pop %v1130
      %v1132 = vmul.f32 %v1129, 1.442695
      %v1133 = vpow.pop %v1132
      %v1134 = vadd.f32 %v1131, 1.0
      %v1135 = vadd.f32 %v1133, 1.0
      %v1136 = vrcp.pop %v1134
      %v1137 = vmul.f32 1.0, %v1136
      %v1138 = vrcp.pop %v1135
      %v1139 = vmul.f32 1.0, %v1138
      %v1140 = vmul.f32 %v1126, %v1137
      %v1141 = vmul.f32 %v1127, %v1139
      %v1142 = vpack.c.bf16 %v1140, %v1140
      %v1143 = vpack.c.bf16 %v1141, %v1141
      %1144 = vst [vmem:[#allocation2 + $0x10] sm:$0xf] %v1142
      %1145 = vst [vmem:[#allocation2 + $0x18] sm:$0xf] %v1143
      %vm1146 = vcmp.ge.f32.partialorder %v1126, -2.2
      %vm1147 = vcmp.ge.f32.partialorder %v1127, -2.2
      %v1148 = vsel %vm1146, 1, 0
      %v1149 = vsel %vm1147, 1, 0
      %v1150 = vcvt.s32.f32 %v1148
      %v1151 = vcvt.s32.f32 %v1149
      %vm1152 = vcmp.ge.f32.partialorder %v1126, -1.8
      %vm1153 = vcmp.ge.f32.partialorder %v1127, -1.8
      %v1154 = vsel %vm1152, 1, 0
      %v1155 = vsel %vm1153, 1, 0
      %v1156 = vcvt.s32.f32 %v1154
      %v1157 = vcvt.s32.f32 %v1155
      %v1158 = vsub.f32 %v1150, %v1156
      %v1159 = vsub.f32 %v1151, %v1157
      %v1160 = vsub.f32 %v1126, -2.2
      %v1161 = vsub.f32 %v1127, -2.2
      %vm1162 = vcmp.ge.f32.partialorder %v1126, -1.4
      %vm1163 = vcmp.ge.f32.partialorder %v1127, -1.4
      %v1164 = vsel %vm1162, 1, 0
      %v1165 = vsel %vm1163, 1, 0
      %v1166 = vcvt.s32.f32 %v1164
      %v1167 = vcvt.s32.f32 %v1165
      %v1168 = vsub.f32 %v1156, %v1166
      %v1169 = vsub.f32 %v1157, %v1167
      %v1170 = vsub.f32 %v1126, -1.8
      %v1171 = vsub.f32 %v1127, -1.8
      %v1172 = vmul.f32 %v1160, 2.5
      %v1173 = vmul.f32 %v1161, 2.5
      %v1174 = vmul.f32 %v1170, 2.5
      %v1175 = vmul.f32 %v1171, 2.5
      %v1176 = vmul.f32 %v1172, %v1158
      %v1177 = vmul.f32 %v1173, %v1159
      %v1178 = vsub.f32 1.0, %v1174
      %v1179 = vsub.f32 1.0, %v1175
      %v1180 = vmul.f32 %v1178, %v1168
      %v1181 = vmul.f32 %v1179, %v1169
      %v1182 = vadd.f32 %v1176, %v1180
      %v1183 = vadd.f32 %v1177, %v1181
      %vm1184 = vcmp.ge.f32.partialorder %v1126, -1.0
      %vm1185 = vcmp.ge.f32.partialorder %v1127, -1.0
      %v1186 = vsel %vm1184, 1, 0
      %v1187 = vsel %vm1185, 1, 0
      %v1188 = vcvt.s32.f32 %v1186
      %v1189 = vcvt.s32.f32 %v1187
      %v1190 = vsub.f32 %v1166, %v1188
      %v1191 = vsub.f32 %v1167, %v1189
      %v1192 = vsub.f32 %v1126, -1.4
      %v1193 = vsub.f32 %v1127, -1.4
      %v1194 = vmul.f32 %v1192, 2.5
      %v1195 = vmul.f32 %v1193, 2.5
      %v1196 = vmul.f32 %v1174, %v1168
      %v1197 = vmul.f32 %v1175, %v1169
      %v1198 = vsub.f32 1.0, %v1194
      %v1199 = vsub.f32 1.0, %v1195
      %v1200 = vmul.f32 %v1198, %v1190
      %v1201 = vmul.f32 %v1199, %v1191
      %v1202 = vadd.f32 %v1196, %v1200
      %v1203 = vadd.f32 %v1197, %v1201
      %v1204 = vmul.f32 %v1160, 1.25
      %v1205 = vmul.f32 %v1161, 1.25
      %v1206 = vmul.f32 %v1170, 1.25
      %v1207 = vmul.f32 %v1171, 1.25
      %v1208 = vmul.f32 %v1204, %v1182
      %v1209 = vmul.f32 %v1205, %v1183
      %v1210 = vsub.f32 1.0, %v1206
      %v1211 = vsub.f32 1.0, %v1207
      %v1212 = vmul.f32 %v1210, %v1202
      %v1213 = vmul.f32 %v1211, %v1203
      %v1214 = vadd.f32 %v1208, %v1212
      %v1215 = vadd.f32 %v1209, %v1213
      %vm1216 = vcmp.ge.f32.partialorder %v1126, -0.6
      %vm1217 = vcmp.ge.f32.partialorder %v1127, -0.6
      %v1218 = vsel %vm1216, 1, 0
      %v1219 = vsel %vm1217, 1, 0
      %v1220 = vcvt.s32.f32 %v1218
      %v1221 = vcvt.s32.f32 %v1219
      %v1222 = vsub.f32 %v1188, %v1220
      %v1223 = vsub.f32 %v1189, %v1221
      %v1224 = vsub.f32 %v1126, -1.0
      %v1225 = vsub.f32 %v1127, -1.0
      %v1226 = vmul.f32 %v1224, 2.5
      %v1227 = vmul.f32 %v1225, 2.5
      %v1228 = vmul.f32 %v1194, %v1190
      %v1229 = vmul.f32 %v1195, %v1191
      %v1230 = vsub.f32 1.0, %v1226
      %v1231 = vsub.f32 1.0, %v1227
      %v1232 = vmul.f32 %v1230, %v1222
      %v1233 = vmul.f32 %v1231, %v1223
      %v1234 = vadd.f32 %v1228, %v1232
      %v1235 = vadd.f32 %v1229, %v1233
      %v1236 = vmul.f32 %v1192, 1.25
      %v1237 = vmul.f32 %v1193, 1.25
      %v1238 = vmul.f32 %v1206, %v1202
      %v1239 = vmul.f32 %v1207, %v1203
      %v1240 = vsub.f32 1.0, %v1236
      %v1241 = vsub.f32 1.0, %v1237
      %v1242 = vmul.f32 %v1240, %v1234
      %v1243 = vmul.f32 %v1241, %v1235
      %v1244 = vadd.f32 %v1238, %v1242
      %v1245 = vadd.f32 %v1239, %v1243
      %v1246 = vmul.f32 %v1160, 0.8333333
      %v1247 = vmul.f32 %v1161, 0.8333333
      %v1248 = vmul.f32 %v1170, 0.8333333
      %v1249 = vmul.f32 %v1171, 0.8333333
      %v1250 = vmul.f32 %v1246, %v1214
      %v1251 = vmul.f32 %v1247, %v1215
      %v1252 = vsub.f32 1.0, %v1248
      %v1253 = vsub.f32 1.0, %v1249
      %v1254 = vmul.f32 %v1252, %v1244
      %v1255 = vmul.f32 %v1253, %v1245
      %v1256 = vadd.f32 %v1250, %v1254
      %v1257 = vadd.f32 %v1251, %v1255
      %v1258 = vpack.c.bf16 %v1256, %v1256
      %v1259 = vpack.c.bf16 %v1257, %v1257
      %1260 = vst [vmem:[#allocation2 + $0x40] sm:$0xf] %v1258
      %1261 = vst [vmem:[#allocation2 + $0x48] sm:$0xf] %v1259
      %vm1262 = vcmp.ge.f32.partialorder %v1126, -0.2
      %vm1263 = vcmp.ge.f32.partialorder %v1127, -0.2
      %v1264 = vsel %vm1262, 1, 0
      %v1265 = vsel %vm1263, 1, 0
      %v1266 = vcvt.s32.f32 %v1264
      %v1267 = vcvt.s32.f32 %v1265
      %v1268 = vsub.f32 %v1220, %v1266
      %v1269 = vsub.f32 %v1221, %v1267
      %v1270 = vsub.f32 %v1126, -0.6
      %v1271 = vsub.f32 %v1127, -0.6
      %v1272 = vmul.f32 %v1270, 2.5
      %v1273 = vmul.f32 %v1271, 2.5
      %v1274 = vmul.f32 %v1226, %v1222
      %v1275 = vmul.f32 %v1227, %v1223
      %v1276 = vsub.f32 1.0, %v1272
      %v1277 = vsub.f32 1.0, %v1273
      %v1278 = vmul.f32 %v1276, %v1268
      %v1279 = vmul.f32 %v1277, %v1269
      %v1280 = vadd.f32 %v1274, %v1278
      %v1281 = vadd.f32 %v1275, %v1279
      %v1282 = vmul.f32 %v1224, 1.25
      %v1283 = vmul.f32 %v1225, 1.25
      %v1284 = vmul.f32 %v1236, %v1234
      %v1285 = vmul.f32 %v1237, %v1235
      %v1286 = vsub.f32 1.0, %v1282
      %v1287 = vsub.f32 1.0, %v1283
      %v1288 = vmul.f32 %v1286, %v1280
      %v1289 = vmul.f32 %v1287, %v1281
      %v1290 = vadd.f32 %v1284, %v1288
      %v1291 = vadd.f32 %v1285, %v1289
      %v1292 = vmul.f32 %v1192, 0.8333333
      %v1293 = vmul.f32 %v1193, 0.8333333
      %v1294 = vmul.f32 %v1248, %v1244
      %v1295 = vmul.f32 %v1249, %v1245
      %v1296 = vsub.f32 1.0, %v1292
      %v1297 = vsub.f32 1.0, %v1293
      %v1298 = vmul.f32 %v1296, %v1290
      %v1299 = vmul.f32 %v1297, %v1291
      %v1300 = vadd.f32 %v1294, %v1298
      %v1301 = vadd.f32 %v1295, %v1299
      %v1302 = vpack.c.bf16 %v1300, %v1300
      %v1303 = vpack.c.bf16 %v1301, %v1301
      %1304 = vst [vmem:[#allocation2 + $0x70] sm:$0xf] %v1302
      %1305 = vst [vmem:[#allocation2 + $0x78] sm:$0xf] %v1303
      %vm1306 = vcmp.ge.f32.partialorder %v1126, 0.2
      %vm1307 = vcmp.ge.f32.partialorder %v1127, 0.2
      %v1308 = vsel %vm1306, 1, 0
      %v1309 = vsel %vm1307, 1, 0
      %v1310 = vcvt.s32.f32 %v1308
      %v1311 = vcvt.s32.f32 %v1309
      %v1312 = vsub.f32 %v1266, %v1310
      %v1313 = vsub.f32 %v1267, %v1311
      %v1314 = vsub.f32 %v1126, -0.2
      %v1315 = vsub.f32 %v1127, -0.2
      %v1316 = vmul.f32 %v1314, 2.5
      %v1317 = vmul.f32 %v1315, 2.5
      %v1318 = vmul.f32 %v1272, %v1268
      %v1319 = vmul.f32 %v1273, %v1269
      %v1320 = vsub.f32 1.0, %v1316
      %v1321 = vsub.f32 1.0, %v1317
      %v1322 = vmul.f32 %v1320, %v1312
      %v1323 = vmul.f32 %v1321, %v1313
      %v1324 = vadd.f32 %v1318, %v1322
      %v1325 = vadd.f32 %v1319, %v1323
      %v1326 = vmul.f32 %v1270, 1.25
      %v1327 = vmul.f32 %v1271, 1.25
      %v1328 = vmul.f32 %v1282, %v1280
      %v1329 = vmul.f32 %v1283, %v1281
      %v1330 = vsub.f32 1.0, %v1326
      %v1331 = vsub.f32 1.0, %v1327
      %v1332 = vmul.f32 %v1330, %v1324
      %v1333 = vmul.f32 %v1331, %v1325
      %v1334 = vadd.f32 %v1328, %v1332
      %v1335 = vadd.f32 %v1329, %v1333
      %v1336 = vmul.f32 %v1224, 0.8333333
      %v1337 = vmul.f32 %v1225, 0.8333333
      %v1338 = vmul.f32 %v1292, %v1290
      %v1339 = vmul.f32 %v1293, %v1291
      %v1340 = vsub.f32 1.0, %v1336
      %v1341 = vsub.f32 1.0, %v1337
      %v1342 = vmul.f32 %v1340, %v1334
      %v1343 = vmul.f32 %v1341, %v1335
      %v1344 = vadd.f32 %v1338, %v1342
      %v1345 = vadd.f32 %v1339, %v1343
      %v1346 = vpack.c.bf16 %v1344, %v1344
      %v1347 = vpack.c.bf16 %v1345, %v1345
      %1348 = vst [vmem:[#allocation2 + $0xa0] sm:$0xf] %v1346
      %1349 = vst [vmem:[#allocation2 + $0xa8] sm:$0xf] %v1347
      %vm1350 = vcmp.ge.f32.partialorder %v1126, 0.6
      %vm1351 = vcmp.ge.f32.partialorder %v1127, 0.6
      %v1352 = vsel %vm1350, 1, 0
      %v1353 = vsel %vm1351, 1, 0
      %v1354 = vcvt.s32.f32 %v1352
      %v1355 = vcvt.s32.f32 %v1353
      %v1356 = vsub.f32 %v1310, %v1354
      %v1357 = vsub.f32 %v1311, %v1355
      %v1358 = vsub.f32 %v1126, 0.2
      %v1359 = vsub.f32 %v1127, 0.2
      %v1360 = vmul.f32 %v1358, 2.5
      %v1361 = vmul.f32 %v1359, 2.5
      %v1362 = vmul.f32 %v1316, %v1312
      %v1363 = vmul.f32 %v1317, %v1313
      %v1364 = vsub.f32 1.0, %v1360
      %v1365 = vsub.f32 1.0, %v1361
      %v1366 = vmul.f32 %v1364, %v1356
      %v1367 = vmul.f32 %v1365, %v1357
      %v1368 = vadd.f32 %v1362, %v1366
      %v1369 = vadd.f32 %v1363, %v1367
      %v1370 = vmul.f32 %v1314, 1.25
      %v1371 = vmul.f32 %v1315, 1.25
      %v1372 = vmul.f32 %v1326, %v1324
      %v1373 = vmul.f32 %v1327, %v1325
      %v1374 = vsub.f32 1.0, %v1370
      %v1375 = vsub.f32 1.0, %v1371
      %v1376 = vmul.f32 %v1374, %v1368
      %v1377 = vmul.f32 %v1375, %v1369
      %v1378 = vadd.f32 %v1372, %v1376
      %v1379 = vadd.f32 %v1373, %v1377
      %v1380 = vmul.f32 %v1270, 0.8333333
      %v1381 = vmul.f32 %v1271, 0.8333333
      %v1382 = vmul.f32 %v1336, %v1334
      %v1383 = vmul.f32 %v1337, %v1335
      %v1384 = vsub.f32 1.0, %v1380
      %v1385 = vsub.f32 1.0, %v1381
      %v1386 = vmul.f32 %v1384, %v1378
      %v1387 = vmul.f32 %v1385, %v1379
      %v1388 = vadd.f32 %v1382, %v1386
      %v1389 = vadd.f32 %v1383, %v1387
      %v1390 = vpack.c.bf16 %v1388, %v1388
      %v1391 = vpack.c.bf16 %v1389, %v1389
      %1392 = vst [vmem:[#allocation2 + $0xd0] sm:$0xf] %v1390
      %1393 = vst [vmem:[#allocation2 + $0xd8] sm:$0xf] %v1391
      %vm1394 = vcmp.ge.f32.partialorder %v1126, 1.0
      %vm1395 = vcmp.ge.f32.partialorder %v1127, 1.0
      %v1396 = vsel %vm1394, 1, 0
      %v1397 = vsel %vm1395, 1, 0
      %v1398 = vcvt.s32.f32 %v1396
      %v1399 = vcvt.s32.f32 %v1397
      %v1400 = vsub.f32 %v1354, %v1398
      %v1401 = vsub.f32 %v1355, %v1399
      %v1402 = vsub.f32 %v1126, 0.6
      %v1403 = vsub.f32 %v1127, 0.6
      %v1404 = vmul.f32 %v1402, 2.5
      %v1405 = vmul.f32 %v1403, 2.5
      %v1406 = vmul.f32 %v1360, %v1356
      %v1407 = vmul.f32 %v1361, %v1357
      %v1408 = vsub.f32 1.0, %v1404
      %v1409 = vsub.f32 1.0, %v1405
      %v1410 = vmul.f32 %v1408, %v1400
      %v1411 = vmul.f32 %v1409, %v1401
      %v1412 = vadd.f32 %v1406, %v1410
      %v1413 = vadd.f32 %v1407, %v1411
      %v1414 = vmul.f32 %v1358, 1.25
      %v1415 = vmul.f32 %v1359, 1.25
      %v1416 = vmul.f32 %v1370, %v1368
      %v1417 = vmul.f32 %v1371, %v1369
      %v1418 = vsub.f32 1.0, %v1414
      %v1419 = vsub.f32 1.0, %v1415
      %v1420 = vmul.f32 %v1418, %v1412
      %v1421 = vmul.f32 %v1419, %v1413
      %v1422 = vadd.f32 %v1416, %v1420
      %v1423 = vadd.f32 %v1417, %v1421
      %v1424 = vmul.f32 %v1314, 0.8333333
      %v1425 = vmul.f32 %v1315, 0.8333333
      %v1426 = vmul.f32 %v1380, %v1378
      %v1427 = vmul.f32 %v1381, %v1379
      %v1428 = vsub.f32 1.0, %v1424
      %v1429 = vsub.f32 1.0, %v1425
      %v1430 = vmul.f32 %v1428, %v1422
      %v1431 = vmul.f32 %v1429, %v1423
      %v1432 = vadd.f32 %v1426, %v1430
      %v1433 = vadd.f32 %v1427, %v1431
      %v1434 = vpack.c.bf16 %v1432, %v1432
      %v1435 = vpack.c.bf16 %v1433, %v1433
      %1436 = vst [vmem:[#allocation2 + $0x100] sm:$0xf] %v1434
      %1437 = vst [vmem:[#allocation2 + $0x108] sm:$0xf] %v1435
      %vm1438 = vcmp.ge.f32.partialorder %v1126, 1.4
      %vm1439 = vcmp.ge.f32.partialorder %v1127, 1.4
      %v1440 = vsel %vm1438, 1, 0
      %v1441 = vsel %vm1439, 1, 0
      %v1442 = vcvt.s32.f32 %v1440
      %v1443 = vcvt.s32.f32 %v1441
      %v1444 = vsub.f32 %v1398, %v1442
      %v1445 = vsub.f32 %v1399, %v1443
      %v1446 = vsub.f32 %v1126, 1.0
      %v1447 = vsub.f32 %v1127, 1.0
      %v1448 = vmul.f32 %v1446, 2.5
      %v1449 = vmul.f32 %v1447, 2.5
      %v1450 = vmul.f32 %v1404, %v1400
      %v1451 = vmul.f32 %v1405, %v1401
      %v1452 = vsub.f32 1.0, %v1448
      %v1453 = vsub.f32 1.0, %v1449
      %v1454 = vmul.f32 %v1452, %v1444
      %v1455 = vmul.f32 %v1453, %v1445
      %v1456 = vadd.f32 %v1450, %v1454
      %v1457 = vadd.f32 %v1451, %v1455
      %v1458 = vmul.f32 %v1402, 1.25
      %v1459 = vmul.f32 %v1403, 1.25
      %v1460 = vmul.f32 %v1414, %v1412
      %v1461 = vmul.f32 %v1415, %v1413
      %v1462 = vsub.f32 1.0, %v1458
      %v1463 = vsub.f32 1.0, %v1459
      %v1464 = vmul.f32 %v1462, %v1456
      %v1465 = vmul.f32 %v1463, %v1457
      %v1466 = vadd.f32 %v1460, %v1464
      %v1467 = vadd.f32 %v1461, %v1465
      %v1468 = vmul.f32 %v1358, 0.8333333
      %v1469 = vmul.f32 %v1359, 0.8333333
      %v1470 = vmul.f32 %v1424, %v1422
      %v1471 = vmul.f32 %v1425, %v1423
      %v1472 = vsub.f32 1.0, %v1468
      %v1473 = vsub.f32 1.0, %v1469
      %v1474 = vmul.f32 %v1472, %v1466
      %v1475 = vmul.f32 %v1473, %v1467
      %v1476 = vadd.f32 %v1470, %v1474
      %v1477 = vadd.f32 %v1471, %v1475
      %v1478 = vpack.c.bf16 %v1476, %v1476
      %v1479 = vpack.c.bf16 %v1477, %v1477
      %1480 = vst [vmem:[#allocation2 + $0x130] sm:$0xf] %v1478
      %1481 = vst [vmem:[#allocation2 + $0x138] sm:$0xf] %v1479
      %vm1482 = vcmp.ge.f32.partialorder %v1126, 1.8
      %vm1483 = vcmp.ge.f32.partialorder %v1127, 1.8
      %v1484 = vsel %vm1482, 1, 0
      %v1485 = vsel %vm1483, 1, 0
      %v1486 = vcvt.s32.f32 %v1484
      %v1487 = vcvt.s32.f32 %v1485
      %v1488 = vsub.f32 %v1442, %v1486
      %v1489 = vsub.f32 %v1443, %v1487
      %v1490 = vsub.f32 %v1126, 1.4
      %v1491 = vsub.f32 %v1127, 1.4
      %v1492 = vmul.f32 %v1490, 2.5
      %v1493 = vmul.f32 %v1491, 2.5
      %v1494 = vmul.f32 %v1448, %v1444
      %v1495 = vmul.f32 %v1449, %v1445
      %v1496 = vsub.f32 1.0, %v1492
      %v1497 = vsub.f32 1.0, %v1493
      %v1498 = vmul.f32 %v1496, %v1488
      %v1499 = vmul.f32 %v1497, %v1489
      %v1500 = vadd.f32 %v1494, %v1498
      %v1501 = vadd.f32 %v1495, %v1499
      %v1502 = vmul.f32 %v1446, 1.25
      %v1503 = vmul.f32 %v1447, 1.25
      %v1504 = vmul.f32 %v1458, %v1456
      %v1505 = vmul.f32 %v1459, %v1457
      %v1506 = vsub.f32 1.0, %v1502
      %v1507 = vsub.f32 1.0, %v1503
      %v1508 = vmul.f32 %v1506, %v1500
      %v1509 = vmul.f32 %v1507, %v1501
      %v1510 = vadd.f32 %v1504, %v1508
      %v1511 = vadd.f32 %v1505, %v1509
      %v1512 = vmul.f32 %v1402, 0.8333333
      %v1513 = vmul.f32 %v1403, 0.8333333
      %v1514 = vmul.f32 %v1468, %v1466
      %v1515 = vmul.f32 %v1469, %v1467
      %v1516 = vsub.f32 1.0, %v1512
      %v1517 = vsub.f32 1.0, %v1513
      %v1518 = vmul.f32 %v1516, %v1510
      %v1519 = vmul.f32 %v1517, %v1511
      %v1520 = vadd.f32 %v1514, %v1518
      %v1521 = vadd.f32 %v1515, %v1519
      %v1522 = vpack.c.bf16 %v1520, %v1520
      %v1523 = vpack.c.bf16 %v1521, %v1521
      %1524 = vst [vmem:[#allocation2 + $0x160] sm:$0xf] %v1522
      %1525 = vst [vmem:[#allocation2 + $0x168] sm:$0xf] %v1523
      %vm1526 = vcmp.ge.f32.partialorder %v1126, 2.2
      %vm1527 = vcmp.ge.f32.partialorder %v1127, 2.2
      %v1528 = vsel %vm1526, 1, 0
      %v1529 = vsel %vm1527, 1, 0
      %v1530 = vcvt.s32.f32 %v1528
      %v1531 = vcvt.s32.f32 %v1529
      %v1532 = vsub.f32 %v1486, %v1530
      %v1533 = vsub.f32 %v1487, %v1531
      %v1534 = vsub.f32 %v1126, 1.8
      %v1535 = vsub.f32 %v1127, 1.8
      %v1536 = vmul.f32 %v1534, 2.5
      %v1537 = vmul.f32 %v1535, 2.5
      %v1538 = vmul.f32 %v1492, %v1488
      %v1539 = vmul.f32 %v1493, %v1489
      %v1540 = vsub.f32 1.0, %v1536
      %v1541 = vsub.f32 1.0, %v1537
      %v1542 = vmul.f32 %v1540, %v1532
      %v1543 = vmul.f32 %v1541, %v1533
      %v1544 = vadd.f32 %v1538, %v1542
      %v1545 = vadd.f32 %v1539, %v1543
      %v1546 = vmul.f32 %v1490, 1.25
      %v1547 = vmul.f32 %v1491, 1.25
      %v1548 = vmul.f32 %v1502, %v1500
      %v1549 = vmul.f32 %v1503, %v1501
      %v1550 = vsub.f32 1.0, %v1546
      %v1551 = vsub.f32 1.0, %v1547
      %v1552 = vmul.f32 %v1550, %v1544
      %v1553 = vmul.f32 %v1551, %v1545
      %v1554 = vadd.f32 %v1548, %v1552
      %v1555 = vadd.f32 %v1549, %v1553
      %v1556 = vmul.f32 %v1446, 0.8333333
      %v1557 = vmul.f32 %v1447, 0.8333333
      %v1558 = vmul.f32 %v1512, %v1510
      %v1559 = vmul.f32 %v1513, %v1511
      %v1560 = vsub.f32 1.0, %v1556
      %v1561 = vsub.f32 1.0, %v1557
      %v1562 = vmul.f32 %v1560, %v1554
      %v1563 = vmul.f32 %v1561, %v1555
      %v1564 = vadd.f32 %v1558, %v1562
      %v1565 = vadd.f32 %v1559, %v1563
      %v1566 = vpack.c.bf16 %v1564, %v1564
      %v1567 = vpack.c.bf16 %v1565, %v1565
      %1568 = vst [vmem:[#allocation2 + $0x190] sm:$0xf] %v1566
      %1569 = vst [vmem:[#allocation2 + $0x198] sm:$0xf] %v1567
      %v1570 = vld [vmem:[%s171 + $0x30] sm:$0xff]
      %v1571 = vld [vmem:[%s171 + $0x38] sm:$0xff]
      %v1572 = vxor.u32 %v1570, 2147483648
      %v1573 = vxor.u32 %v1571, 2147483648
      %v1574 = vmul.f32 %v1572, 1.442695
      %v1575 = vpow.pop %v1574
      %v1576 = vmul.f32 %v1573, 1.442695
      %v1577 = vpow.pop %v1576
      %v1578 = vadd.f32 %v1575, 1.0
      %v1579 = vadd.f32 %v1577, 1.0
      %v1580 = vrcp.pop %v1578
      %v1581 = vmul.f32 1.0, %v1580
      %v1582 = vrcp.pop %v1579
      %v1583 = vmul.f32 1.0, %v1582
      %v1584 = vmul.f32 %v1570, %v1581
      %v1585 = vmul.f32 %v1571, %v1583
      %v1586 = vpack.c.bf16 %v1584, %v1584
      %v1587 = vpack.c.bf16 %v1585, %v1585
      %v1590 = vrot.slane %v1586, 4
      %v1591 = vrot.slane %v1587, 4
      %1594 = vst [vmem:[#allocation2 + $0x10] sm:$0xf0] %v1590
      %1595 = vst [vmem:[#allocation2 + $0x18] sm:$0xf0] %v1591
      %vm1596 = vcmp.ge.f32.partialorder %v1570, -2.2
      %vm1597 = vcmp.ge.f32.partialorder %v1571, -2.2
      %v1598 = vsel %vm1596, 1, 0
      %v1599 = vsel %vm1597, 1, 0
      %v1600 = vcvt.s32.f32 %v1598
      %v1601 = vcvt.s32.f32 %v1599
      %vm1602 = vcmp.ge.f32.partialorder %v1570, -1.8
      %vm1603 = vcmp.ge.f32.partialorder %v1571, -1.8
      %v1604 = vsel %vm1602, 1, 0
      %v1605 = vsel %vm1603, 1, 0
      %v1606 = vcvt.s32.f32 %v1604
      %v1607 = vcvt.s32.f32 %v1605
      %v1608 = vsub.f32 %v1600, %v1606
      %v1609 = vsub.f32 %v1601, %v1607
      %v1610 = vsub.f32 %v1570, -2.2
      %v1611 = vsub.f32 %v1571, -2.2
      %vm1612 = vcmp.ge.f32.partialorder %v1570, -1.4
      %vm1613 = vcmp.ge.f32.partialorder %v1571, -1.4
      %v1614 = vsel %vm1612, 1, 0
      %v1615 = vsel %vm1613, 1, 0
      %v1616 = vcvt.s32.f32 %v1614
      %v1617 = vcvt.s32.f32 %v1615
      %v1618 = vsub.f32 %v1606, %v1616
      %v1619 = vsub.f32 %v1607, %v1617
      %v1620 = vsub.f32 %v1570, -1.8
      %v1621 = vsub.f32 %v1571, -1.8
      %v1622 = vmul.f32 %v1610, 2.5
      %v1623 = vmul.f32 %v1611, 2.5
      %v1624 = vmul.f32 %v1620, 2.5
      %v1625 = vmul.f32 %v1621, 2.5
      %v1626 = vmul.f32 %v1622, %v1608
      %v1627 = vmul.f32 %v1623, %v1609
      %v1628 = vsub.f32 1.0, %v1624
      %v1629 = vsub.f32 1.0, %v1625
      %v1630 = vmul.f32 %v1628, %v1618
      %v1631 = vmul.f32 %v1629, %v1619
      %v1632 = vadd.f32 %v1626, %v1630
      %v1633 = vadd.f32 %v1627, %v1631
      %vm1634 = vcmp.ge.f32.partialorder %v1570, -1.0
      %vm1635 = vcmp.ge.f32.partialorder %v1571, -1.0
      %v1636 = vsel %vm1634, 1, 0
      %v1637 = vsel %vm1635, 1, 0
      %v1638 = vcvt.s32.f32 %v1636
      %v1639 = vcvt.s32.f32 %v1637
      %v1640 = vsub.f32 %v1616, %v1638
      %v1641 = vsub.f32 %v1617, %v1639
      %v1642 = vsub.f32 %v1570, -1.4
      %v1643 = vsub.f32 %v1571, -1.4
      %v1644 = vmul.f32 %v1642, 2.5
      %v1645 = vmul.f32 %v1643, 2.5
      %v1646 = vmul.f32 %v1624, %v1618
      %v1647 = vmul.f32 %v1625, %v1619
      %v1648 = vsub.f32 1.0, %v1644
      %v1649 = vsub.f32 1.0, %v1645
      %v1650 = vmul.f32 %v1648, %v1640
      %v1651 = vmul.f32 %v1649, %v1641
      %v1652 = vadd.f32 %v1646, %v1650
      %v1653 = vadd.f32 %v1647, %v1651
      %v1654 = vmul.f32 %v1610, 1.25
      %v1655 = vmul.f32 %v1611, 1.25
      %v1656 = vmul.f32 %v1620, 1.25
      %v1657 = vmul.f32 %v1621, 1.25
      %v1658 = vmul.f32 %v1654, %v1632
      %v1659 = vmul.f32 %v1655, %v1633
      %v1660 = vsub.f32 1.0, %v1656
      %v1661 = vsub.f32 1.0, %v1657
      %v1662 = vmul.f32 %v1660, %v1652
      %v1663 = vmul.f32 %v1661, %v1653
      %v1664 = vadd.f32 %v1658, %v1662
      %v1665 = vadd.f32 %v1659, %v1663
      %vm1666 = vcmp.ge.f32.partialorder %v1570, -0.6
      %vm1667 = vcmp.ge.f32.partialorder %v1571, -0.6
      %v1668 = vsel %vm1666, 1, 0
      %v1669 = vsel %vm1667, 1, 0
      %v1670 = vcvt.s32.f32 %v1668
      %v1671 = vcvt.s32.f32 %v1669
      %v1672 = vsub.f32 %v1638, %v1670
      %v1673 = vsub.f32 %v1639, %v1671
      %v1674 = vsub.f32 %v1570, -1.0
      %v1675 = vsub.f32 %v1571, -1.0
      %v1676 = vmul.f32 %v1674, 2.5
      %v1677 = vmul.f32 %v1675, 2.5
      %v1678 = vmul.f32 %v1644, %v1640
      %v1679 = vmul.f32 %v1645, %v1641
      %v1680 = vsub.f32 1.0, %v1676
      %v1681 = vsub.f32 1.0, %v1677
      %v1682 = vmul.f32 %v1680, %v1672
      %v1683 = vmul.f32 %v1681, %v1673
      %v1684 = vadd.f32 %v1678, %v1682
      %v1685 = vadd.f32 %v1679, %v1683
      %v1686 = vmul.f32 %v1642, 1.25
      %v1687 = vmul.f32 %v1643, 1.25
      %v1688 = vmul.f32 %v1656, %v1652
      %v1689 = vmul.f32 %v1657, %v1653
      %v1690 = vsub.f32 1.0, %v1686
      %v1691 = vsub.f32 1.0, %v1687
      %v1692 = vmul.f32 %v1690, %v1684
      %v1693 = vmul.f32 %v1691, %v1685
      %v1694 = vadd.f32 %v1688, %v1692
      %v1695 = vadd.f32 %v1689, %v1693
      %v1696 = vmul.f32 %v1610, 0.8333333
      %v1697 = vmul.f32 %v1611, 0.8333333
      %v1698 = vmul.f32 %v1620, 0.8333333
      %v1699 = vmul.f32 %v1621, 0.8333333
      %v1700 = vmul.f32 %v1696, %v1664
      %v1701 = vmul.f32 %v1697, %v1665
      %v1702 = vsub.f32 1.0, %v1698
      %v1703 = vsub.f32 1.0, %v1699
      %v1704 = vmul.f32 %v1702, %v1694
      %v1705 = vmul.f32 %v1703, %v1695
      %v1706 = vadd.f32 %v1700, %v1704
      %v1707 = vadd.f32 %v1701, %v1705
      %v1708 = vpack.c.bf16 %v1706, %v1706
      %v1709 = vpack.c.bf16 %v1707, %v1707
      %v1712 = vrot.slane %v1708, 4
      %v1713 = vrot.slane %v1709, 4
      %1716 = vst [vmem:[#allocation2 + $0x40] sm:$0xf0] %v1712
      %1717 = vst [vmem:[#allocation2 + $0x48] sm:$0xf0] %v1713
      %vm1718 = vcmp.ge.f32.partialorder %v1570, -0.2
      %vm1719 = vcmp.ge.f32.partialorder %v1571, -0.2
      %v1720 = vsel %vm1718, 1, 0
      %v1721 = vsel %vm1719, 1, 0
      %v1722 = vcvt.s32.f32 %v1720
      %v1723 = vcvt.s32.f32 %v1721
      %v1724 = vsub.f32 %v1670, %v1722
      %v1725 = vsub.f32 %v1671, %v1723
      %v1726 = vsub.f32 %v1570, -0.6
      %v1727 = vsub.f32 %v1571, -0.6
      %v1728 = vmul.f32 %v1726, 2.5
      %v1729 = vmul.f32 %v1727, 2.5
      %v1730 = vmul.f32 %v1676, %v1672
      %v1731 = vmul.f32 %v1677, %v1673
      %v1732 = vsub.f32 1.0, %v1728
      %v1733 = vsub.f32 1.0, %v1729
      %v1734 = vmul.f32 %v1732, %v1724
      %v1735 = vmul.f32 %v1733, %v1725
      %v1736 = vadd.f32 %v1730, %v1734
      %v1737 = vadd.f32 %v1731, %v1735
      %v1738 = vmul.f32 %v1674, 1.25
      %v1739 = vmul.f32 %v1675, 1.25
      %v1740 = vmul.f32 %v1686, %v1684
      %v1741 = vmul.f32 %v1687, %v1685
      %v1742 = vsub.f32 1.0, %v1738
      %v1743 = vsub.f32 1.0, %v1739
      %v1744 = vmul.f32 %v1742, %v1736
      %v1745 = vmul.f32 %v1743, %v1737
      %v1746 = vadd.f32 %v1740, %v1744
      %v1747 = vadd.f32 %v1741, %v1745
      %v1748 = vmul.f32 %v1642, 0.8333333
      %v1749 = vmul.f32 %v1643, 0.8333333
      %v1750 = vmul.f32 %v1698, %v1694
      %v1751 = vmul.f32 %v1699, %v1695
      %v1752 = vsub.f32 1.0, %v1748
      %v1753 = vsub.f32 1.0, %v1749
      %v1754 = vmul.f32 %v1752, %v1746
      %v1755 = vmul.f32 %v1753, %v1747
      %v1756 = vadd.f32 %v1750, %v1754
      %v1757 = vadd.f32 %v1751, %v1755
      %v1758 = vpack.c.bf16 %v1756, %v1756
      %v1759 = vpack.c.bf16 %v1757, %v1757
      %v1762 = vrot.slane %v1758, 4
      %v1763 = vrot.slane %v1759, 4
      %1766 = vst [vmem:[#allocation2 + $0x70] sm:$0xf0] %v1762
      %1767 = vst [vmem:[#allocation2 + $0x78] sm:$0xf0] %v1763
      %vm1768 = vcmp.ge.f32.partialorder %v1570, 0.2
      %vm1769 = vcmp.ge.f32.partialorder %v1571, 0.2
      %v1770 = vsel %vm1768, 1, 0
      %v1771 = vsel %vm1769, 1, 0
      %v1772 = vcvt.s32.f32 %v1770
      %v1773 = vcvt.s32.f32 %v1771
      %v1774 = vsub.f32 %v1722, %v1772
      %v1775 = vsub.f32 %v1723, %v1773
      %v1776 = vsub.f32 %v1570, -0.2
      %v1777 = vsub.f32 %v1571, -0.2
      %v1778 = vmul.f32 %v1776, 2.5
      %v1779 = vmul.f32 %v1777, 2.5
      %v1780 = vmul.f32 %v1728, %v1724
      %v1781 = vmul.f32 %v1729, %v1725
      %v1782 = vsub.f32 1.0, %v1778
      %v1783 = vsub.f32 1.0, %v1779
      %v1784 = vmul.f32 %v1782, %v1774
      %v1785 = vmul.f32 %v1783, %v1775
      %v1786 = vadd.f32 %v1780, %v1784
      %v1787 = vadd.f32 %v1781, %v1785
      %v1788 = vmul.f32 %v1726, 1.25
      %v1789 = vmul.f32 %v1727, 1.25
      %v1790 = vmul.f32 %v1738, %v1736
      %v1791 = vmul.f32 %v1739, %v1737
      %v1792 = vsub.f32 1.0, %v1788
      %v1793 = vsub.f32 1.0, %v1789
      %v1794 = vmul.f32 %v1792, %v1786
      %v1795 = vmul.f32 %v1793, %v1787
      %v1796 = vadd.f32 %v1790, %v1794
      %v1797 = vadd.f32 %v1791, %v1795
      %v1798 = vmul.f32 %v1674, 0.8333333
      %v1799 = vmul.f32 %v1675, 0.8333333
      %v1800 = vmul.f32 %v1748, %v1746
      %v1801 = vmul.f32 %v1749, %v1747
      %v1802 = vsub.f32 1.0, %v1798
      %v1803 = vsub.f32 1.0, %v1799
      %v1804 = vmul.f32 %v1802, %v1796
      %v1805 = vmul.f32 %v1803, %v1797
      %v1806 = vadd.f32 %v1800, %v1804
      %v1807 = vadd.f32 %v1801, %v1805
      %v1808 = vpack.c.bf16 %v1806, %v1806
      %v1809 = vpack.c.bf16 %v1807, %v1807
      %v1812 = vrot.slane %v1808, 4
      %v1813 = vrot.slane %v1809, 4
      %1816 = vst [vmem:[#allocation2 + $0xa0] sm:$0xf0] %v1812
      %1817 = vst [vmem:[#allocation2 + $0xa8] sm:$0xf0] %v1813
      %vm1818 = vcmp.ge.f32.partialorder %v1570, 0.6
      %vm1819 = vcmp.ge.f32.partialorder %v1571, 0.6
      %v1820 = vsel %vm1818, 1, 0
      %v1821 = vsel %vm1819, 1, 0
      %v1822 = vcvt.s32.f32 %v1820
      %v1823 = vcvt.s32.f32 %v1821
      %v1824 = vsub.f32 %v1772, %v1822
      %v1825 = vsub.f32 %v1773, %v1823
      %v1826 = vsub.f32 %v1570, 0.2
      %v1827 = vsub.f32 %v1571, 0.2
      %v1828 = vmul.f32 %v1826, 2.5
      %v1829 = vmul.f32 %v1827, 2.5
      %v1830 = vmul.f32 %v1778, %v1774
      %v1831 = vmul.f32 %v1779, %v1775
      %v1832 = vsub.f32 1.0, %v1828
      %v1833 = vsub.f32 1.0, %v1829
      %v1834 = vmul.f32 %v1832, %v1824
      %v1835 = vmul.f32 %v1833, %v1825
      %v1836 = vadd.f32 %v1830, %v1834
      %v1837 = vadd.f32 %v1831, %v1835
      %v1838 = vmul.f32 %v1776, 1.25
      %v1839 = vmul.f32 %v1777, 1.25
      %v1840 = vmul.f32 %v1788, %v1786
      %v1841 = vmul.f32 %v1789, %v1787
      %v1842 = vsub.f32 1.0, %v1838
      %v1843 = vsub.f32 1.0, %v1839
      %v1844 = vmul.f32 %v1842, %v1836
      %v1845 = vmul.f32 %v1843, %v1837
      %v1846 = vadd.f32 %v1840, %v1844
      %v1847 = vadd.f32 %v1841, %v1845
      %v1848 = vmul.f32 %v1726, 0.8333333
      %v1849 = vmul.f32 %v1727, 0.8333333
      %v1850 = vmul.f32 %v1798, %v1796
      %v1851 = vmul.f32 %v1799, %v1797
      %v1852 = vsub.f32 1.0, %v1848
      %v1853 = vsub.f32 1.0, %v1849
      %v1854 = vmul.f32 %v1852, %v1846
      %v1855 = vmul.f32 %v1853, %v1847
      %v1856 = vadd.f32 %v1850, %v1854
      %v1857 = vadd.f32 %v1851, %v1855
      %v1858 = vpack.c.bf16 %v1856, %v1856
      %v1859 = vpack.c.bf16 %v1857, %v1857
      %v1862 = vrot.slane %v1858, 4
      %v1863 = vrot.slane %v1859, 4
      %1866 = vst [vmem:[#allocation2 + $0xd0] sm:$0xf0] %v1862
      %1867 = vst [vmem:[#allocation2 + $0xd8] sm:$0xf0] %v1863
      %vm1868 = vcmp.ge.f32.partialorder %v1570, 1.0
      %vm1869 = vcmp.ge.f32.partialorder %v1571, 1.0
      %v1870 = vsel %vm1868, 1, 0
      %v1871 = vsel %vm1869, 1, 0
      %v1872 = vcvt.s32.f32 %v1870
      %v1873 = vcvt.s32.f32 %v1871
      %v1874 = vsub.f32 %v1822, %v1872
      %v1875 = vsub.f32 %v1823, %v1873
      %v1876 = vsub.f32 %v1570, 0.6
      %v1877 = vsub.f32 %v1571, 0.6
      %v1878 = vmul.f32 %v1876, 2.5
      %v1879 = vmul.f32 %v1877, 2.5
      %v1880 = vmul.f32 %v1828, %v1824
      %v1881 = vmul.f32 %v1829, %v1825
      %v1882 = vsub.f32 1.0, %v1878
      %v1883 = vsub.f32 1.0, %v1879
      %v1884 = vmul.f32 %v1882, %v1874
      %v1885 = vmul.f32 %v1883, %v1875
      %v1886 = vadd.f32 %v1880, %v1884
      %v1887 = vadd.f32 %v1881, %v1885
      %v1888 = vmul.f32 %v1826, 1.25
      %v1889 = vmul.f32 %v1827, 1.25
      %v1890 = vmul.f32 %v1838, %v1836
      %v1891 = vmul.f32 %v1839, %v1837
      %v1892 = vsub.f32 1.0, %v1888
      %v1893 = vsub.f32 1.0, %v1889
      %v1894 = vmul.f32 %v1892, %v1886
      %v1895 = vmul.f32 %v1893, %v1887
      %v1896 = vadd.f32 %v1890, %v1894
      %v1897 = vadd.f32 %v1891, %v1895
      %v1898 = vmul.f32 %v1776, 0.8333333
      %v1899 = vmul.f32 %v1777, 0.8333333
      %v1900 = vmul.f32 %v1848, %v1846
      %v1901 = vmul.f32 %v1849, %v1847
      %v1902 = vsub.f32 1.0, %v1898
      %v1903 = vsub.f32 1.0, %v1899
      %v1904 = vmul.f32 %v1902, %v1896
      %v1905 = vmul.f32 %v1903, %v1897
      %v1906 = vadd.f32 %v1900, %v1904
      %v1907 = vadd.f32 %v1901, %v1905
      %v1908 = vpack.c.bf16 %v1906, %v1906
      %v1909 = vpack.c.bf16 %v1907, %v1907
      %v1912 = vrot.slane %v1908, 4
      %v1913 = vrot.slane %v1909, 4
      %1916 = vst [vmem:[#allocation2 + $0x100] sm:$0xf0] %v1912
      %1917 = vst [vmem:[#allocation2 + $0x108] sm:$0xf0] %v1913
      %vm1918 = vcmp.ge.f32.partialorder %v1570, 1.4
      %vm1919 = vcmp.ge.f32.partialorder %v1571, 1.4
      %v1920 = vsel %vm1918, 1, 0
      %v1921 = vsel %vm1919, 1, 0
      %v1922 = vcvt.s32.f32 %v1920
      %v1923 = vcvt.s32.f32 %v1921
      %v1924 = vsub.f32 %v1872, %v1922
      %v1925 = vsub.f32 %v1873, %v1923
      %v1926 = vsub.f32 %v1570, 1.0
      %v1927 = vsub.f32 %v1571, 1.0
      %v1928 = vmul.f32 %v1926, 2.5
      %v1929 = vmul.f32 %v1927, 2.5
      %v1930 = vmul.f32 %v1878, %v1874
      %v1931 = vmul.f32 %v1879, %v1875
      %v1932 = vsub.f32 1.0, %v1928
      %v1933 = vsub.f32 1.0, %v1929
      %v1934 = vmul.f32 %v1932, %v1924
      %v1935 = vmul.f32 %v1933, %v1925
      %v1936 = vadd.f32 %v1930, %v1934
      %v1937 = vadd.f32 %v1931, %v1935
      %v1938 = vmul.f32 %v1876, 1.25
      %v1939 = vmul.f32 %v1877, 1.25
      %v1940 = vmul.f32 %v1888, %v1886
      %v1941 = vmul.f32 %v1889, %v1887
      %v1942 = vsub.f32 1.0, %v1938
      %v1943 = vsub.f32 1.0, %v1939
      %v1944 = vmul.f32 %v1942, %v1936
      %v1945 = vmul.f32 %v1943, %v1937
      %v1946 = vadd.f32 %v1940, %v1944
      %v1947 = vadd.f32 %v1941, %v1945
      %v1948 = vmul.f32 %v1826, 0.8333333
      %v1949 = vmul.f32 %v1827, 0.8333333
      %v1950 = vmul.f32 %v1898, %v1896
      %v1951 = vmul.f32 %v1899, %v1897
      %v1952 = vsub.f32 1.0, %v1948
      %v1953 = vsub.f32 1.0, %v1949
      %v1954 = vmul.f32 %v1952, %v1946
      %v1955 = vmul.f32 %v1953, %v1947
      %v1956 = vadd.f32 %v1950, %v1954
      %v1957 = vadd.f32 %v1951, %v1955
      %v1958 = vpack.c.bf16 %v1956, %v1956
      %v1959 = vpack.c.bf16 %v1957, %v1957
      %v1962 = vrot.slane %v1958, 4
      %v1963 = vrot.slane %v1959, 4
      %1966 = vst [vmem:[#allocation2 + $0x130] sm:$0xf0] %v1962
      %1967 = vst [vmem:[#allocation2 + $0x138] sm:$0xf0] %v1963
      %vm1968 = vcmp.ge.f32.partialorder %v1570, 1.8
      %vm1969 = vcmp.ge.f32.partialorder %v1571, 1.8
      %v1970 = vsel %vm1968, 1, 0
      %v1971 = vsel %vm1969, 1, 0
      %v1972 = vcvt.s32.f32 %v1970
      %v1973 = vcvt.s32.f32 %v1971
      %v1974 = vsub.f32 %v1922, %v1972
      %v1975 = vsub.f32 %v1923, %v1973
      %v1976 = vsub.f32 %v1570, 1.4
      %v1977 = vsub.f32 %v1571, 1.4
      %v1978 = vmul.f32 %v1976, 2.5
      %v1979 = vmul.f32 %v1977, 2.5
      %v1980 = vmul.f32 %v1928, %v1924
      %v1981 = vmul.f32 %v1929, %v1925
      %v1982 = vsub.f32 1.0, %v1978
      %v1983 = vsub.f32 1.0, %v1979
      %v1984 = vmul.f32 %v1982, %v1974
      %v1985 = vmul.f32 %v1983, %v1975
      %v1986 = vadd.f32 %v1980, %v1984
      %v1987 = vadd.f32 %v1981, %v1985
      %v1988 = vmul.f32 %v1926, 1.25
      %v1989 = vmul.f32 %v1927, 1.25
      %v1990 = vmul.f32 %v1938, %v1936
      %v1991 = vmul.f32 %v1939, %v1937
      %v1992 = vsub.f32 1.0, %v1988
      %v1993 = vsub.f32 1.0, %v1989
      %v1994 = vmul.f32 %v1992, %v1986
      %v1995 = vmul.f32 %v1993, %v1987
      %v1996 = vadd.f32 %v1990, %v1994
      %v1997 = vadd.f32 %v1991, %v1995
      %v1998 = vmul.f32 %v1876, 0.8333333
      %v1999 = vmul.f32 %v1877, 0.8333333
      %v2000 = vmul.f32 %v1948, %v1946
      %v2001 = vmul.f32 %v1949, %v1947
      %v2002 = vsub.f32 1.0, %v1998
      %v2003 = vsub.f32 1.0, %v1999
      %v2004 = vmul.f32 %v2002, %v1996
      %v2005 = vmul.f32 %v2003, %v1997
      %v2006 = vadd.f32 %v2000, %v2004
      %v2007 = vadd.f32 %v2001, %v2005
      %v2008 = vpack.c.bf16 %v2006, %v2006
      %v2009 = vpack.c.bf16 %v2007, %v2007
      %v2012 = vrot.slane %v2008, 4
      %v2013 = vrot.slane %v2009, 4
      %2016 = vst [vmem:[#allocation2 + $0x160] sm:$0xf0] %v2012
      %2017 = vst [vmem:[#allocation2 + $0x168] sm:$0xf0] %v2013
      %vm2018 = vcmp.ge.f32.partialorder %v1570, 2.2
      %vm2019 = vcmp.ge.f32.partialorder %v1571, 2.2
      %v2020 = vsel %vm2018, 1, 0
      %v2021 = vsel %vm2019, 1, 0
      %v2022 = vcvt.s32.f32 %v2020
      %v2023 = vcvt.s32.f32 %v2021
      %v2024 = vsub.f32 %v1972, %v2022
      %v2025 = vsub.f32 %v1973, %v2023
      %v2026 = vsub.f32 %v1570, 1.8
      %v2027 = vsub.f32 %v1571, 1.8
      %v2028 = vmul.f32 %v2026, 2.5
      %v2029 = vmul.f32 %v2027, 2.5
      %v2030 = vmul.f32 %v1978, %v1974
      %v2031 = vmul.f32 %v1979, %v1975
      %v2032 = vsub.f32 1.0, %v2028
      %v2033 = vsub.f32 1.0, %v2029
      %v2034 = vmul.f32 %v2032, %v2024
      %v2035 = vmul.f32 %v2033, %v2025
      %v2036 = vadd.f32 %v2030, %v2034
      %v2037 = vadd.f32 %v2031, %v2035
      %v2038 = vmul.f32 %v1976, 1.25
      %v2039 = vmul.f32 %v1977, 1.25
      %v2040 = vmul.f32 %v1988, %v1986
      %v2041 = vmul.f32 %v1989, %v1987
      %v2042 = vsub.f32 1.0, %v2038
      %v2043 = vsub.f32 1.0, %v2039
      %v2044 = vmul.f32 %v2042, %v2036
      %v2045 = vmul.f32 %v2043, %v2037
      %v2046 = vadd.f32 %v2040, %v2044
      %v2047 = vadd.f32 %v2041, %v2045
      %v2048 = vmul.f32 %v1926, 0.8333333
      %v2049 = vmul.f32 %v1927, 0.8333333
      %v2050 = vmul.f32 %v1998, %v1996
      %v2051 = vmul.f32 %v1999, %v1997
      %v2052 = vsub.f32 1.0, %v2048
      %v2053 = vsub.f32 1.0, %v2049
      %v2054 = vmul.f32 %v2052, %v2046
      %v2055 = vmul.f32 %v2053, %v2047
      %v2056 = vadd.f32 %v2050, %v2054
      %v2057 = vadd.f32 %v2051, %v2055
      %v2058 = vpack.c.bf16 %v2056, %v2056
      %v2059 = vpack.c.bf16 %v2057, %v2057
      %v2062 = vrot.slane %v2058, 4
      %v2063 = vrot.slane %v2059, 4
      %2066 = vst [vmem:[#allocation2 + $0x190] sm:$0xf0] %v2062
      %2067 = vst [vmem:[#allocation2 + $0x198] sm:$0xf0] %v2063
      %v2068 = vld [vmem:[%s171 + $0x40] sm:$0xff]
      %v2069 = vld [vmem:[%s171 + $0x48] sm:$0xff]
      %v2070 = vxor.u32 %v2068, 2147483648
      %v2071 = vxor.u32 %v2069, 2147483648
      %v2072 = vmul.f32 %v2070, 1.442695
      %v2073 = vpow.pop %v2072
      %v2074 = vmul.f32 %v2071, 1.442695
      %v2075 = vpow.pop %v2074
      %v2076 = vadd.f32 %v2073, 1.0
      %v2077 = vadd.f32 %v2075, 1.0
      %v2078 = vrcp.pop %v2076
      %v2079 = vmul.f32 1.0, %v2078
      %v2080 = vrcp.pop %v2077
      %v2081 = vmul.f32 1.0, %v2080
      %v2082 = vmul.f32 %v2068, %v2079
      %v2083 = vmul.f32 %v2069, %v2081
      %v2084 = vpack.c.bf16 %v2082, %v2082
      %v2085 = vpack.c.bf16 %v2083, %v2083
      %2086 = vst [vmem:[#allocation2 + $0x20] sm:$0xf] %v2084
      %2087 = vst [vmem:[#allocation2 + $0x28] sm:$0xf] %v2085
      %vm2088 = vcmp.ge.f32.partialorder %v2068, -2.2
      %vm2089 = vcmp.ge.f32.partialorder %v2069, -2.2
      %v2090 = vsel %vm2088, 1, 0
      %v2091 = vsel %vm2089, 1, 0
      %v2092 = vcvt.s32.f32 %v2090
      %v2093 = vcvt.s32.f32 %v2091
      %vm2094 = vcmp.ge.f32.partialorder %v2068, -1.8
      %vm2095 = vcmp.ge.f32.partialorder %v2069, -1.8
      %v2096 = vsel %vm2094, 1, 0
      %v2097 = vsel %vm2095, 1, 0
      %v2098 = vcvt.s32.f32 %v2096
      %v2099 = vcvt.s32.f32 %v2097
      %v2100 = vsub.f32 %v2092, %v2098
      %v2101 = vsub.f32 %v2093, %v2099
      %v2102 = vsub.f32 %v2068, -2.2
      %v2103 = vsub.f32 %v2069, -2.2
      %vm2104 = vcmp.ge.f32.partialorder %v2068, -1.4
      %vm2105 = vcmp.ge.f32.partialorder %v2069, -1.4
      %v2106 = vsel %vm2104, 1, 0
      %v2107 = vsel %vm2105, 1, 0
      %v2108 = vcvt.s32.f32 %v2106
      %v2109 = vcvt.s32.f32 %v2107
      %v2110 = vsub.f32 %v2098, %v2108
      %v2111 = vsub.f32 %v2099, %v2109
      %v2112 = vsub.f32 %v2068, -1.8
      %v2113 = vsub.f32 %v2069, -1.8
      %v2114 = vmul.f32 %v2102, 2.5
      %v2115 = vmul.f32 %v2103, 2.5
      %v2116 = vmul.f32 %v2112, 2.5
      %v2117 = vmul.f32 %v2113, 2.5
      %v2118 = vmul.f32 %v2114, %v2100
      %v2119 = vmul.f32 %v2115, %v2101
      %v2120 = vsub.f32 1.0, %v2116
      %v2121 = vsub.f32 1.0, %v2117
      %v2122 = vmul.f32 %v2120, %v2110
      %v2123 = vmul.f32 %v2121, %v2111
      %v2124 = vadd.f32 %v2118, %v2122
      %v2125 = vadd.f32 %v2119, %v2123
      %vm2126 = vcmp.ge.f32.partialorder %v2068, -1.0
      %vm2127 = vcmp.ge.f32.partialorder %v2069, -1.0
      %v2128 = vsel %vm2126, 1, 0
      %v2129 = vsel %vm2127, 1, 0
      %v2130 = vcvt.s32.f32 %v2128
      %v2131 = vcvt.s32.f32 %v2129
      %v2132 = vsub.f32 %v2108, %v2130
      %v2133 = vsub.f32 %v2109, %v2131
      %v2134 = vsub.f32 %v2068, -1.4
      %v2135 = vsub.f32 %v2069, -1.4
      %v2136 = vmul.f32 %v2134, 2.5
      %v2137 = vmul.f32 %v2135, 2.5
      %v2138 = vmul.f32 %v2116, %v2110
      %v2139 = vmul.f32 %v2117, %v2111
      %v2140 = vsub.f32 1.0, %v2136
      %v2141 = vsub.f32 1.0, %v2137
      %v2142 = vmul.f32 %v2140, %v2132
      %v2143 = vmul.f32 %v2141, %v2133
      %v2144 = vadd.f32 %v2138, %v2142
      %v2145 = vadd.f32 %v2139, %v2143
      %v2146 = vmul.f32 %v2102, 1.25
      %v2147 = vmul.f32 %v2103, 1.25
      %v2148 = vmul.f32 %v2112, 1.25
      %v2149 = vmul.f32 %v2113, 1.25
      %v2150 = vmul.f32 %v2146, %v2124
      %v2151 = vmul.f32 %v2147, %v2125
      %v2152 = vsub.f32 1.0, %v2148
      %v2153 = vsub.f32 1.0, %v2149
      %v2154 = vmul.f32 %v2152, %v2144
      %v2155 = vmul.f32 %v2153, %v2145
      %v2156 = vadd.f32 %v2150, %v2154
      %v2157 = vadd.f32 %v2151, %v2155
      %vm2158 = vcmp.ge.f32.partialorder %v2068, -0.6
      %vm2159 = vcmp.ge.f32.partialorder %v2069, -0.6
      %v2160 = vsel %vm2158, 1, 0
      %v2161 = vsel %vm2159, 1, 0
      %v2162 = vcvt.s32.f32 %v2160
      %v2163 = vcvt.s32.f32 %v2161
      %v2164 = vsub.f32 %v2130, %v2162
      %v2165 = vsub.f32 %v2131, %v2163
      %v2166 = vsub.f32 %v2068, -1.0
      %v2167 = vsub.f32 %v2069, -1.0
      %v2168 = vmul.f32 %v2166, 2.5
      %v2169 = vmul.f32 %v2167, 2.5
      %v2170 = vmul.f32 %v2136, %v2132
      %v2171 = vmul.f32 %v2137, %v2133
      %v2172 = vsub.f32 1.0, %v2168
      %v2173 = vsub.f32 1.0, %v2169
      %v2174 = vmul.f32 %v2172, %v2164
      %v2175 = vmul.f32 %v2173, %v2165
      %v2176 = vadd.f32 %v2170, %v2174
      %v2177 = vadd.f32 %v2171, %v2175
      %v2178 = vmul.f32 %v2134, 1.25
      %v2179 = vmul.f32 %v2135, 1.25
      %v2180 = vmul.f32 %v2148, %v2144
      %v2181 = vmul.f32 %v2149, %v2145
      %v2182 = vsub.f32 1.0, %v2178
      %v2183 = vsub.f32 1.0, %v2179
      %v2184 = vmul.f32 %v2182, %v2176
      %v2185 = vmul.f32 %v2183, %v2177
      %v2186 = vadd.f32 %v2180, %v2184
      %v2187 = vadd.f32 %v2181, %v2185
      %v2188 = vmul.f32 %v2102, 0.8333333
      %v2189 = vmul.f32 %v2103, 0.8333333
      %v2190 = vmul.f32 %v2112, 0.8333333
      %v2191 = vmul.f32 %v2113, 0.8333333
      %v2192 = vmul.f32 %v2188, %v2156
      %v2193 = vmul.f32 %v2189, %v2157
      %v2194 = vsub.f32 1.0, %v2190
      %v2195 = vsub.f32 1.0, %v2191
      %v2196 = vmul.f32 %v2194, %v2186
      %v2197 = vmul.f32 %v2195, %v2187
      %v2198 = vadd.f32 %v2192, %v2196
      %v2199 = vadd.f32 %v2193, %v2197
      %v2200 = vpack.c.bf16 %v2198, %v2198
      %v2201 = vpack.c.bf16 %v2199, %v2199
      %2202 = vst [vmem:[#allocation2 + $0x50] sm:$0xf] %v2200
      %2203 = vst [vmem:[#allocation2 + $0x58] sm:$0xf] %v2201
      %vm2204 = vcmp.ge.f32.partialorder %v2068, -0.2
      %vm2205 = vcmp.ge.f32.partialorder %v2069, -0.2
      %v2206 = vsel %vm2204, 1, 0
      %v2207 = vsel %vm2205, 1, 0
      %v2208 = vcvt.s32.f32 %v2206
      %v2209 = vcvt.s32.f32 %v2207
      %v2210 = vsub.f32 %v2162, %v2208
      %v2211 = vsub.f32 %v2163, %v2209
      %v2212 = vsub.f32 %v2068, -0.6
      %v2213 = vsub.f32 %v2069, -0.6
      %v2214 = vmul.f32 %v2212, 2.5
      %v2215 = vmul.f32 %v2213, 2.5
      %v2216 = vmul.f32 %v2168, %v2164
      %v2217 = vmul.f32 %v2169, %v2165
      %v2218 = vsub.f32 1.0, %v2214
      %v2219 = vsub.f32 1.0, %v2215
      %v2220 = vmul.f32 %v2218, %v2210
      %v2221 = vmul.f32 %v2219, %v2211
      %v2222 = vadd.f32 %v2216, %v2220
      %v2223 = vadd.f32 %v2217, %v2221
      %v2224 = vmul.f32 %v2166, 1.25
      %v2225 = vmul.f32 %v2167, 1.25
      %v2226 = vmul.f32 %v2178, %v2176
      %v2227 = vmul.f32 %v2179, %v2177
      %v2228 = vsub.f32 1.0, %v2224
      %v2229 = vsub.f32 1.0, %v2225
      %v2230 = vmul.f32 %v2228, %v2222
      %v2231 = vmul.f32 %v2229, %v2223
      %v2232 = vadd.f32 %v2226, %v2230
      %v2233 = vadd.f32 %v2227, %v2231
      %v2234 = vmul.f32 %v2134, 0.8333333
      %v2235 = vmul.f32 %v2135, 0.8333333
      %v2236 = vmul.f32 %v2190, %v2186
      %v2237 = vmul.f32 %v2191, %v2187
      %v2238 = vsub.f32 1.0, %v2234
      %v2239 = vsub.f32 1.0, %v2235
      %v2240 = vmul.f32 %v2238, %v2232
      %v2241 = vmul.f32 %v2239, %v2233
      %v2242 = vadd.f32 %v2236, %v2240
      %v2243 = vadd.f32 %v2237, %v2241
      %v2244 = vpack.c.bf16 %v2242, %v2242
      %v2245 = vpack.c.bf16 %v2243, %v2243
      %2246 = vst [vmem:[#allocation2 + $0x80] sm:$0xf] %v2244
      %2247 = vst [vmem:[#allocation2 + $0x88] sm:$0xf] %v2245
      %vm2248 = vcmp.ge.f32.partialorder %v2068, 0.2
      %vm2249 = vcmp.ge.f32.partialorder %v2069, 0.2
      %v2250 = vsel %vm2248, 1, 0
      %v2251 = vsel %vm2249, 1, 0
      %v2252 = vcvt.s32.f32 %v2250
      %v2253 = vcvt.s32.f32 %v2251
      %v2254 = vsub.f32 %v2208, %v2252
      %v2255 = vsub.f32 %v2209, %v2253
      %v2256 = vsub.f32 %v2068, -0.2
      %v2257 = vsub.f32 %v2069, -0.2
      %v2258 = vmul.f32 %v2256, 2.5
      %v2259 = vmul.f32 %v2257, 2.5
      %v2260 = vmul.f32 %v2214, %v2210
      %v2261 = vmul.f32 %v2215, %v2211
      %v2262 = vsub.f32 1.0, %v2258
      %v2263 = vsub.f32 1.0, %v2259
      %v2264 = vmul.f32 %v2262, %v2254
      %v2265 = vmul.f32 %v2263, %v2255
      %v2266 = vadd.f32 %v2260, %v2264
      %v2267 = vadd.f32 %v2261, %v2265
      %v2268 = vmul.f32 %v2212, 1.25
      %v2269 = vmul.f32 %v2213, 1.25
      %v2270 = vmul.f32 %v2224, %v2222
      %v2271 = vmul.f32 %v2225, %v2223
      %v2272 = vsub.f32 1.0, %v2268
      %v2273 = vsub.f32 1.0, %v2269
      %v2274 = vmul.f32 %v2272, %v2266
      %v2275 = vmul.f32 %v2273, %v2267
      %v2276 = vadd.f32 %v2270, %v2274
      %v2277 = vadd.f32 %v2271, %v2275
      %v2278 = vmul.f32 %v2166, 0.8333333
      %v2279 = vmul.f32 %v2167, 0.8333333
      %v2280 = vmul.f32 %v2234, %v2232
      %v2281 = vmul.f32 %v2235, %v2233
      %v2282 = vsub.f32 1.0, %v2278
      %v2283 = vsub.f32 1.0, %v2279
      %v2284 = vmul.f32 %v2282, %v2276
      %v2285 = vmul.f32 %v2283, %v2277
      %v2286 = vadd.f32 %v2280, %v2284
      %v2287 = vadd.f32 %v2281, %v2285
      %v2288 = vpack.c.bf16 %v2286, %v2286
      %v2289 = vpack.c.bf16 %v2287, %v2287
      %2290 = vst [vmem:[#allocation2 + $0xb0] sm:$0xf] %v2288
      %2291 = vst [vmem:[#allocation2 + $0xb8] sm:$0xf] %v2289
      %vm2292 = vcmp.ge.f32.partialorder %v2068, 0.6
      %vm2293 = vcmp.ge.f32.partialorder %v2069, 0.6
      %v2294 = vsel %vm2292, 1, 0
      %v2295 = vsel %vm2293, 1, 0
      %v2296 = vcvt.s32.f32 %v2294
      %v2297 = vcvt.s32.f32 %v2295
      %v2298 = vsub.f32 %v2252, %v2296
      %v2299 = vsub.f32 %v2253, %v2297
      %v2300 = vsub.f32 %v2068, 0.2
      %v2301 = vsub.f32 %v2069, 0.2
      %v2302 = vmul.f32 %v2300, 2.5
      %v2303 = vmul.f32 %v2301, 2.5
      %v2304 = vmul.f32 %v2258, %v2254
      %v2305 = vmul.f32 %v2259, %v2255
      %v2306 = vsub.f32 1.0, %v2302
      %v2307 = vsub.f32 1.0, %v2303
      %v2308 = vmul.f32 %v2306, %v2298
      %v2309 = vmul.f32 %v2307, %v2299
      %v2310 = vadd.f32 %v2304, %v2308
      %v2311 = vadd.f32 %v2305, %v2309
      %v2312 = vmul.f32 %v2256, 1.25
      %v2313 = vmul.f32 %v2257, 1.25
      %v2314 = vmul.f32 %v2268, %v2266
      %v2315 = vmul.f32 %v2269, %v2267
      %v2316 = vsub.f32 1.0, %v2312
      %v2317 = vsub.f32 1.0, %v2313
      %v2318 = vmul.f32 %v2316, %v2310
      %v2319 = vmul.f32 %v2317, %v2311
      %v2320 = vadd.f32 %v2314, %v2318
      %v2321 = vadd.f32 %v2315, %v2319
      %v2322 = vmul.f32 %v2212, 0.8333333
      %v2323 = vmul.f32 %v2213, 0.8333333
      %v2324 = vmul.f32 %v2278, %v2276
      %v2325 = vmul.f32 %v2279, %v2277
      %v2326 = vsub.f32 1.0, %v2322
      %v2327 = vsub.f32 1.0, %v2323
      %v2328 = vmul.f32 %v2326, %v2320
      %v2329 = vmul.f32 %v2327, %v2321
      %v2330 = vadd.f32 %v2324, %v2328
      %v2331 = vadd.f32 %v2325, %v2329
      %v2332 = vpack.c.bf16 %v2330, %v2330
      %v2333 = vpack.c.bf16 %v2331, %v2331
      %2334 = vst [vmem:[#allocation2 + $0xe0] sm:$0xf] %v2332
      %2335 = vst [vmem:[#allocation2 + $0xe8] sm:$0xf] %v2333
      %vm2336 = vcmp.ge.f32.partialorder %v2068, 1.0
      %vm2337 = vcmp.ge.f32.partialorder %v2069, 1.0
      %v2338 = vsel %vm2336, 1, 0
      %v2339 = vsel %vm2337, 1, 0
      %v2340 = vcvt.s32.f32 %v2338
      %v2341 = vcvt.s32.f32 %v2339
      %v2342 = vsub.f32 %v2296, %v2340
      %v2343 = vsub.f32 %v2297, %v2341
      %v2344 = vsub.f32 %v2068, 0.6
      %v2345 = vsub.f32 %v2069, 0.6
      %v2346 = vmul.f32 %v2344, 2.5
      %v2347 = vmul.f32 %v2345, 2.5
      %v2348 = vmul.f32 %v2302, %v2298
      %v2349 = vmul.f32 %v2303, %v2299
      %v2350 = vsub.f32 1.0, %v2346
      %v2351 = vsub.f32 1.0, %v2347
      %v2352 = vmul.f32 %v2350, %v2342
      %v2353 = vmul.f32 %v2351, %v2343
      %v2354 = vadd.f32 %v2348, %v2352
      %v2355 = vadd.f32 %v2349, %v2353
      %v2356 = vmul.f32 %v2300, 1.25
      %v2357 = vmul.f32 %v2301, 1.25
      %v2358 = vmul.f32 %v2312, %v2310
      %v2359 = vmul.f32 %v2313, %v2311
      %v2360 = vsub.f32 1.0, %v2356
      %v2361 = vsub.f32 1.0, %v2357
      %v2362 = vmul.f32 %v2360, %v2354
      %v2363 = vmul.f32 %v2361, %v2355
      %v2364 = vadd.f32 %v2358, %v2362
      %v2365 = vadd.f32 %v2359, %v2363
      %v2366 = vmul.f32 %v2256, 0.8333333
      %v2367 = vmul.f32 %v2257, 0.8333333
      %v2368 = vmul.f32 %v2322, %v2320
      %v2369 = vmul.f32 %v2323, %v2321
      %v2370 = vsub.f32 1.0, %v2366
      %v2371 = vsub.f32 1.0, %v2367
      %v2372 = vmul.f32 %v2370, %v2364
      %v2373 = vmul.f32 %v2371, %v2365
      %v2374 = vadd.f32 %v2368, %v2372
      %v2375 = vadd.f32 %v2369, %v2373
      %v2376 = vpack.c.bf16 %v2374, %v2374
      %v2377 = vpack.c.bf16 %v2375, %v2375
      %2378 = vst [vmem:[#allocation2 + $0x110] sm:$0xf] %v2376
      %2379 = vst [vmem:[#allocation2 + $0x118] sm:$0xf] %v2377
      %vm2380 = vcmp.ge.f32.partialorder %v2068, 1.4
      %vm2381 = vcmp.ge.f32.partialorder %v2069, 1.4
      %v2382 = vsel %vm2380, 1, 0
      %v2383 = vsel %vm2381, 1, 0
      %v2384 = vcvt.s32.f32 %v2382
      %v2385 = vcvt.s32.f32 %v2383
      %v2386 = vsub.f32 %v2340, %v2384
      %v2387 = vsub.f32 %v2341, %v2385
      %v2388 = vsub.f32 %v2068, 1.0
      %v2389 = vsub.f32 %v2069, 1.0
      %v2390 = vmul.f32 %v2388, 2.5
      %v2391 = vmul.f32 %v2389, 2.5
      %v2392 = vmul.f32 %v2346, %v2342
      %v2393 = vmul.f32 %v2347, %v2343
      %v2394 = vsub.f32 1.0, %v2390
      %v2395 = vsub.f32 1.0, %v2391
      %v2396 = vmul.f32 %v2394, %v2386
      %v2397 = vmul.f32 %v2395, %v2387
      %v2398 = vadd.f32 %v2392, %v2396
      %v2399 = vadd.f32 %v2393, %v2397
      %v2400 = vmul.f32 %v2344, 1.25
      %v2401 = vmul.f32 %v2345, 1.25
      %v2402 = vmul.f32 %v2356, %v2354
      %v2403 = vmul.f32 %v2357, %v2355
      %v2404 = vsub.f32 1.0, %v2400
      %v2405 = vsub.f32 1.0, %v2401
      %v2406 = vmul.f32 %v2404, %v2398
      %v2407 = vmul.f32 %v2405, %v2399
      %v2408 = vadd.f32 %v2402, %v2406
      %v2409 = vadd.f32 %v2403, %v2407
      %v2410 = vmul.f32 %v2300, 0.8333333
      %v2411 = vmul.f32 %v2301, 0.8333333
      %v2412 = vmul.f32 %v2366, %v2364
      %v2413 = vmul.f32 %v2367, %v2365
      %v2414 = vsub.f32 1.0, %v2410
      %v2415 = vsub.f32 1.0, %v2411
      %v2416 = vmul.f32 %v2414, %v2408
      %v2417 = vmul.f32 %v2415, %v2409
      %v2418 = vadd.f32 %v2412, %v2416
      %v2419 = vadd.f32 %v2413, %v2417
      %v2420 = vpack.c.bf16 %v2418, %v2418
      %v2421 = vpack.c.bf16 %v2419, %v2419
      %2422 = vst [vmem:[#allocation2 + $0x140] sm:$0xf] %v2420
      %2423 = vst [vmem:[#allocation2 + $0x148] sm:$0xf] %v2421
      %vm2424 = vcmp.ge.f32.partialorder %v2068, 1.8
      %vm2425 = vcmp.ge.f32.partialorder %v2069, 1.8
      %v2426 = vsel %vm2424, 1, 0
      %v2427 = vsel %vm2425, 1, 0
      %v2428 = vcvt.s32.f32 %v2426
      %v2429 = vcvt.s32.f32 %v2427
      %v2430 = vsub.f32 %v2384, %v2428
      %v2431 = vsub.f32 %v2385, %v2429
      %v2432 = vsub.f32 %v2068, 1.4
      %v2433 = vsub.f32 %v2069, 1.4
      %v2434 = vmul.f32 %v2432, 2.5
      %v2435 = vmul.f32 %v2433, 2.5
      %v2436 = vmul.f32 %v2390, %v2386
      %v2437 = vmul.f32 %v2391, %v2387
      %v2438 = vsub.f32 1.0, %v2434
      %v2439 = vsub.f32 1.0, %v2435
      %v2440 = vmul.f32 %v2438, %v2430
      %v2441 = vmul.f32 %v2439, %v2431
      %v2442 = vadd.f32 %v2436, %v2440
      %v2443 = vadd.f32 %v2437, %v2441
      %v2444 = vmul.f32 %v2388, 1.25
      %v2445 = vmul.f32 %v2389, 1.25
      %v2446 = vmul.f32 %v2400, %v2398
      %v2447 = vmul.f32 %v2401, %v2399
      %v2448 = vsub.f32 1.0, %v2444
      %v2449 = vsub.f32 1.0, %v2445
      %v2450 = vmul.f32 %v2448, %v2442
      %v2451 = vmul.f32 %v2449, %v2443
      %v2452 = vadd.f32 %v2446, %v2450
      %v2453 = vadd.f32 %v2447, %v2451
      %v2454 = vmul.f32 %v2344, 0.8333333
      %v2455 = vmul.f32 %v2345, 0.8333333
      %v2456 = vmul.f32 %v2410, %v2408
      %v2457 = vmul.f32 %v2411, %v2409
      %v2458 = vsub.f32 1.0, %v2454
      %v2459 = vsub.f32 1.0, %v2455
      %v2460 = vmul.f32 %v2458, %v2452
      %v2461 = vmul.f32 %v2459, %v2453
      %v2462 = vadd.f32 %v2456, %v2460
      %v2463 = vadd.f32 %v2457, %v2461
      %v2464 = vpack.c.bf16 %v2462, %v2462
      %v2465 = vpack.c.bf16 %v2463, %v2463
      %2466 = vst [vmem:[#allocation2 + $0x170] sm:$0xf] %v2464
      %2467 = vst [vmem:[#allocation2 + $0x178] sm:$0xf] %v2465
      %vm2468 = vcmp.ge.f32.partialorder %v2068, 2.2
      %vm2469 = vcmp.ge.f32.partialorder %v2069, 2.2
      %v2470 = vsel %vm2468, 1, 0
      %v2471 = vsel %vm2469, 1, 0
      %v2472 = vcvt.s32.f32 %v2470
      %v2473 = vcvt.s32.f32 %v2471
      %v2474 = vsub.f32 %v2428, %v2472
      %v2475 = vsub.f32 %v2429, %v2473
      %v2476 = vsub.f32 %v2068, 1.8
      %v2477 = vsub.f32 %v2069, 1.8
      %v2478 = vmul.f32 %v2476, 2.5
      %v2479 = vmul.f32 %v2477, 2.5
      %v2480 = vmul.f32 %v2434, %v2430
      %v2481 = vmul.f32 %v2435, %v2431
      %v2482 = vsub.f32 1.0, %v2478
      %v2483 = vsub.f32 1.0, %v2479
      %v2484 = vmul.f32 %v2482, %v2474
      %v2485 = vmul.f32 %v2483, %v2475
      %v2486 = vadd.f32 %v2480, %v2484
      %v2487 = vadd.f32 %v2481, %v2485
      %v2488 = vmul.f32 %v2432, 1.25
      %v2489 = vmul.f32 %v2433, 1.25
      %v2490 = vmul.f32 %v2444, %v2442
      %v2491 = vmul.f32 %v2445, %v2443
      %v2492 = vsub.f32 1.0, %v2488
      %v2493 = vsub.f32 1.0, %v2489
      %v2494 = vmul.f32 %v2492, %v2486
      %v2495 = vmul.f32 %v2493, %v2487
      %v2496 = vadd.f32 %v2490, %v2494
      %v2497 = vadd.f32 %v2491, %v2495
      %v2498 = vmul.f32 %v2388, 0.8333333
      %v2499 = vmul.f32 %v2389, 0.8333333
      %v2500 = vmul.f32 %v2454, %v2452
      %v2501 = vmul.f32 %v2455, %v2453
      %v2502 = vsub.f32 1.0, %v2498
      %v2503 = vsub.f32 1.0, %v2499
      %v2504 = vmul.f32 %v2502, %v2496
      %v2505 = vmul.f32 %v2503, %v2497
      %v2506 = vadd.f32 %v2500, %v2504
      %v2507 = vadd.f32 %v2501, %v2505
      %v2508 = vpack.c.bf16 %v2506, %v2506
      %v2509 = vpack.c.bf16 %v2507, %v2507
      %2510 = vst [vmem:[#allocation2 + $0x1a0] sm:$0xf] %v2508
      %2511 = vst [vmem:[#allocation2 + $0x1a8] sm:$0xf] %v2509
      %v2512 = vld [vmem:[%s171 + $0x50] sm:$0xff]
      %v2513 = vld [vmem:[%s171 + $0x58] sm:$0xff]
      %v2514 = vxor.u32 %v2512, 2147483648
      %v2515 = vxor.u32 %v2513, 2147483648
      %v2516 = vmul.f32 %v2514, 1.442695
      %v2517 = vpow.pop %v2516
      %v2518 = vmul.f32 %v2515, 1.442695
      %v2519 = vpow.pop %v2518
      %v2520 = vadd.f32 %v2517, 1.0
      %v2521 = vadd.f32 %v2519, 1.0
      %v2522 = vrcp.pop %v2520
      %v2523 = vmul.f32 1.0, %v2522
      %v2524 = vrcp.pop %v2521
      %v2525 = vmul.f32 1.0, %v2524
      %v2526 = vmul.f32 %v2512, %v2523
      %v2527 = vmul.f32 %v2513, %v2525
      %v2528 = vpack.c.bf16 %v2526, %v2526
      %v2529 = vpack.c.bf16 %v2527, %v2527
      %v2532 = vrot.slane %v2528, 4
      %v2533 = vrot.slane %v2529, 4
      %2536 = vst [vmem:[#allocation2 + $0x20] sm:$0xf0] %v2532
      %2537 = vst [vmem:[#allocation2 + $0x28] sm:$0xf0] %v2533
      %vm2538 = vcmp.ge.f32.partialorder %v2512, -2.2
      %vm2539 = vcmp.ge.f32.partialorder %v2513, -2.2
      %v2540 = vsel %vm2538, 1, 0
      %v2541 = vsel %vm2539, 1, 0
      %v2542 = vcvt.s32.f32 %v2540
      %v2543 = vcvt.s32.f32 %v2541
      %vm2544 = vcmp.ge.f32.partialorder %v2512, -1.8
      %vm2545 = vcmp.ge.f32.partialorder %v2513, -1.8
      %v2546 = vsel %vm2544, 1, 0
      %v2547 = vsel %vm2545, 1, 0
      %v2548 = vcvt.s32.f32 %v2546
      %v2549 = vcvt.s32.f32 %v2547
      %v2550 = vsub.f32 %v2542, %v2548
      %v2551 = vsub.f32 %v2543, %v2549
      %v2552 = vsub.f32 %v2512, -2.2
      %v2553 = vsub.f32 %v2513, -2.2
      %vm2554 = vcmp.ge.f32.partialorder %v2512, -1.4
      %vm2555 = vcmp.ge.f32.partialorder %v2513, -1.4
      %v2556 = vsel %vm2554, 1, 0
      %v2557 = vsel %vm2555, 1, 0
      %v2558 = vcvt.s32.f32 %v2556
      %v2559 = vcvt.s32.f32 %v2557
      %v2560 = vsub.f32 %v2548, %v2558
      %v2561 = vsub.f32 %v2549, %v2559
      %v2562 = vsub.f32 %v2512, -1.8
      %v2563 = vsub.f32 %v2513, -1.8
      %v2564 = vmul.f32 %v2552, 2.5
      %v2565 = vmul.f32 %v2553, 2.5
      %v2566 = vmul.f32 %v2562, 2.5
      %v2567 = vmul.f32 %v2563, 2.5
      %v2568 = vmul.f32 %v2564, %v2550
      %v2569 = vmul.f32 %v2565, %v2551
      %v2570 = vsub.f32 1.0, %v2566
      %v2571 = vsub.f32 1.0, %v2567
      %v2572 = vmul.f32 %v2570, %v2560
      %v2573 = vmul.f32 %v2571, %v2561
      %v2574 = vadd.f32 %v2568, %v2572
      %v2575 = vadd.f32 %v2569, %v2573
      %vm2576 = vcmp.ge.f32.partialorder %v2512, -1.0
      %vm2577 = vcmp.ge.f32.partialorder %v2513, -1.0
      %v2578 = vsel %vm2576, 1, 0
      %v2579 = vsel %vm2577, 1, 0
      %v2580 = vcvt.s32.f32 %v2578
      %v2581 = vcvt.s32.f32 %v2579
      %v2582 = vsub.f32 %v2558, %v2580
      %v2583 = vsub.f32 %v2559, %v2581
      %v2584 = vsub.f32 %v2512, -1.4
      %v2585 = vsub.f32 %v2513, -1.4
      %v2586 = vmul.f32 %v2584, 2.5
      %v2587 = vmul.f32 %v2585, 2.5
      %v2588 = vmul.f32 %v2566, %v2560
      %v2589 = vmul.f32 %v2567, %v2561
      %v2590 = vsub.f32 1.0, %v2586
      %v2591 = vsub.f32 1.0, %v2587
      %v2592 = vmul.f32 %v2590, %v2582
      %v2593 = vmul.f32 %v2591, %v2583
      %v2594 = vadd.f32 %v2588, %v2592
      %v2595 = vadd.f32 %v2589, %v2593
      %v2596 = vmul.f32 %v2552, 1.25
      %v2597 = vmul.f32 %v2553, 1.25
      %v2598 = vmul.f32 %v2562, 1.25
      %v2599 = vmul.f32 %v2563, 1.25
      %v2600 = vmul.f32 %v2596, %v2574
      %v2601 = vmul.f32 %v2597, %v2575
      %v2602 = vsub.f32 1.0, %v2598
      %v2603 = vsub.f32 1.0, %v2599
      %v2604 = vmul.f32 %v2602, %v2594
      %v2605 = vmul.f32 %v2603, %v2595
      %v2606 = vadd.f32 %v2600, %v2604
      %v2607 = vadd.f32 %v2601, %v2605
      %vm2608 = vcmp.ge.f32.partialorder %v2512, -0.6
      %vm2609 = vcmp.ge.f32.partialorder %v2513, -0.6
      %v2610 = vsel %vm2608, 1, 0
      %v2611 = vsel %vm2609, 1, 0
      %v2612 = vcvt.s32.f32 %v2610
      %v2613 = vcvt.s32.f32 %v2611
      %v2614 = vsub.f32 %v2580, %v2612
      %v2615 = vsub.f32 %v2581, %v2613
      %v2616 = vsub.f32 %v2512, -1.0
      %v2617 = vsub.f32 %v2513, -1.0
      %v2618 = vmul.f32 %v2616, 2.5
      %v2619 = vmul.f32 %v2617, 2.5
      %v2620 = vmul.f32 %v2586, %v2582
      %v2621 = vmul.f32 %v2587, %v2583
      %v2622 = vsub.f32 1.0, %v2618
      %v2623 = vsub.f32 1.0, %v2619
      %v2624 = vmul.f32 %v2622, %v2614
      %v2625 = vmul.f32 %v2623, %v2615
      %v2626 = vadd.f32 %v2620, %v2624
      %v2627 = vadd.f32 %v2621, %v2625
      %v2628 = vmul.f32 %v2584, 1.25
      %v2629 = vmul.f32 %v2585, 1.25
      %v2630 = vmul.f32 %v2598, %v2594
      %v2631 = vmul.f32 %v2599, %v2595
      %v2632 = vsub.f32 1.0, %v2628
      %v2633 = vsub.f32 1.0, %v2629
      %v2634 = vmul.f32 %v2632, %v2626
      %v2635 = vmul.f32 %v2633, %v2627
      %v2636 = vadd.f32 %v2630, %v2634
      %v2637 = vadd.f32 %v2631, %v2635
      %v2638 = vmul.f32 %v2552, 0.8333333
      %v2639 = vmul.f32 %v2553, 0.8333333
      %v2640 = vmul.f32 %v2562, 0.8333333
      %v2641 = vmul.f32 %v2563, 0.8333333
      %v2642 = vmul.f32 %v2638, %v2606
      %v2643 = vmul.f32 %v2639, %v2607
      %v2644 = vsub.f32 1.0, %v2640
      %v2645 = vsub.f32 1.0, %v2641
      %v2646 = vmul.f32 %v2644, %v2636
      %v2647 = vmul.f32 %v2645, %v2637
      %v2648 = vadd.f32 %v2642, %v2646
      %v2649 = vadd.f32 %v2643, %v2647
      %v2650 = vpack.c.bf16 %v2648, %v2648
      %v2651 = vpack.c.bf16 %v2649, %v2649
      %v2654 = vrot.slane %v2650, 4
      %v2655 = vrot.slane %v2651, 4
      %2658 = vst [vmem:[#allocation2 + $0x50] sm:$0xf0] %v2654
      %2659 = vst [vmem:[#allocation2 + $0x58] sm:$0xf0] %v2655
      %vm2660 = vcmp.ge.f32.partialorder %v2512, -0.2
      %vm2661 = vcmp.ge.f32.partialorder %v2513, -0.2
      %v2662 = vsel %vm2660, 1, 0
      %v2663 = vsel %vm2661, 1, 0
      %v2664 = vcvt.s32.f32 %v2662
      %v2665 = vcvt.s32.f32 %v2663
      %v2666 = vsub.f32 %v2612, %v2664
      %v2667 = vsub.f32 %v2613, %v2665
      %v2668 = vsub.f32 %v2512, -0.6
      %v2669 = vsub.f32 %v2513, -0.6
      %v2670 = vmul.f32 %v2668, 2.5
      %v2671 = vmul.f32 %v2669, 2.5
      %v2672 = vmul.f32 %v2618, %v2614
      %v2673 = vmul.f32 %v2619, %v2615
      %v2674 = vsub.f32 1.0, %v2670
      %v2675 = vsub.f32 1.0, %v2671
      %v2676 = vmul.f32 %v2674, %v2666
      %v2677 = vmul.f32 %v2675, %v2667
      %v2678 = vadd.f32 %v2672, %v2676
      %v2679 = vadd.f32 %v2673, %v2677
      %v2680 = vmul.f32 %v2616, 1.25
      %v2681 = vmul.f32 %v2617, 1.25
      %v2682 = vmul.f32 %v2628, %v2626
      %v2683 = vmul.f32 %v2629, %v2627
      %v2684 = vsub.f32 1.0, %v2680
      %v2685 = vsub.f32 1.0, %v2681
      %v2686 = vmul.f32 %v2684, %v2678
      %v2687 = vmul.f32 %v2685, %v2679
      %v2688 = vadd.f32 %v2682, %v2686
      %v2689 = vadd.f32 %v2683, %v2687
      %v2690 = vmul.f32 %v2584, 0.8333333
      %v2691 = vmul.f32 %v2585, 0.8333333
      %v2692 = vmul.f32 %v2640, %v2636
      %v2693 = vmul.f32 %v2641, %v2637
      %v2694 = vsub.f32 1.0, %v2690
      %v2695 = vsub.f32 1.0, %v2691
      %v2696 = vmul.f32 %v2694, %v2688
      %v2697 = vmul.f32 %v2695, %v2689
      %v2698 = vadd.f32 %v2692, %v2696
      %v2699 = vadd.f32 %v2693, %v2697
      %v2700 = vpack.c.bf16 %v2698, %v2698
      %v2701 = vpack.c.bf16 %v2699, %v2699
      %v2704 = vrot.slane %v2700, 4
      %v2705 = vrot.slane %v2701, 4
      %2708 = vst [vmem:[#allocation2 + $0x80] sm:$0xf0] %v2704
      %2709 = vst [vmem:[#allocation2 + $0x88] sm:$0xf0] %v2705
      %vm2710 = vcmp.ge.f32.partialorder %v2512, 0.2
      %vm2711 = vcmp.ge.f32.partialorder %v2513, 0.2
      %v2712 = vsel %vm2710, 1, 0
      %v2713 = vsel %vm2711, 1, 0
      %v2714 = vcvt.s32.f32 %v2712
      %v2715 = vcvt.s32.f32 %v2713
      %v2716 = vsub.f32 %v2664, %v2714
      %v2717 = vsub.f32 %v2665, %v2715
      %v2718 = vsub.f32 %v2512, -0.2
      %v2719 = vsub.f32 %v2513, -0.2
      %v2720 = vmul.f32 %v2718, 2.5
      %v2721 = vmul.f32 %v2719, 2.5
      %v2722 = vmul.f32 %v2670, %v2666
      %v2723 = vmul.f32 %v2671, %v2667
      %v2724 = vsub.f32 1.0, %v2720
      %v2725 = vsub.f32 1.0, %v2721
      %v2726 = vmul.f32 %v2724, %v2716
      %v2727 = vmul.f32 %v2725, %v2717
      %v2728 = vadd.f32 %v2722, %v2726
      %v2729 = vadd.f32 %v2723, %v2727
      %v2730 = vmul.f32 %v2668, 1.25
      %v2731 = vmul.f32 %v2669, 1.25
      %v2732 = vmul.f32 %v2680, %v2678
      %v2733 = vmul.f32 %v2681, %v2679
      %v2734 = vsub.f32 1.0, %v2730
      %v2735 = vsub.f32 1.0, %v2731
      %v2736 = vmul.f32 %v2734, %v2728
      %v2737 = vmul.f32 %v2735, %v2729
      %v2738 = vadd.f32 %v2732, %v2736
      %v2739 = vadd.f32 %v2733, %v2737
      %v2740 = vmul.f32 %v2616, 0.8333333
      %v2741 = vmul.f32 %v2617, 0.8333333
      %v2742 = vmul.f32 %v2690, %v2688
      %v2743 = vmul.f32 %v2691, %v2689
      %v2744 = vsub.f32 1.0, %v2740
      %v2745 = vsub.f32 1.0, %v2741
      %v2746 = vmul.f32 %v2744, %v2738
      %v2747 = vmul.f32 %v2745, %v2739
      %v2748 = vadd.f32 %v2742, %v2746
      %v2749 = vadd.f32 %v2743, %v2747
      %v2750 = vpack.c.bf16 %v2748, %v2748
      %v2751 = vpack.c.bf16 %v2749, %v2749
      %v2754 = vrot.slane %v2750, 4
      %v2755 = vrot.slane %v2751, 4
      %2758 = vst [vmem:[#allocation2 + $0xb0] sm:$0xf0] %v2754
      %2759 = vst [vmem:[#allocation2 + $0xb8] sm:$0xf0] %v2755
      %vm2760 = vcmp.ge.f32.partialorder %v2512, 0.6
      %vm2761 = vcmp.ge.f32.partialorder %v2513, 0.6
      %v2762 = vsel %vm2760, 1, 0
      %v2763 = vsel %vm2761, 1, 0
      %v2764 = vcvt.s32.f32 %v2762
      %v2765 = vcvt.s32.f32 %v2763
      %v2766 = vsub.f32 %v2714, %v2764
      %v2767 = vsub.f32 %v2715, %v2765
      %v2768 = vsub.f32 %v2512, 0.2
      %v2769 = vsub.f32 %v2513, 0.2
      %v2770 = vmul.f32 %v2768, 2.5
      %v2771 = vmul.f32 %v2769, 2.5
      %v2772 = vmul.f32 %v2720, %v2716
      %v2773 = vmul.f32 %v2721, %v2717
      %v2774 = vsub.f32 1.0, %v2770
      %v2775 = vsub.f32 1.0, %v2771
      %v2776 = vmul.f32 %v2774, %v2766
      %v2777 = vmul.f32 %v2775, %v2767
      %v2778 = vadd.f32 %v2772, %v2776
      %v2779 = vadd.f32 %v2773, %v2777
      %v2780 = vmul.f32 %v2718, 1.25
      %v2781 = vmul.f32 %v2719, 1.25
      %v2782 = vmul.f32 %v2730, %v2728
      %v2783 = vmul.f32 %v2731, %v2729
      %v2784 = vsub.f32 1.0, %v2780
      %v2785 = vsub.f32 1.0, %v2781
      %v2786 = vmul.f32 %v2784, %v2778
      %v2787 = vmul.f32 %v2785, %v2779
      %v2788 = vadd.f32 %v2782, %v2786
      %v2789 = vadd.f32 %v2783, %v2787
      %v2790 = vmul.f32 %v2668, 0.8333333
      %v2791 = vmul.f32 %v2669, 0.8333333
      %v2792 = vmul.f32 %v2740, %v2738
      %v2793 = vmul.f32 %v2741, %v2739
      %v2794 = vsub.f32 1.0, %v2790
      %v2795 = vsub.f32 1.0, %v2791
      %v2796 = vmul.f32 %v2794, %v2788
      %v2797 = vmul.f32 %v2795, %v2789
      %v2798 = vadd.f32 %v2792, %v2796
      %v2799 = vadd.f32 %v2793, %v2797
      %v2800 = vpack.c.bf16 %v2798, %v2798
      %v2801 = vpack.c.bf16 %v2799, %v2799
      %v2804 = vrot.slane %v2800, 4
      %v2805 = vrot.slane %v2801, 4
      %2808 = vst [vmem:[#allocation2 + $0xe0] sm:$0xf0] %v2804
      %2809 = vst [vmem:[#allocation2 + $0xe8] sm:$0xf0] %v2805
      %vm2810 = vcmp.ge.f32.partialorder %v2512, 1.0
      %vm2811 = vcmp.ge.f32.partialorder %v2513, 1.0
      %v2812 = vsel %vm2810, 1, 0
      %v2813 = vsel %vm2811, 1, 0
      %v2814 = vcvt.s32.f32 %v2812
      %v2815 = vcvt.s32.f32 %v2813
      %v2816 = vsub.f32 %v2764, %v2814
      %v2817 = vsub.f32 %v2765, %v2815
      %v2818 = vsub.f32 %v2512, 0.6
      %v2819 = vsub.f32 %v2513, 0.6
      %v2820 = vmul.f32 %v2818, 2.5
      %v2821 = vmul.f32 %v2819, 2.5
      %v2822 = vmul.f32 %v2770, %v2766
      %v2823 = vmul.f32 %v2771, %v2767
      %v2824 = vsub.f32 1.0, %v2820
      %v2825 = vsub.f32 1.0, %v2821
      %v2826 = vmul.f32 %v2824, %v2816
      %v2827 = vmul.f32 %v2825, %v2817
      %v2828 = vadd.f32 %v2822, %v2826
      %v2829 = vadd.f32 %v2823, %v2827
      %v2830 = vmul.f32 %v2768, 1.25
      %v2831 = vmul.f32 %v2769, 1.25
      %v2832 = vmul.f32 %v2780, %v2778
      %v2833 = vmul.f32 %v2781, %v2779
      %v2834 = vsub.f32 1.0, %v2830
      %v2835 = vsub.f32 1.0, %v2831
      %v2836 = vmul.f32 %v2834, %v2828
      %v2837 = vmul.f32 %v2835, %v2829
      %v2838 = vadd.f32 %v2832, %v2836
      %v2839 = vadd.f32 %v2833, %v2837
      %v2840 = vmul.f32 %v2718, 0.8333333
      %v2841 = vmul.f32 %v2719, 0.8333333
      %v2842 = vmul.f32 %v2790, %v2788
      %v2843 = vmul.f32 %v2791, %v2789
      %v2844 = vsub.f32 1.0, %v2840
      %v2845 = vsub.f32 1.0, %v2841
      %v2846 = vmul.f32 %v2844, %v2838
      %v2847 = vmul.f32 %v2845, %v2839
      %v2848 = vadd.f32 %v2842, %v2846
      %v2849 = vadd.f32 %v2843, %v2847
      %v2850 = vpack.c.bf16 %v2848, %v2848
      %v2851 = vpack.c.bf16 %v2849, %v2849
      %v2854 = vrot.slane %v2850, 4
      %v2855 = vrot.slane %v2851, 4
      %2858 = vst [vmem:[#allocation2 + $0x110] sm:$0xf0] %v2854
      %2859 = vst [vmem:[#allocation2 + $0x118] sm:$0xf0] %v2855
      %vm2860 = vcmp.ge.f32.partialorder %v2512, 1.4
      %vm2861 = vcmp.ge.f32.partialorder %v2513, 1.4
      %v2862 = vsel %vm2860, 1, 0
      %v2863 = vsel %vm2861, 1, 0
      %v2864 = vcvt.s32.f32 %v2862
      %v2865 = vcvt.s32.f32 %v2863
      %v2866 = vsub.f32 %v2814, %v2864
      %v2867 = vsub.f32 %v2815, %v2865
      %v2868 = vsub.f32 %v2512, 1.0
      %v2869 = vsub.f32 %v2513, 1.0
      %v2870 = vmul.f32 %v2868, 2.5
      %v2871 = vmul.f32 %v2869, 2.5
      %v2872 = vmul.f32 %v2820, %v2816
      %v2873 = vmul.f32 %v2821, %v2817
      %v2874 = vsub.f32 1.0, %v2870
      %v2875 = vsub.f32 1.0, %v2871
      %v2876 = vmul.f32 %v2874, %v2866
      %v2877 = vmul.f32 %v2875, %v2867
      %v2878 = vadd.f32 %v2872, %v2876
      %v2879 = vadd.f32 %v2873, %v2877
      %v2880 = vmul.f32 %v2818, 1.25
      %v2881 = vmul.f32 %v2819, 1.25
      %v2882 = vmul.f32 %v2830, %v2828
      %v2883 = vmul.f32 %v2831, %v2829
      %v2884 = vsub.f32 1.0, %v2880
      %v2885 = vsub.f32 1.0, %v2881
      %v2886 = vmul.f32 %v2884, %v2878
      %v2887 = vmul.f32 %v2885, %v2879
      %v2888 = vadd.f32 %v2882, %v2886
      %v2889 = vadd.f32 %v2883, %v2887
      %v2890 = vmul.f32 %v2768, 0.8333333
      %v2891 = vmul.f32 %v2769, 0.8333333
      %v2892 = vmul.f32 %v2840, %v2838
      %v2893 = vmul.f32 %v2841, %v2839
      %v2894 = vsub.f32 1.0, %v2890
      %v2895 = vsub.f32 1.0, %v2891
      %v2896 = vmul.f32 %v2894, %v2888
      %v2897 = vmul.f32 %v2895, %v2889
      %v2898 = vadd.f32 %v2892, %v2896
      %v2899 = vadd.f32 %v2893, %v2897
      %v2900 = vpack.c.bf16 %v2898, %v2898
      %v2901 = vpack.c.bf16 %v2899, %v2899
      %v2904 = vrot.slane %v2900, 4
      %v2905 = vrot.slane %v2901, 4
      %2908 = vst [vmem:[#allocation2 + $0x140] sm:$0xf0] %v2904
      %2909 = vst [vmem:[#allocation2 + $0x148] sm:$0xf0] %v2905
      %vm2910 = vcmp.ge.f32.partialorder %v2512, 1.8
      %vm2911 = vcmp.ge.f32.partialorder %v2513, 1.8
      %v2912 = vsel %vm2910, 1, 0
      %v2913 = vsel %vm2911, 1, 0
      %v2914 = vcvt.s32.f32 %v2912
      %v2915 = vcvt.s32.f32 %v2913
      %v2916 = vsub.f32 %v2864, %v2914
      %v2917 = vsub.f32 %v2865, %v2915
      %v2918 = vsub.f32 %v2512, 1.4
      %v2919 = vsub.f32 %v2513, 1.4
      %v2920 = vmul.f32 %v2918, 2.5
      %v2921 = vmul.f32 %v2919, 2.5
      %v2922 = vmul.f32 %v2870, %v2866
      %v2923 = vmul.f32 %v2871, %v2867
      %v2924 = vsub.f32 1.0, %v2920
      %v2925 = vsub.f32 1.0, %v2921
      %v2926 = vmul.f32 %v2924, %v2916
      %v2927 = vmul.f32 %v2925, %v2917
      %v2928 = vadd.f32 %v2922, %v2926
      %v2929 = vadd.f32 %v2923, %v2927
      %v2930 = vmul.f32 %v2868, 1.25
      %v2931 = vmul.f32 %v2869, 1.25
      %v2932 = vmul.f32 %v2880, %v2878
      %v2933 = vmul.f32 %v2881, %v2879
      %v2934 = vsub.f32 1.0, %v2930
      %v2935 = vsub.f32 1.0, %v2931
      %v2936 = vmul.f32 %v2934, %v2928
      %v2937 = vmul.f32 %v2935, %v2929
      %v2938 = vadd.f32 %v2932, %v2936
      %v2939 = vadd.f32 %v2933, %v2937
      %v2940 = vmul.f32 %v2818, 0.8333333
      %v2941 = vmul.f32 %v2819, 0.8333333
      %v2942 = vmul.f32 %v2890, %v2888
      %v2943 = vmul.f32 %v2891, %v2889
      %v2944 = vsub.f32 1.0, %v2940
      %v2945 = vsub.f32 1.0, %v2941
      %v2946 = vmul.f32 %v2944, %v2938
      %v2947 = vmul.f32 %v2945, %v2939
      %v2948 = vadd.f32 %v2942, %v2946
      %v2949 = vadd.f32 %v2943, %v2947
      %v2950 = vpack.c.bf16 %v2948, %v2948
      %v2951 = vpack.c.bf16 %v2949, %v2949
      %v2954 = vrot.slane %v2950, 4
      %v2955 = vrot.slane %v2951, 4
      %2958 = vst [vmem:[#allocation2 + $0x170] sm:$0xf0] %v2954
      %2959 = vst [vmem:[#allocation2 + $0x178] sm:$0xf0] %v2955
      %vm2960 = vcmp.ge.f32.partialorder %v2512, 2.2
      %vm2961 = vcmp.ge.f32.partialorder %v2513, 2.2
      %v2962 = vsel %vm2960, 1, 0
      %v2963 = vsel %vm2961, 1, 0
      %v2964 = vcvt.s32.f32 %v2962
      %v2965 = vcvt.s32.f32 %v2963
      %v2966 = vsub.f32 %v2914, %v2964
      %v2967 = vsub.f32 %v2915, %v2965
      %v2968 = vsub.f32 %v2512, 1.8
      %v2969 = vsub.f32 %v2513, 1.8
      %v2970 = vmul.f32 %v2968, 2.5
      %v2971 = vmul.f32 %v2969, 2.5
      %v2972 = vmul.f32 %v2920, %v2916
      %v2973 = vmul.f32 %v2921, %v2917
      %v2974 = vsub.f32 1.0, %v2970
      %v2975 = vsub.f32 1.0, %v2971
      %v2976 = vmul.f32 %v2974, %v2966
      %v2977 = vmul.f32 %v2975, %v2967
      %v2978 = vadd.f32 %v2972, %v2976
      %v2979 = vadd.f32 %v2973, %v2977
      %v2980 = vmul.f32 %v2918, 1.25
      %v2981 = vmul.f32 %v2919, 1.25
      %v2982 = vmul.f32 %v2930, %v2928
      %v2983 = vmul.f32 %v2931, %v2929
      %v2984 = vsub.f32 1.0, %v2980
      %v2985 = vsub.f32 1.0, %v2981
      %v2986 = vmul.f32 %v2984, %v2978
      %v2987 = vmul.f32 %v2985, %v2979
      %v2988 = vadd.f32 %v2982, %v2986
      %v2989 = vadd.f32 %v2983, %v2987
      %v2990 = vmul.f32 %v2868, 0.8333333
      %v2991 = vmul.f32 %v2869, 0.8333333
      %v2992 = vmul.f32 %v2940, %v2938
      %v2993 = vmul.f32 %v2941, %v2939
      %v2994 = vsub.f32 1.0, %v2990
      %v2995 = vsub.f32 1.0, %v2991
      %v2996 = vmul.f32 %v2994, %v2988
      %v2997 = vmul.f32 %v2995, %v2989
      %v2998 = vadd.f32 %v2992, %v2996
      %v2999 = vadd.f32 %v2993, %v2997
      %v3000 = vpack.c.bf16 %v2998, %v2998
      %v3001 = vpack.c.bf16 %v2999, %v2999
      %v3004 = vrot.slane %v3000, 4
      %v3005 = vrot.slane %v3001, 4
      %3008 = vst [vmem:[#allocation2 + $0x1a0] sm:$0xf0] %v3004
      %3009 = vst [vmem:[#allocation2 + $0x1a8] sm:$0xf0] %v3005
      %v3010 = vld [vmem:[%s1] sm:$0xff]
      %v3011 = vld [vmem:[%s1 + $0x8] sm:$0xff]
      %v3012 = vld [vmem:[#allocation2] sm:$0xff]
      %v3013 = vld [vmem:[#allocation2 + $0x8] sm:$0xff]
      %v3014 = vld [vmem:[#allocation2 + $0x10] sm:$0xff]
      %v3015 = vld [vmem:[#allocation2 + $0x18] sm:$0xff]
      %v3016 = vld [vmem:[#allocation2 + $0x20] sm:$0xff]
      %v3017 = vld [vmem:[#allocation2 + $0x28] sm:$0xff]
      %v3018 = vld [vmem:[#allocation2 + $0x30] sm:$0xff]
      %v3019 = vld [vmem:[#allocation2 + $0x38] sm:$0xff]
      %v3020 = vld [vmem:[#allocation2 + $0x40] sm:$0xff]
      %v3021 = vld [vmem:[#allocation2 + $0x48] sm:$0xff]
      %v3022 = vld [vmem:[#allocation2 + $0x50] sm:$0xff]
      %v3023 = vld [vmem:[#allocation2 + $0x58] sm:$0xff]
      %v3024 = vld [vmem:[#allocation2 + $0x60] sm:$0xff]
      %v3025 = vld [vmem:[#allocation2 + $0x68] sm:$0xff]
      %v3026 = vld [vmem:[#allocation2 + $0x70] sm:$0xff]
      %v3027 = vld [vmem:[#allocation2 + $0x78] sm:$0xff]
      %v3028 = vld [vmem:[#allocation2 + $0x80] sm:$0xff]
      %v3029 = vld [vmem:[#allocation2 + $0x88] sm:$0xff]
      %v3030 = vld [vmem:[#allocation2 + $0x90] sm:$0xff]
      %v3031 = vld [vmem:[#allocation2 + $0x98] sm:$0xff]
      %v3032 = vld [vmem:[#allocation2 + $0xa0] sm:$0xff]
      %v3033 = vld [vmem:[#allocation2 + $0xa8] sm:$0xff]
      %v3034 = vld [vmem:[#allocation2 + $0xb0] sm:$0xff]
      %v3035 = vld [vmem:[#allocation2 + $0xb8] sm:$0xff]
      %v3036 = vld [vmem:[#allocation2 + $0xc0] sm:$0xff]
      %v3037 = vld [vmem:[#allocation2 + $0xc8] sm:$0xff]
      %v3038 = vld [vmem:[#allocation2 + $0xd0] sm:$0xff]
      %v3039 = vld [vmem:[#allocation2 + $0xd8] sm:$0xff]
      %v3040 = vld [vmem:[#allocation2 + $0xe0] sm:$0xff]
      %v3041 = vld [vmem:[#allocation2 + $0xe8] sm:$0xff]
      %v3042 = vld [vmem:[#allocation2 + $0xf0] sm:$0xff]
      %v3043 = vld [vmem:[#allocation2 + $0xf8] sm:$0xff]
      %v3044 = vld [vmem:[#allocation2 + $0x100] sm:$0xff]
      %v3045 = vld [vmem:[#allocation2 + $0x108] sm:$0xff]
      %v3046 = vld [vmem:[#allocation2 + $0x110] sm:$0xff]
      %v3047 = vld [vmem:[#allocation2 + $0x118] sm:$0xff]
      %v3048 = vld [vmem:[#allocation2 + $0x120] sm:$0xff]
      %v3049 = vld [vmem:[#allocation2 + $0x128] sm:$0xff]
      %v3050 = vld [vmem:[#allocation2 + $0x130] sm:$0xff]
      %v3051 = vld [vmem:[#allocation2 + $0x138] sm:$0xff]
      %v3052 = vld [vmem:[#allocation2 + $0x140] sm:$0xff]
      %v3053 = vld [vmem:[#allocation2 + $0x148] sm:$0xff]
      %v3054 = vld [vmem:[#allocation2 + $0x150] sm:$0xff]
      %v3055 = vld [vmem:[#allocation2 + $0x158] sm:$0xff]
      %v3056 = vld [vmem:[#allocation2 + $0x160] sm:$0xff]
      %v3057 = vld [vmem:[#allocation2 + $0x168] sm:$0xff]
      %v3058 = vld [vmem:[#allocation2 + $0x170] sm:$0xff]
      %v3059 = vld [vmem:[#allocation2 + $0x178] sm:$0xff]
      %v3060 = vld [vmem:[#allocation2 + $0x180] sm:$0xff]
      %v3061 = vld [vmem:[#allocation2 + $0x188] sm:$0xff]
      %v3062 = vld [vmem:[#allocation2 + $0x190] sm:$0xff]
      %v3063 = vld [vmem:[#allocation2 + $0x198] sm:$0xff]
      %v3064 = vld [vmem:[#allocation2 + $0x1a0] sm:$0xff]
      %v3065 = vld [vmem:[#allocation2 + $0x1a8] sm:$0xff]
      %v3068 = vunpack.c.l.b16 %v3010
      %v3069 = vunpack.c.h.b16 %v3010
      %v3070 = vunpack.c.l.b16 %v3011
      %v3071 = vunpack.c.h.b16 %v3011
      %v3072 = vpack.c.b16 %v3068, %v3068
      %v3073 = vpack.c.b16 %v3069, %v3069
      %v3074 = vpack.c.b16 %v3070, %v3070
      %v3075 = vpack.c.b16 %v3071, %v3071
      %vm3079 = vcmask 392192
      %v3081 = vsel %vm3079, %v3075, 0
      %3083 = vmatprep.subr.bf16.mxu0 %v3013
      %3084 = vmatpush1.bf16.msra.mxu0 %v3012
      %3085 = vmatprep.subr.bf16.mxu0 %v3015
      %3086 = vmatpush1.bf16.msra.mxu0 %v3014
      %3087 = vmatprep.subr.bf16.mxu0 %v3017
      %3088 = vmatpush1.bf16.msra.mxu0 %v3016
      %3089 = vmatprep.subr.bf16.mxu0 %v3019
      %3090 = vmatpush1.bf16.msra.mxu0 %v3018
      %3091 = vmatprep.subr.bf16.mxu0 %v3021
      %3092 = vmatpush1.bf16.msra.mxu0 %v3020
      %3093 = vmatprep.subr.bf16.mxu0 %v3023
      %3094 = vmatpush1.bf16.msra.mxu0 %v3022
      %3095 = vmatprep.subr.bf16.mxu0 %v3025
      %3096 = vmatpush1.bf16.msra.mxu0 %v3024
      %3097 = vmatprep.subr.bf16.mxu0 %v3027
      %3098 = vmatpush1.bf16.msra.mxu0 %v3026
      %3099 = vmatprep.subr.bf16.mxu0 %v3029
      %3100 = vmatpush1.bf16.msra.mxu0 %v3028
      %3101 = vmatprep.subr.bf16.mxu0 %v3031
      %3102 = vmatpush1.bf16.msra.mxu0 %v3030
      %3103 = vmatprep.subr.bf16.mxu0 %v3033
      %3104 = vmatpush1.bf16.msra.mxu0 %v3032
      %3105 = vmatprep.subr.bf16.mxu0 %v3035
      %3106 = vmatpush1.bf16.msra.mxu0 %v3034
      %3107 = vmatprep.subr.bf16.mxu0 %v3037
      %3108 = vmatpush1.bf16.msra.mxu0 %v3036
      %3109 = vmatprep.subr.bf16.mxu0 %v3039
      %3110 = vmatpush1.bf16.msra.mxu0 %v3038
      %3111 = vmatprep.subr.bf16.mxu0 %v3041
      %3112 = vmatpush1.bf16.msra.mxu0 %v3040
      %3113 = vmatprep.subr.bf16.mxu0 %v3043
      %3114 = vmatpush1.bf16.msra.mxu0 %v3042
      %3115 = vmatprep.mubr.bf16.mxu0 %v3073
      %3116 = vmatmul.mubr.bf16.gmra.mrb[0].mxu0 %v3072
      %v3117 = vpop.f32.mrb[0].mxu0
      %v3118 = vadd.f32 0.0, %v3117
      %v3119 = vpop.f32.mrb[0].mxu0
      %v3120 = vadd.f32 0.0, %v3119
      %v3121 = vpop.f32.mrb[0].mxu0
      %v3122 = vpop.f32.mrb[0].mxu0
      %3123 = vdwg.mxu0
      %3124 = vmatprep.subr.bf16.mxu0 %v3045
      %3125 = vmatpush1.bf16.msra.mxu0 %v3044
      %3126 = vmatprep.subr.bf16.mxu0 %v3047
      %3127 = vmatpush1.bf16.msra.mxu0 %v3046
      %3128 = vmatprep.subr.bf16.mxu0 %v3049
      %3129 = vmatpush1.bf16.msra.mxu0 %v3048
      %3130 = vmatprep.subr.bf16.mxu0 %v3051
      %3131 = vmatpush1.bf16.msra.mxu0 %v3050
      %3132 = vmatprep.subr.bf16.mxu0 %v3053
      %3133 = vmatpush1.bf16.msra.mxu0 %v3052
      %3134 = vmatprep.subr.bf16.mxu0 %v3055
      %3135 = vmatpush1.bf16.msra.mxu0 %v3054
      %3136 = vmatprep.subr.bf16.mxu0 %v3057
      %3137 = vmatpush1.bf16.msra.mxu0 %v3056
      %3138 = vmatprep.subr.bf16.mxu0 %v3059
      %3139 = vmatpush1.bf16.msra.mxu0 %v3058
      %3140 = vmatprep.subr.bf16.mxu0 %v3061
      %3141 = vmatpush1.bf16.msra.mxu0 %v3060
      %3142 = vmatprep.subr.bf16.mxu0 %v3063
      %3143 = vmatpush1.bf16.msra.mxu0 %v3062
      %3144 = vmatprep.subr.bf16.mxu0 %v3065
      %3145 = vmatpush1.bf16.msra.mxu0 %v3064
      %3146 = vmatprep.subr.bf16.mxu0 0
      %3147 = vmatpush1.bf16.msra.mxu0 0
      %3148 = vmatprep.subr.bf16.mxu0 0
      %3149 = vmatpush1.bf16.msra.mxu0 0
      %3150 = vmatprep.subr.bf16.mxu0 0
      %3151 = vmatpush1.bf16.msra.mxu0 0
      %3152 = vmatprep.subr.bf16.mxu0 0
      %3153 = vmatpush1.bf16.msra.mxu0 0
      %3154 = vmatprep.subr.bf16.mxu0 0
      %3155 = vmatpush1.bf16.msra.mxu0 0
      %3156 = vmatprep.mubr.bf16.mxu0 %v3081
      %3157 = vmatmul.mubr.bf16.gmra.mrb[0].mxu0 %v3074
      %v3158 = vpop.f32.mrb[0].mxu0
      %v3159 = vadd.f32 %v3118, %v3158
      %v3160 = vpop.f32.mrb[0].mxu0
      %v3161 = vadd.f32 %v3120, %v3160
      %v3162 = vpop.f32.mrb[0].mxu0
      %v3163 = vpop.f32.mrb[0].mxu0
      %3164 = vdwg.mxu0
      %3165 = vst [vmem:[%s181] sm:$0xff] %v3159
      %3166 = vst [vmem:[%s181 + $0x8] sm:$0xff] %v3161
      %s3167 = smul.u32 2, %s18
      %p3168 = scmp.lt.s32.totalorder %s17, 1
      %s3169 = scalar_select %p3168, %s17, 1
      %p3170 = scmp.lt.s32.totalorder %s3167, 1
      %s3171 = scalar_select %p3170, %s3167, 1
      %s3172 = smul.addr %s3169, 2
      %s3173 = sadd.s32 %s3171, %s3172
      %s3174 = smul.addr %s3173, 8
      %s3175 = scalar_lea.vmem %s2, %s3174
      // Predicated region
      $region29: #{conv_kan_forward.1} parent=27 // pred_check
        %p3176 = pneg %p94
      $region30: #{conv_kan_forward.1} parent=27 // pred_check_branch
        %3178 = sbr.rel (%p3176) target = $region32
      $region31: #{conv_kan_forward.1} parent=27 // pred_region
        %s3179 = smul.u32 2, %s18
      $region32: #{conv_kan_forward.1} parent=27 // pred_fallthru
        _
    $region28: #{conv_kan_forward.1} parent=5 // pred_fallthru
      _
    %p3180 = scmp.le.s32.totalorder 2, %s8
    // Predicated region
    $region33: #{conv_kan_forward.1} parent=5 // pred_check
      %p3181 = pneg %p3180
    $region34: #{conv_kan_forward.1} parent=5 // pred_check_branch
      %3183 = sbr.rel (%p3181) target = $region36
    $region35: #{conv_kan_forward.1} parent=5 // pred_region
      %s3184 = ssub.s32 %s8, 2
      // Predicated region
      $region37: #{conv_kan_forward.1} parent=35 // pred_check
        %p3185 = pneg %p100
      $region38: #{conv_kan_forward.1} parent=35 // pred_check_branch
        %3187 = sbr.rel (%p3185) target = $region40
      $region39: #{conv_kan_forward.1} parent=35 // pred_region
        %s3188 = smul.u32 2, %s20
        %p3189 = scmp.lt.s32.totalorder %s19, 1
        %s3190 = scalar_select %p3189, %s19, 1
        %p3191 = scmp.lt.s32.totalorder %s3188, 1
        %s3192 = scalar_select %p3191, %s3188, 1
        %s3193 = smul.addr %s3190, 2
        %s3194 = sadd.s32 %s3192, %s3193
        %s3195 = smul.addr %s3194, 8
        %s3196 = scalar_lea.vmem %s2, %s3195
      $region40: #{conv_kan_forward.1} parent=35 // pred_fallthru
        _
    $region36: #{conv_kan_forward.1} parent=5 // pred_fallthru
      _
  $region6: #{conv_kan_forward.1} parent=0 // loop_footer
    %s12 = sadd.s32 1, %s8
  $region7: #{conv_kan_forward.1} parent=0 // loop_footer_branch
    %7 = sbr.rel target = $region3
  $region8: #{conv_kan_forward.1} parent=0 // loop_exit
    _

</llo_original>
